<compile_context>
chip_gen: v5e
topology: v5e:2x2
jax: 0.10.0
libtpu: 0.0.40
codegen_flags: <defaults>
</compile_context>

<pallas_src>
import math
import jax
import jax.numpy as jnp
from jax.experimental import pallas as pl
from jax.experimental.pallas import tpu as pltpu

_SELU_ALPHA = 1.6732632423543772848170429916717
_SELU_SCALE = 1.0507009873554804934193349852946
_NEG = -1e30
_LANES = 128


def _selu(x):
    return _SELU_SCALE * jnp.where(x > 0, x, _SELU_ALPHA * (jnp.exp(x) - 1.0))


def _log_softmax(x, axis):
    m = jnp.max(x, axis=axis, keepdims=True)
    s = x - m
    return s - jnp.log(jnp.sum(jnp.exp(s), axis=axis, keepdims=True))


def decode_kernel(
    sentence_ref, enc_ref, ench_ref, sos_ref, attn_ref,
    gru_w_ref, gru_b_ref, head_w_ref, head_b_ref,
    fuse_we_ref, fuse_misc_ref, rel_emb_ref, word_emb_ref,
    logits_ref, act_ref,
):
    f32 = jnp.float32
    B, S, H = enc_ref.shape
    F = fuse_we_ref.shape[1]
    Rp1 = rel_emb_ref.shape[0]
    W = word_emb_ref.shape[0]
    C = gru_w_ref.shape[0]
    L = logits_ref.shape[2]

    # ---- load everything once (all weights stay resident) ----
    sentence = sentence_ref[...]                       # (B,S) int32
    enc = enc_ref[...]                                 # (B,S,H)
    ench = ench_ref[...]                               # (B,H)   encoder final state
    attn = attn_ref[...]                               # (2,H)
    attn_wd = attn[0:1, :]                             # (1,H) decoder-state half
    attn_we = attn[1:2, :]                             # (1,H) encoder half
    head_w = head_w_ref[...]                           # (2H,L) pred|eos|fuse_wo packed
    head_b = head_b_ref[...]                           # (1,L)
    fuse_we = fuse_we_ref[...]                         # (H,F)
    fuse_misc = fuse_misc_ref[...]                     # (2,F+1)
    fuse_b = fuse_misc[0:1, :F]                        # (1,F)
    copy_w = fuse_misc[1:2, :F]                        # (1,F)
    copy_b = fuse_misc[1:2, F:F + 1]                   # (1,1)
    rel_emb = rel_emb_ref[...]                         # (Rp1,E)
    word_emb = word_emb_ref[...]                       # (W,E)

    # ---- hoisted, step-invariant encoder work (runs once) ----
    # attn bias is dropped: softmax(x + c) == softmax(x), so it is exact.
    enc_score = jnp.sum(enc * attn_we, axis=2)         # (B,S)
    fuse_enc = (jnp.dot(_selu(enc).reshape(B * S, H), fuse_we,
                        preferred_element_type=f32)
                + fuse_b).reshape(B, S, F)             # (B,S,F) = selu(enc)@fuse_we+b

    lane_iota = jax.lax.broadcasted_iota(jnp.int32, (B, L), 1)
    rel_iota = jax.lax.broadcasted_iota(jnp.int32, (B, Rp1), 1)
    pos_iota = jax.lax.broadcasted_iota(jnp.int32, (B, S), 1)
    w_iota = jax.lax.broadcasted_iota(jnp.int32, (B, W), 1)

    def argmax_rows(padded):                           # lowest index among maxes
        m = jnp.max(padded, axis=1, keepdims=True)
        cand = jnp.where(padded == m, lane_iota, L)
        return jnp.min(cand, axis=1, keepdims=True)    # (B,1) int32

    emb = sos_ref[...]                                 # (B,E) current input embedding
    prev_h = jnp.zeros((B, H), f32)                    # previous_state
    actions = []

    for c in range(C):                                 # decoder cells (static unroll)
        w_big = gru_w_ref[c]                           # (E+2H, 4H)  fused GRU weights
        b_big = gru_b_ref[c]                           # (1, 4H)
        h = (ench + prev_h) * 0.5                      # new cell: (enc_state+prev)/2
        for t3 in range(3):                            # 3 decode steps per cell
            t = 3 * c + t3

            # ---- attention context (dec_score via VPU reduce, not MXU) ----
            dec_score = jnp.sum(h * attn_wd, axis=1, keepdims=True)      # (B,1)
            scores = enc_score + dec_score                               # (B,S)
            mx = jnp.max(scores, axis=1, keepdims=True)
            ex = jnp.exp(scores - mx)
            aw = ex / jnp.sum(ex, axis=1, keepdims=True)                 # exact softmax
            context = jnp.sum(aw[:, :, None] * enc, axis=1)              # (B,H)

            # ---- combine_inputs folded into GRU: ONE matmul for the whole cell ----
            xh = jnp.concatenate([emb, context, h], axis=1)              # (B,E+2H)
            gates = jnp.dot(xh, w_big, preferred_element_type=f32) + b_big  # (B,4H)
            r = jax.nn.sigmoid(gates[:, 0:H])
            z = jax.nn.sigmoid(gates[:, H:2 * H])
            n = jnp.tanh(gates[:, 2 * H:3 * H] + r * gates[:, 3 * H:4 * H])
            h = (1.0 - z) * n + z * h                                    # (B,H)

            # ---- fused predict + eos + fuse_wo head: ONE lane-dense matmul ----
            head_in = jnp.concatenate([h, _selu(h)], axis=1)             # (B,2H)
            head = (jnp.dot(head_in, head_w, preferred_element_type=f32)
                    + head_b)                                            # (B,L)
            eos = head[:, Rp1 - 1:Rp1]                                   # (B,1)

            if t3 == 0:
                # predict step: log_softmax(pred+eos), pick relation embedding
                padded = jnp.where(lane_iota < Rp1, head, _NEG)          # (B,L)
                logits_ref[t] = _log_softmax(padded, axis=1)
                action = argmax_rows(padded)                             # (B,1)
                onehot = (rel_iota == action).astype(f32)                # (B,Rp1)
                emb = jnp.dot(onehot, rel_emb, preferred_element_type=f32)
            else:
                # copy step: selu-fused copy head, pick copied word embedding
                fo = head[:, Rp1:Rp1 + F]                                # (B,F)
                fused = _selu(fo[:, None, :] + fuse_enc)                 # (B,S,F)
                copy = jnp.sum(fused * copy_w, axis=2) + copy_b          # (B,S)
                padded = jnp.concatenate(
                    [copy, eos, jnp.full((B, L - S - 1), _NEG, f32)], axis=1)
                logits_ref[t] = _log_softmax(padded, axis=1)
                action = argmax_rows(padded)                             # (B,1), 0..S
                # TODO(synk): torch would raise if eos (index S) wins the argmax at a
                #             copy step; here the index is clipped to the last token.
                idx = jnp.minimum(action, S - 1)
                word_id = jnp.sum(jnp.where(pos_iota == idx, sentence, 0),
                                  axis=1, keepdims=True)                 # (B,1) int32
                w_onehot = (w_iota == word_id).astype(f32)               # (B,W)
                emb = jnp.dot(w_onehot, word_emb, preferred_element_type=f32)
            actions.append(action)
        prev_h = h                                                       # end of cell

    act_ref[...] = jnp.concatenate(actions, axis=1).astype(jnp.int32)    # (B,T)


def _full_spec(shape):
    nd = len(shape)
    return pl.BlockSpec(shape, lambda i, _n=nd: (0,) * _n)


def multi_decoder_forward(params, sentence, decoder_state, encoder_outputs):
    """Replicates MultiDecoder.forward (cell_name='gru')."""
    B, S = sentence.shape
    E = params['sos_embedding'].shape[-1]
    Rp1 = params['relation_embedding'].shape[0]
    C = params['gru_w'].shape[0]
    T = 3 * C
    L = _LANES

    enc_h = decoder_state[0]                                   # (B,H); torch: (1,B,H)
    sos = jnp.broadcast_to(params['sos_embedding'][0:1, :], (B, E))
    # NOTE: first_entity_mask is built in the torch code but never consumed by
    # _decode_step, so it is omitted (no effect on outputs).

    args = [
        sentence.astype(jnp.int32),
        encoder_outputs.astype(jnp.float32),
        enc_h.astype(jnp.float32),
        sos.astype(jnp.float32),
        params['attn'], params['gru_w'], params['gru_b'],
        params['head_w'], params['head_b'],
        params['fuse_we'], params['fuse_misc'],
        params['relation_embedding'], params['word_embedding'],
    ]
    in_specs = [_full_spec(a.shape) for a in args]

    logits_padded, actions = pl.pallas_call(
        decode_kernel,
        out_shape=(jax.ShapeDtypeStruct((T, B, L), jnp.float32),
                   jax.ShapeDtypeStruct((B, T), jnp.int32)),
        grid_spec=pltpu.PrefetchScalarGridSpec(
            num_scalar_prefetch=0,
            grid=(1,),
            in_specs=in_specs,
            out_specs=(pl.BlockSpec((T, B, L), lambda i: (0, 0, 0)),
                       pl.BlockSpec((B, T), lambda i: (0, 0))),
        ),
        compiler_params=pltpu.CompilerParams(
            dimension_semantics=("arbitrary",)),
    )(*args)

    pred_action_list, pred_logits_list = [], []
    for t in range(T):
        width = Rp1 if t % 3 == 0 else (S + 1)
        pred_logits_list.append(logits_padded[t, :, :width])
        pred_action_list.append(actions[:, t])
    return pred_action_list, pred_logits_list


def init_params(key, *, H, E, R, words_number, n_cells, fuse_dim=100):
    """Deterministic init mirroring PyTorch layer shapes, pre-packed/fused for TPU."""
    def linear(k, out_f, in_f):
        kw, kb = jax.random.split(k)
        bound = 1.0 / math.sqrt(in_f)
        w = jax.random.uniform(kw, (out_f, in_f), jnp.float32, -bound, bound)
        b = jax.random.uniform(kb, (out_f,), jnp.float32, -bound, bound)
        return w, b

    keys = iter(jax.random.split(key, 64))
    nk = lambda: next(keys)
    Rp1, F, L = R + 1, fuse_dim, _LANES

    word_embedding = jax.random.normal(nk(), (words_number, E), jnp.float32)
    relation_embedding = jax.random.normal(nk(), (Rp1, E), jnp.float32)
    sos_embedding = jax.random.normal(nk(), (1, E), jnp.float32)

    attn_w, _attn_b = linear(nk(), 1, 2 * H)        # attn = Linear(2H, 1)
    comb_w, comb_b = linear(nk(), E, H + E)         # combine_inputs = Linear(H+E, E)
    eos_w, eos_b = linear(nk(), 1, H)               # do_eos = Linear(H, 1)
    pred_w, pred_b = linear(nk(), R, H)             # do_predict = Linear(H, R)
    fuse_w, fuse_b = linear(nk(), F, 2 * H)         # fuse = Linear(2H, 100)
    copy_w, copy_b = linear(nk(), 1, F)             # do_copy_linear = Linear(100, 1)

    # attention: input order is [decoder_state (H), encoder (H)].
    # The scalar attn bias is dropped: softmax is shift-invariant, exact no-op.
    attn = jnp.stack([attn_w[0, :H], attn_w[0, H:]], axis=0)        # (2,H)

    # combine_inputs split: input order is [emb (E), context (H)]
    comb_we = comb_w.T[:E]                                          # (E,E)
    comb_wc = comb_w.T[E:]                                          # (H,E)
    comb_b2 = comb_b.reshape(1, E)

    # fused head on cat([h, selu(h)]): cols [0:R]=predict, [R]=eos, [Rp1:Rp1+F]=fuse_wo
    head_w = jnp.zeros((2 * H, L), jnp.float32)
    head_w = head_w.at[:H, :R].set(pred_w.T)
    head_w = head_w.at[:H, R].set(eos_w[0])
    head_w = head_w.at[H:, Rp1:Rp1 + F].set(fuse_w.T[:H])           # fuse output half
    head_b = jnp.zeros((1, L), jnp.float32)
    head_b = head_b.at[0, :R].set(pred_b)
    head_b = head_b.at[0, R].set(eos_b[0])

    fuse_we = fuse_w.T[H:]                                          # (H,F) encoder half
    fuse_misc = jnp.zeros((2, F + 1), jnp.float32)
    fuse_misc = fuse_misc.at[0, :F].set(fuse_b)
    fuse_misc = fuse_misc.at[1, :F].set(copy_w[0])
    fuse_misc = fuse_misc.at[1, F].set(copy_b[0])

    # GRU cells: fold combine_inputs into W_ih; pack gates as one (E+2H, 4H) matmul.
    # PyTorch gate ordering: r, z, n.  Columns: [r_x+h | z_x+h | n_x | n_h].
    bound = 1.0 / math.sqrt(H)
    gru_w_list, gru_b_list = [], []
    for _ in range(n_cells):
        wih = jax.random.uniform(nk(), (3 * H, E), jnp.float32, -bound, bound)
        whh = jax.random.uniform(nk(), (3 * H, H), jnp.float32, -bound, bound)
        bih = jax.random.uniform(nk(), (3 * H,), jnp.float32, -bound, bound)
        bhh = jax.random.uniform(nk(), (3 * H,), jnp.float32, -bound, bound)
        wihT, whhT = wih.T, whh.T                                   # (E,3H), (H,3H)
        a_e = comb_we @ wihT                                        # (E,3H)
        a_c = comb_wc @ wihT                                        # (H,3H)
        b_x = comb_b2 @ wihT + bih.reshape(1, 3 * H)                # (1,3H)

        wb = jnp.zeros((E + 2 * H, 4 * H), jnp.float32)
        wb = wb.at[:E, :3 * H].set(a_e)                             # emb rows
        wb = wb.at[E:E + H, :3 * H].set(a_c)                        # context rows
        wb = wb.at[E + H:, :H].set(whhT[:, :H])                     # h rows, r gate
        wb = wb.at[E + H:, H:2 * H].set(whhT[:, H:2 * H])           # h rows, z gate
        wb = wb.at[E + H:, 3 * H:].set(whhT[:, 2 * H:])             # h rows, n gate
        bb = jnp.zeros((1, 4 * H), jnp.float32)
        bb = bb.at[0, :H].set(b_x[0, :H] + bhh[:H])
        bb = bb.at[0, H:2 * H].set(b_x[0, H:2 * H] + bhh[H:2 * H])
        bb = bb.at[0, 2 * H:3 * H].set(b_x[0, 2 * H:])
        bb = bb.at[0, 3 * H:].set(bhh[2 * H:])
        gru_w_list.append(wb)
        gru_b_list.append(bb)

    return dict(
        word_embedding=word_embedding,
        relation_embedding=relation_embedding,
        sos_embedding=sos_embedding,
        attn=attn,
        head_w=head_w, head_b=head_b,
        fuse_we=fuse_we, fuse_misc=fuse_misc,
        gru_w=jnp.stack(gru_w_list),        # (C, E+2H, 4H)
        gru_b=jnp.stack(gru_b_list),        # (C, 1, 4H)
    )


if __name__ == "__main__":
    # Small synthetic config (const.Config analogue):
    B = 2                    # batch
    S = 8                    # max_sentence_length
    H = 32                   # decoder_num_units
    E = 16                   # embedding_dim
    R = 5                    # relation_number
    WORDS = 50               # words_number
    DECODE_LEN = 6           # decoder_output_max_length -> 2 decoder cells

    key = jax.random.PRNGKey(0)
    kp, ks, kd, ke = jax.random.split(key, 4)

    params = init_params(kp, H=H, E=E, R=R, words_number=WORDS,
                         n_cells=DECODE_LEN // 3)

    sentence = jax.random.randint(ks, (B, S), 0, WORDS, dtype=jnp.int32)
    decoder_state = jax.random.normal(kd, (1, B, H), jnp.float32)
    encoder_outputs = jax.random.normal(ke, (B, S, H), jnp.float32)

    forward = jax.jit(multi_decoder_forward)
    pred_actions, pred_logits = forward(params, sentence, decoder_state, encoder_outputs)
    jax.block_until_ready((pred_actions, pred_logits))

    assert len(pred_actions) == DECODE_LEN and len(pred_logits) == DECODE_LEN
    assert pred_logits[0].shape == (B, R + 1)       # t % 3 == 0 -> predict logits
    assert pred_logits[1].shape == (B, S + 1)       # otherwise  -> copy logits
    assert pred_actions[0].shape == (B,)
    print("KERNEL_OK")
</pallas_src>

<mosaic_0001>
module attributes {stable_mosaic.version = 11 : i64} {
  func.func @decode_kernel(%arg0: i32, %arg1: memref<2x8xi32, #tpu.memory_space<vmem>>, %arg2: memref<2x8x32xf32, #tpu.memory_space<vmem>>, %arg3: memref<2x32xf32, #tpu.memory_space<vmem>>, %arg4: memref<2x16xf32, #tpu.memory_space<vmem>>, %arg5: memref<2x32xf32, #tpu.memory_space<vmem>>, %arg6: memref<2x80x128xf32, #tpu.memory_space<vmem>>, %arg7: memref<2x1x128xf32, #tpu.memory_space<vmem>>, %arg8: memref<64x128xf32, #tpu.memory_space<vmem>>, %arg9: memref<1x128xf32, #tpu.memory_space<vmem>>, %arg10: memref<32x100xf32, #tpu.memory_space<vmem>>, %arg11: memref<2x101xf32, #tpu.memory_space<vmem>>, %arg12: memref<6x16xf32, #tpu.memory_space<vmem>>, %arg13: memref<50x16xf32, #tpu.memory_space<vmem>>, %arg14: memref<6x2x128xf32, #tpu.memory_space<vmem>>, %arg15: memref<2x6xi32, #tpu.memory_space<vmem>>) attributes {dimension_semantics = [#tpu.dimension_semantics<arbitrary>], iteration_bounds = array<i64: 1>, scalar_prefetch = 0 : i64, scratch_operands = 0 : i64, tpu.core_type = #tpu.core_type<tc>, window_params = [{pipeline_mode = #tpu.pipeline_mode<synchronous>, transform_indices = @transform_0, window_bounds = array<i64: 2, 8>}, {pipeline_mode = #tpu.pipeline_mode<synchronous>, transform_indices = @transform_1, window_bounds = array<i64: 2, 8, 32>}, {pipeline_mode = #tpu.pipeline_mode<synchronous>, transform_indices = @transform_2, window_bounds = array<i64: 2, 32>}, {pipeline_mode = #tpu.pipeline_mode<synchronous>, transform_indices = @transform_3, window_bounds = array<i64: 2, 16>}, {pipeline_mode = #tpu.pipeline_mode<synchronous>, transform_indices = @transform_4, window_bounds = array<i64: 2, 32>}, {pipeline_mode = #tpu.pipeline_mode<synchronous>, transform_indices = @transform_5, window_bounds = array<i64: 2, 80, 128>}, {pipeline_mode = #tpu.pipeline_mode<synchronous>, transform_indices = @transform_6, window_bounds = array<i64: 2, 1, 128>}, {pipeline_mode = #tpu.pipeline_mode<synchronous>, transform_indices = @transform_7, window_bounds = array<i64: 64, 128>}, {pipeline_mode = #tpu.pipeline_mode<synchronous>, transform_indices = @transform_8, window_bounds = array<i64: 1, 128>}, {pipeline_mode = #tpu.pipeline_mode<synchronous>, transform_indices = @transform_9, window_bounds = array<i64: 32, 100>}, {pipeline_mode = #tpu.pipeline_mode<synchronous>, transform_indices = @transform_10, window_bounds = array<i64: 2, 101>}, {pipeline_mode = #tpu.pipeline_mode<synchronous>, transform_indices = @transform_11, window_bounds = array<i64: 6, 16>}, {pipeline_mode = #tpu.pipeline_mode<synchronous>, transform_indices = @transform_12, window_bounds = array<i64: 50, 16>}, {pipeline_mode = #tpu.pipeline_mode<synchronous>, transform_indices = @transform_13, window_bounds = array<i64: 6, 2, 128>}, {pipeline_mode = #tpu.pipeline_mode<synchronous>, transform_indices = @transform_14, window_bounds = array<i64: 2, 6>}]} {
    %c0 = arith.constant 0 : index
    %c0_0 = arith.constant 0 : index
    %0 = vector.load %arg1[%c0, %c0_0] : memref<2x8xi32, #tpu.memory_space<vmem>>, vector<2x8xi32>
    %c0_1 = arith.constant 0 : index
    %c0_2 = arith.constant 0 : index
    %c0_3 = arith.constant 0 : index
    %1 = vector.load %arg2[%c0_1, %c0_2, %c0_3] : memref<2x8x32xf32, #tpu.memory_space<vmem>>, vector<2x8x32xf32>
    %c0_4 = arith.constant 0 : index
    %c0_5 = arith.constant 0 : index
    %2 = vector.load %arg3[%c0_4, %c0_5] : memref<2x32xf32, #tpu.memory_space<vmem>>, vector<2x32xf32>
    %c0_6 = arith.constant 0 : index
    %c0_7 = arith.constant 0 : index
    %3 = vector.load %arg5[%c0_6, %c0_7] : memref<2x32xf32, #tpu.memory_space<vmem>>, vector<2x32xf32>
    %4 = vector.extract_strided_slice %3 {offsets = [0, 0], sizes = [1, 32], strides = [1, 1]} : vector<2x32xf32> to vector<1x32xf32>
    %5 = vector.extract_strided_slice %3 {offsets = [1, 0], sizes = [1, 32], strides = [1, 1]} : vector<2x32xf32> to vector<1x32xf32>
    %c0_8 = arith.constant 0 : index
    %c0_9 = arith.constant 0 : index
    %6 = vector.load %arg8[%c0_8, %c0_9] : memref<64x128xf32, #tpu.memory_space<vmem>>, vector<64x128xf32>
    %c0_10 = arith.constant 0 : index
    %c0_11 = arith.constant 0 : index
    %7 = vector.load %arg9[%c0_10, %c0_11] : memref<1x128xf32, #tpu.memory_space<vmem>>, vector<1x128xf32>
    %c0_12 = arith.constant 0 : index
    %c0_13 = arith.constant 0 : index
    %8 = vector.load %arg10[%c0_12, %c0_13] : memref<32x100xf32, #tpu.memory_space<vmem>>, vector<32x100xf32>
    %c0_14 = arith.constant 0 : index
    %c0_15 = arith.constant 0 : index
    %9 = vector.load %arg11[%c0_14, %c0_15] : memref<2x101xf32, #tpu.memory_space<vmem>>, vector<2x101xf32>
    %10 = vector.extract_strided_slice %9 {offsets = [0, 0], sizes = [1, 100], strides = [1, 1]} : vector<2x101xf32> to vector<1x100xf32>
    %11 = vector.extract_strided_slice %9 {offsets = [1, 0], sizes = [1, 100], strides = [1, 1]} : vector<2x101xf32> to vector<1x100xf32>
    %12 = vector.extract_strided_slice %9 {offsets = [1, 100], sizes = [1, 1], strides = [1, 1]} : vector<2x101xf32> to vector<1x1xf32>
    %c0_16 = arith.constant 0 : index
    %c0_17 = arith.constant 0 : index
    %13 = vector.load %arg12[%c0_16, %c0_17] : memref<6x16xf32, #tpu.memory_space<vmem>>, vector<6x16xf32>
    %c0_18 = arith.constant 0 : index
    %c0_19 = arith.constant 0 : index
    %14 = vector.load %arg13[%c0_18, %c0_19] : memref<50x16xf32, #tpu.memory_space<vmem>>, vector<50x16xf32>
    %15 = vector.shape_cast %5 : vector<1x32xf32> to vector<1x1x32xf32>
    %16 = vector.broadcast %15 : vector<1x1x32xf32> to vector<2x8x32xf32>
    %17 = arith.mulf %1, %16 : vector<2x8x32xf32>
    %cst = arith.constant dense<0.000000e+00> : vector<2x8xf32>
    %18 = vector.multi_reduction <add>, %17, %cst [2] : vector<2x8x32xf32> to vector<2x8xf32>
    %cst_20 = arith.constant 0.000000e+00 : f32
    %19 = vector.broadcast %cst_20 : f32 to vector<2x8x32xf32>
    %20 = arith.cmpf ogt, %1, %19 : vector<2x8x32xf32>
    %21 = math.exp %1 : vector<2x8x32xf32>
    %cst_21 = arith.constant 1.000000e+00 : f32
    %22 = vector.broadcast %cst_21 : f32 to vector<2x8x32xf32>
    %23 = arith.subf %21, %22 : vector<2x8x32xf32>
    %cst_22 = arith.constant 1.67326319 : f32
    %24 = vector.broadcast %cst_22 : f32 to vector<2x8x32xf32>
    %25 = arith.mulf %24, %23 : vector<2x8x32xf32>
    %26 = arith.select %20, %1, %25 : vector<2x8x32xi1>, vector<2x8x32xf32>
    %cst_23 = arith.constant 1.05070102 : f32
    %27 = vector.broadcast %cst_23 : f32 to vector<2x8x32xf32>
    %28 = arith.mulf %27, %26 : vector<2x8x32xf32>
    %29 = vector.shape_cast %28 : vector<2x8x32xf32> to vector<16x32xf32>
    %cst_24 = arith.constant dense<0.000000e+00> : vector<16x100xf32>
    %30 = tpu.matmul %29, %8, %cst_24 {dimension_numbers = #tpu.dot_dimension_numbers<[1], [0], [0], [1], [0, 0, 1, 1], [], []>} : vector<16x32xf32>, vector<32x100xf32>, vector<16x100xf32> -> vector<16x100xf32>
    %31 = vector.broadcast %10 : vector<1x100xf32> to vector<16x100xf32>
    %32 = arith.addf %30, %31 : vector<16x100xf32>
    %33 = vector.shape_cast %32 : vector<16x100xf32> to vector<2x8x100xf32>
    %34 = tpu.iota {dimensions = array<i32: 1>} : vector<2x128xi32>
    %35 = tpu.iota {dimensions = array<i32: 1>} : vector<2x6xi32>
    %36 = tpu.iota {dimensions = array<i32: 1>} : vector<2x8xi32>
    %37 = tpu.iota {dimensions = array<i32: 1>} : vector<2x50xi32>
    %c0_25 = arith.constant 0 : index
    %c0_26 = arith.constant 0 : index
    %38 = vector.load %arg4[%c0_25, %c0_26] : memref<2x16xf32, #tpu.memory_space<vmem>>, vector<2x16xf32>
    %cst_27 = arith.constant 0.000000e+00 : f32
    %39 = vector.broadcast %cst_27 : f32 to vector<2x32xf32>
    %c0_28 = arith.constant 0 : index
    %c0_29 = arith.constant 0 : index
    %c0_30 = arith.constant 0 : index
    %40 = vector.load %arg6[%c0_28, %c0_29, %c0_30] : memref<2x80x128xf32, #tpu.memory_space<vmem>>, vector<1x80x128xf32>
    %41 = vector.shape_cast %40 : vector<1x80x128xf32> to vector<80x128xf32>
    %c0_31 = arith.constant 0 : index
    %c0_32 = arith.constant 0 : index
    %c0_33 = arith.constant 0 : index
    %42 = vector.load %arg7[%c0_31, %c0_32, %c0_33] : memref<2x1x128xf32, #tpu.memory_space<vmem>>, vector<1x1x128xf32>
    %43 = vector.shape_cast %42 : vector<1x1x128xf32> to vector<1x128xf32>
    %44 = arith.addf %2, %39 : vector<2x32xf32>
    %cst_34 = arith.constant 5.000000e-01 : f32
    %45 = vector.broadcast %cst_34 : f32 to vector<2x32xf32>
    %46 = arith.mulf %44, %45 : vector<2x32xf32>
    %47 = vector.broadcast %4 : vector<1x32xf32> to vector<2x32xf32>
    %48 = arith.mulf %46, %47 : vector<2x32xf32>
    %cst_35 = arith.constant dense<0.000000e+00> : vector<2xf32>
    %49 = vector.multi_reduction <add>, %48, %cst_35 [1] : vector<2x32xf32> to vector<2xf32>
    %50 = vector.shape_cast %49 : vector<2xf32> to vector<2x1xf32>
    %51 = vector.broadcast %50 : vector<2x1xf32> to vector<2x8xf32>
    %52 = arith.addf %18, %51 : vector<2x8xf32>
    %cst_36 = arith.constant dense<0xFF800000> : vector<2xf32>
    %53 = vector.multi_reduction <maximumf>, %52, %cst_36 [1] : vector<2x8xf32> to vector<2xf32>
    %54 = vector.shape_cast %53 : vector<2xf32> to vector<2x1xf32>
    %55 = vector.broadcast %54 : vector<2x1xf32> to vector<2x8xf32>
    %56 = arith.subf %52, %55 : vector<2x8xf32>
    %57 = math.exp %56 : vector<2x8xf32>
    %cst_37 = arith.constant dense<0.000000e+00> : vector<2xf32>
    %58 = vector.multi_reduction <add>, %57, %cst_37 [1] : vector<2x8xf32> to vector<2xf32>
    %59 = vector.shape_cast %58 : vector<2xf32> to vector<2x1xf32>
    %60 = vector.broadcast %59 : vector<2x1xf32> to vector<2x8xf32>
    %61 = arith.divf %57, %60 : vector<2x8xf32>
    %62 = vector.shape_cast %61 : vector<2x8xf32> to vector<2x8x1xf32>
    %63 = vector.broadcast %62 : vector<2x8x1xf32> to vector<2x8x32xf32>
    %64 = arith.mulf %63, %1 : vector<2x8x32xf32>
    %cst_38 = arith.constant dense<0.000000e+00> : vector<2x32xf32>
    %65 = vector.multi_reduction <add>, %64, %cst_38 [1] : vector<2x8x32xf32> to vector<2x32xf32>
    %66 = tpu.concatenate %38, %65, %46 in 1 : vector<2x16xf32>, vector<2x32xf32>, vector<2x32xf32> -> vector<2x80xf32>
    %cst_39 = arith.constant dense<0.000000e+00> : vector<2x128xf32>
    %67 = tpu.matmul %66, %41, %cst_39 {dimension_numbers = #tpu.dot_dimension_numbers<[1], [0], [0], [1], [0, 0, 1, 1], [], []>} : vector<2x80xf32>, vector<80x128xf32>, vector<2x128xf32> -> vector<2x128xf32>
    %68 = vector.broadcast %43 : vector<1x128xf32> to vector<2x128xf32>
    %69 = arith.addf %67, %68 : vector<2x128xf32>
    %70 = vector.extract_strided_slice %69 {offsets = [0, 0], sizes = [2, 32], strides = [1, 1]} : vector<2x128xf32> to vector<2x32xf32>
    %71 = arith.negf %70 : vector<2x32xf32>
    %72 = math.exp %71 : vector<2x32xf32>
    %cst_40 = arith.constant 1.000000e+00 : f32
    %73 = vector.broadcast %cst_40 : f32 to vector<2x32xf32>
    %74 = arith.addf %73, %72 : vector<2x32xf32>
    %75 = arith.divf %73, %74 : vector<2x32xf32>
    %76 = vector.extract_strided_slice %69 {offsets = [0, 32], sizes = [2, 32], strides = [1, 1]} : vector<2x128xf32> to vector<2x32xf32>
    %77 = arith.negf %76 : vector<2x32xf32>
    %78 = math.exp %77 : vector<2x32xf32>
    %cst_41 = arith.constant 1.000000e+00 : f32
    %79 = vector.broadcast %cst_41 : f32 to vector<2x32xf32>
    %80 = arith.addf %79, %78 : vector<2x32xf32>
    %81 = arith.divf %79, %80 : vector<2x32xf32>
    %82 = vector.extract_strided_slice %69 {offsets = [0, 64], sizes = [2, 32], strides = [1, 1]} : vector<2x128xf32> to vector<2x32xf32>
    %83 = vector.extract_strided_slice %69 {offsets = [0, 96], sizes = [2, 32], strides = [1, 1]} : vector<2x128xf32> to vector<2x32xf32>
    %84 = arith.mulf %75, %83 : vector<2x32xf32>
    %85 = arith.addf %82, %84 : vector<2x32xf32>
    %86 = math.tanh %85 : vector<2x32xf32>
    %cst_42 = arith.constant 1.000000e+00 : f32
    %87 = vector.broadcast %cst_42 : f32 to vector<2x32xf32>
    %88 = arith.subf %87, %81 : vector<2x32xf32>
    %89 = arith.mulf %88, %86 : vector<2x32xf32>
    %90 = arith.mulf %81, %46 : vector<2x32xf32>
    %91 = arith.addf %89, %90 : vector<2x32xf32>
    %cst_43 = arith.constant 0.000000e+00 : f32
    %92 = vector.broadcast %cst_43 : f32 to vector<2x32xf32>
    %93 = arith.cmpf ogt, %91, %92 : vector<2x32xf32>
    %94 = math.exp %91 : vector<2x32xf32>
    %cst_44 = arith.constant 1.000000e+00 : f32
    %95 = vector.broadcast %cst_44 : f32 to vector<2x32xf32>
    %96 = arith.subf %94, %95 : vector<2x32xf32>
    %cst_45 = arith.constant 1.67326319 : f32
    %97 = vector.broadcast %cst_45 : f32 to vector<2x32xf32>
    %98 = arith.mulf %97, %96 : vector<2x32xf32>
    %99 = arith.select %93, %91, %98 : vector<2x32xi1>, vector<2x32xf32>
    %cst_46 = arith.constant 1.05070102 : f32
    %100 = vector.broadcast %cst_46 : f32 to vector<2x32xf32>
    %101 = arith.mulf %100, %99 : vector<2x32xf32>
    %102 = tpu.concatenate %91, %101 in 1 : vector<2x32xf32>, vector<2x32xf32> -> vector<2x64xf32>
    %cst_47 = arith.constant dense<0.000000e+00> : vector<2x128xf32>
    %103 = tpu.matmul %102, %6, %cst_47 {dimension_numbers = #tpu.dot_dimension_numbers<[1], [0], [0], [1], [0, 0, 1, 1], [], []>} : vector<2x64xf32>, vector<64x128xf32>, vector<2x128xf32> -> vector<2x128xf32>
    %104 = vector.broadcast %7 : vector<1x128xf32> to vector<2x128xf32>
    %105 = arith.addf %103, %104 : vector<2x128xf32>
    %c6_i32 = arith.constant 6 : i32
    %106 = vector.broadcast %c6_i32 : i32 to vector<2x128xi32>
    %107 = arith.cmpi slt, %34, %106 : vector<2x128xi32>
    %cst_48 = arith.constant -1.000000e+30 : f32
    %108 = vector.broadcast %cst_48 : f32 to vector<2x128xf32>
    %109 = arith.select %107, %105, %108 : vector<2x128xi1>, vector<2x128xf32>
    %cst_49 = arith.constant dense<0xFF800000> : vector<2xf32>
    %110 = vector.multi_reduction <maximumf>, %109, %cst_49 [1] : vector<2x128xf32> to vector<2xf32>
    %111 = vector.shape_cast %110 : vector<2xf32> to vector<2x1xf32>
    %112 = vector.broadcast %111 : vector<2x1xf32> to vector<2x128xf32>
    %113 = arith.subf %109, %112 : vector<2x128xf32>
    %114 = math.exp %113 : vector<2x128xf32>
    %cst_50 = arith.constant dense<0.000000e+00> : vector<2xf32>
    %115 = vector.multi_reduction <add>, %114, %cst_50 [1] : vector<2x128xf32> to vector<2xf32>
    %116 = vector.shape_cast %115 : vector<2xf32> to vector<2x1xf32>
    %117 = math.log %116 : vector<2x1xf32>
    %118 = vector.broadcast %117 : vector<2x1xf32> to vector<2x128xf32>
    %119 = arith.subf %113, %118 : vector<2x128xf32>
    %c0_51 = arith.constant 0 : index
    %c0_52 = arith.constant 0 : index
    %c0_53 = arith.constant 0 : index
    %120 = vector.load %arg14[%c0_51, %c0_52, %c0_53] : memref<6x2x128xf32, #tpu.memory_space<vmem>>, vector<1x2x128xf32>
    %121 = vector.shape_cast %120 : vector<1x2x128xf32> to vector<2x128xf32>
    %122 = vector.shape_cast %119 : vector<2x128xf32> to vector<1x2x128xf32>
    tpu.vector_store %arg14[%c0_51, %c0_52, %c0_53], %122 {strides = array<i32>} : memref<6x2x128xf32, #tpu.memory_space<vmem>>, vector<1x2x128xf32>,
    %cst_54 = arith.constant dense<0xFF800000> : vector<2xf32>
    %123 = vector.multi_reduction <maximumf>, %109, %cst_54 [1] : vector<2x128xf32> to vector<2xf32>
    %124 = vector.shape_cast %123 : vector<2xf32> to vector<2x1xf32>
    %125 = vector.broadcast %124 : vector<2x1xf32> to vector<2x128xf32>
    %126 = arith.cmpf oeq, %109, %125 : vector<2x128xf32>
    %c128_i32 = arith.constant 128 : i32
    %127 = vector.broadcast %c128_i32 : i32 to vector<2x128xi32>
    %128 = arith.select %126, %34, %127 : vector<2x128xi1>, vector<2x128xi32>
    %cst_55 = arith.constant dense<2147483647> : vector<2xi32>
    %129 = vector.multi_reduction <minsi>, %128, %cst_55 [1] : vector<2x128xi32> to vector<2xi32>
    %130 = vector.shape_cast %129 : vector<2xi32> to vector<2x1xi32>
    %131 = vector.broadcast %130 : vector<2x1xi32> to vector<2x6xi32>
    %132 = arith.cmpi eq, %35, %131 : vector<2x6xi32>
    %133 = arith.extui %132 : vector<2x6xi1> to vector<2x6xi32>
    %134 = arith.sitofp %133 : vector<2x6xi32> to vector<2x6xf32>
    %cst_56 = arith.constant dense<0.000000e+00> : vector<2x16xf32>
    %135 = tpu.matmul %134, %13, %cst_56 {dimension_numbers = #tpu.dot_dimension_numbers<[1], [0], [0], [1], [0, 0, 1, 1], [], []>} : vector<2x6xf32>, vector<6x16xf32>, vector<2x16xf32> -> vector<2x16xf32>
    %136 = vector.broadcast %4 : vector<1x32xf32> to vector<2x32xf32>
    %137 = arith.mulf %91, %136 : vector<2x32xf32>
    %cst_57 = arith.constant dense<0.000000e+00> : vector<2xf32>
    %138 = vector.multi_reduction <add>, %137, %cst_57 [1] : vector<2x32xf32> to vector<2xf32>
    %139 = vector.shape_cast %138 : vector<2xf32> to vector<2x1xf32>
    %140 = vector.broadcast %139 : vector<2x1xf32> to vector<2x8xf32>
    %141 = arith.addf %18, %140 : vector<2x8xf32>
    %cst_58 = arith.constant dense<0xFF800000> : vector<2xf32>
    %142 = vector.multi_reduction <maximumf>, %141, %cst_58 [1] : vector<2x8xf32> to vector<2xf32>
    %143 = vector.shape_cast %142 : vector<2xf32> to vector<2x1xf32>
    %144 = vector.broadcast %143 : vector<2x1xf32> to vector<2x8xf32>
    %145 = arith.subf %141, %144 : vector<2x8xf32>
    %146 = math.exp %145 : vector<2x8xf32>
    %cst_59 = arith.constant dense<0.000000e+00> : vector<2xf32>
    %147 = vector.multi_reduction <add>, %146, %cst_59 [1] : vector<2x8xf32> to vector<2xf32>
    %148 = vector.shape_cast %147 : vector<2xf32> to vector<2x1xf32>
    %149 = vector.broadcast %148 : vector<2x1xf32> to vector<2x8xf32>
    %150 = arith.divf %146, %149 : vector<2x8xf32>
    %151 = vector.shape_cast %150 : vector<2x8xf32> to vector<2x8x1xf32>
    %152 = vector.broadcast %151 : vector<2x8x1xf32> to vector<2x8x32xf32>
    %153 = arith.mulf %152, %1 : vector<2x8x32xf32>
    %cst_60 = arith.constant dense<0.000000e+00> : vector<2x32xf32>
    %154 = vector.multi_reduction <add>, %153, %cst_60 [1] : vector<2x8x32xf32> to vector<2x32xf32>
    %155 = tpu.concatenate %135, %154, %91 in 1 : vector<2x16xf32>, vector<2x32xf32>, vector<2x32xf32> -> vector<2x80xf32>
    %cst_61 = arith.constant dense<0.000000e+00> : vector<2x128xf32>
    %156 = tpu.matmul %155, %41, %cst_61 {dimension_numbers = #tpu.dot_dimension_numbers<[1], [0], [0], [1], [0, 0, 1, 1], [], []>} : vector<2x80xf32>, vector<80x128xf32>, vector<2x128xf32> -> vector<2x128xf32>
    %157 = vector.broadcast %43 : vector<1x128xf32> to vector<2x128xf32>
    %158 = arith.addf %156, %157 : vector<2x128xf32>
    %159 = vector.extract_strided_slice %158 {offsets = [0, 0], sizes = [2, 32], strides = [1, 1]} : vector<2x128xf32> to vector<2x32xf32>
    %160 = arith.negf %159 : vector<2x32xf32>
    %161 = math.exp %160 : vector<2x32xf32>
    %cst_62 = arith.constant 1.000000e+00 : f32
    %162 = vector.broadcast %cst_62 : f32 to vector<2x32xf32>
    %163 = arith.addf %162, %161 : vector<2x32xf32>
    %164 = arith.divf %162, %163 : vector<2x32xf32>
    %165 = vector.extract_strided_slice %158 {offsets = [0, 32], sizes = [2, 32], strides = [1, 1]} : vector<2x128xf32> to vector<2x32xf32>
    %166 = arith.negf %165 : vector<2x32xf32>
    %167 = math.exp %166 : vector<2x32xf32>
    %cst_63 = arith.constant 1.000000e+00 : f32
    %168 = vector.broadcast %cst_63 : f32 to vector<2x32xf32>
    %169 = arith.addf %168, %167 : vector<2x32xf32>
    %170 = arith.divf %168, %169 : vector<2x32xf32>
    %171 = vector.extract_strided_slice %158 {offsets = [0, 64], sizes = [2, 32], strides = [1, 1]} : vector<2x128xf32> to vector<2x32xf32>
    %172 = vector.extract_strided_slice %158 {offsets = [0, 96], sizes = [2, 32], strides = [1, 1]} : vector<2x128xf32> to vector<2x32xf32>
    %173 = arith.mulf %164, %172 : vector<2x32xf32>
    %174 = arith.addf %171, %173 : vector<2x32xf32>
    %175 = math.tanh %174 : vector<2x32xf32>
    %cst_64 = arith.constant 1.000000e+00 : f32
    %176 = vector.broadcast %cst_64 : f32 to vector<2x32xf32>
    %177 = arith.subf %176, %170 : vector<2x32xf32>
    %178 = arith.mulf %177, %175 : vector<2x32xf32>
    %179 = arith.mulf %170, %91 : vector<2x32xf32>
    %180 = arith.addf %178, %179 : vector<2x32xf32>
    %cst_65 = arith.constant 0.000000e+00 : f32
    %181 = vector.broadcast %cst_65 : f32 to vector<2x32xf32>
    %182 = arith.cmpf ogt, %180, %181 : vector<2x32xf32>
    %183 = math.exp %180 : vector<2x32xf32>
    %cst_66 = arith.constant 1.000000e+00 : f32
    %184 = vector.broadcast %cst_66 : f32 to vector<2x32xf32>
    %185 = arith.subf %183, %184 : vector<2x32xf32>
    %cst_67 = arith.constant 1.67326319 : f32
    %186 = vector.broadcast %cst_67 : f32 to vector<2x32xf32>
    %187 = arith.mulf %186, %185 : vector<2x32xf32>
    %188 = arith.select %182, %180, %187 : vector<2x32xi1>, vector<2x32xf32>
    %cst_68 = arith.constant 1.05070102 : f32
    %189 = vector.broadcast %cst_68 : f32 to vector<2x32xf32>
    %190 = arith.mulf %189, %188 : vector<2x32xf32>
    %191 = tpu.concatenate %180, %190 in 1 : vector<2x32xf32>, vector<2x32xf32> -> vector<2x64xf32>
    %cst_69 = arith.constant dense<0.000000e+00> : vector<2x128xf32>
    %192 = tpu.matmul %191, %6, %cst_69 {dimension_numbers = #tpu.dot_dimension_numbers<[1], [0], [0], [1], [0, 0, 1, 1], [], []>} : vector<2x64xf32>, vector<64x128xf32>, vector<2x128xf32> -> vector<2x128xf32>
    %193 = vector.broadcast %7 : vector<1x128xf32> to vector<2x128xf32>
    %194 = arith.addf %192, %193 : vector<2x128xf32>
    %195 = vector.extract_strided_slice %194 {offsets = [0, 5], sizes = [2, 1], strides = [1, 1]} : vector<2x128xf32> to vector<2x1xf32>
    %196 = vector.extract_strided_slice %194 {offsets = [0, 6], sizes = [2, 100], strides = [1, 1]} : vector<2x128xf32> to vector<2x100xf32>
    %197 = vector.shape_cast %196 : vector<2x100xf32> to vector<2x1x100xf32>
    %198 = vector.broadcast %197 : vector<2x1x100xf32> to vector<2x8x100xf32>
    %199 = arith.addf %198, %33 : vector<2x8x100xf32>
    %cst_70 = arith.constant 0.000000e+00 : f32
    %200 = vector.broadcast %cst_70 : f32 to vector<2x8x100xf32>
    %201 = arith.cmpf ogt, %199, %200 : vector<2x8x100xf32>
    %202 = math.exp %199 : vector<2x8x100xf32>
    %cst_71 = arith.constant 1.000000e+00 : f32
    %203 = vector.broadcast %cst_71 : f32 to vector<2x8x100xf32>
    %204 = arith.subf %202, %203 : vector<2x8x100xf32>
    %cst_72 = arith.constant 1.67326319 : f32
    %205 = vector.broadcast %cst_72 : f32 to vector<2x8x100xf32>
    %206 = arith.mulf %205, %204 : vector<2x8x100xf32>
    %207 = arith.select %201, %199, %206 : vector<2x8x100xi1>, vector<2x8x100xf32>
    %cst_73 = arith.constant 1.05070102 : f32
    %208 = vector.broadcast %cst_73 : f32 to vector<2x8x100xf32>
    %209 = arith.mulf %208, %207 : vector<2x8x100xf32>
    %210 = vector.shape_cast %11 : vector<1x100xf32> to vector<1x1x100xf32>
    %211 = vector.broadcast %210 : vector<1x1x100xf32> to vector<2x8x100xf32>
    %212 = arith.mulf %209, %211 : vector<2x8x100xf32>
    %cst_74 = arith.constant dense<0.000000e+00> : vector<2x8xf32>
    %213 = vector.multi_reduction <add>, %212, %cst_74 [2] : vector<2x8x100xf32> to vector<2x8xf32>
    %214 = vector.broadcast %12 : vector<1x1xf32> to vector<2x8xf32>
    %215 = arith.addf %213, %214 : vector<2x8xf32>
    %cst_75 = arith.constant -1.000000e+30 : f32
    %216 = vector.broadcast %cst_75 : f32 to vector<2x119xf32>
    %217 = tpu.concatenate %215, %195, %216 in 1 : vector<2x8xf32>, vector<2x1xf32>, vector<2x119xf32> -> vector<2x128xf32>
    %cst_76 = arith.constant dense<0xFF800000> : vector<2xf32>
    %218 = vector.multi_reduction <maximumf>, %217, %cst_76 [1] : vector<2x128xf32> to vector<2xf32>
    %219 = vector.shape_cast %218 : vector<2xf32> to vector<2x1xf32>
    %220 = vector.broadcast %219 : vector<2x1xf32> to vector<2x128xf32>
    %221 = arith.subf %217, %220 : vector<2x128xf32>
    %222 = math.exp %221 : vector<2x128xf32>
    %cst_77 = arith.constant dense<0.000000e+00> : vector<2xf32>
    %223 = vector.multi_reduction <add>, %222, %cst_77 [1] : vector<2x128xf32> to vector<2xf32>
    %224 = vector.shape_cast %223 : vector<2xf32> to vector<2x1xf32>
    %225 = math.log %224 : vector<2x1xf32>
    %226 = vector.broadcast %225 : vector<2x1xf32> to vector<2x128xf32>
    %227 = arith.subf %221, %226 : vector<2x128xf32>
    %c1 = arith.constant 1 : index
    %c0_78 = arith.constant 0 : index
    %c0_79 = arith.constant 0 : index
    %228 = vector.load %arg14[%c1, %c0_78, %c0_79] : memref<6x2x128xf32, #tpu.memory_space<vmem>>, vector<1x2x128xf32>
    %229 = vector.shape_cast %228 : vector<1x2x128xf32> to vector<2x128xf32>
    %230 = vector.shape_cast %227 : vector<2x128xf32> to vector<1x2x128xf32>
    tpu.vector_store %arg14[%c1, %c0_78, %c0_79], %230 {strides = array<i32>} : memref<6x2x128xf32, #tpu.memory_space<vmem>>, vector<1x2x128xf32>,
    %cst_80 = arith.constant dense<0xFF800000> : vector<2xf32>
    %231 = vector.multi_reduction <maximumf>, %217, %cst_80 [1] : vector<2x128xf32> to vector<2xf32>
    %232 = vector.shape_cast %231 : vector<2xf32> to vector<2x1xf32>
    %233 = vector.broadcast %232 : vector<2x1xf32> to vector<2x128xf32>
    %234 = arith.cmpf oeq, %217, %233 : vector<2x128xf32>
    %c128_i32_81 = arith.constant 128 : i32
    %235 = vector.broadcast %c128_i32_81 : i32 to vector<2x128xi32>
    %236 = arith.select %234, %34, %235 : vector<2x128xi1>, vector<2x128xi32>
    %cst_82 = arith.constant dense<2147483647> : vector<2xi32>
    %237 = vector.multi_reduction <minsi>, %236, %cst_82 [1] : vector<2x128xi32> to vector<2xi32>
    %238 = vector.shape_cast %237 : vector<2xi32> to vector<2x1xi32>
    %c7_i32 = arith.constant 7 : i32
    %239 = vector.broadcast %c7_i32 : i32 to vector<2x1xi32>
    %240 = arith.minsi %238, %239 : vector<2x1xi32>
    %241 = vector.broadcast %240 : vector<2x1xi32> to vector<2x8xi32>
    %242 = arith.cmpi eq, %36, %241 : vector<2x8xi32>
    %c0_i32 = arith.constant 0 : i32
    %243 = vector.broadcast %c0_i32 : i32 to vector<2x8xi32>
    %244 = arith.select %242, %0, %243 : vector<2x8xi1>, vector<2x8xi32>
    %cst_83 = arith.constant dense<0> : vector<2xi32>
    %245 = vector.multi_reduction <add>, %244, %cst_83 [1] : vector<2x8xi32> to vector<2xi32>
    %246 = vector.shape_cast %245 : vector<2xi32> to vector<2x1xi32>
    %247 = vector.broadcast %246 : vector<2x1xi32> to vector<2x50xi32>
    %248 = arith.cmpi eq, %37, %247 : vector<2x50xi32>
    %249 = arith.extui %248 : vector<2x50xi1> to vector<2x50xi32>
    %250 = arith.sitofp %249 : vector<2x50xi32> to vector<2x50xf32>
    %cst_84 = arith.constant dense<0.000000e+00> : vector<2x16xf32>
    %251 = tpu.matmul %250, %14, %cst_84 {dimension_numbers = #tpu.dot_dimension_numbers<[1], [0], [0], [1], [0, 0, 1, 1], [], []>} : vector<2x50xf32>, vector<50x16xf32>, vector<2x16xf32> -> vector<2x16xf32>
    %252 = vector.broadcast %4 : vector<1x32xf32> to vector<2x32xf32>
    %253 = arith.mulf %180, %252 : vector<2x32xf32>
    %cst_85 = arith.constant dense<0.000000e+00> : vector<2xf32>
    %254 = vector.multi_reduction <add>, %253, %cst_85 [1] : vector<2x32xf32> to vector<2xf32>
    %255 = vector.shape_cast %254 : vector<2xf32> to vector<2x1xf32>
    %256 = vector.broadcast %255 : vector<2x1xf32> to vector<2x8xf32>
    %257 = arith.addf %18, %256 : vector<2x8xf32>
    %cst_86 = arith.constant dense<0xFF800000> : vector<2xf32>
    %258 = vector.multi_reduction <maximumf>, %257, %cst_86 [1] : vector<2x8xf32> to vector<2xf32>
    %259 = vector.shape_cast %258 : vector<2xf32> to vector<2x1xf32>
    %260 = vector.broadcast %259 : vector<2x1xf32> to vector<2x8xf32>
    %261 = arith.subf %257, %260 : vector<2x8xf32>
    %262 = math.exp %261 : vector<2x8xf32>
    %cst_87 = arith.constant dense<0.000000e+00> : vector<2xf32>
    %263 = vector.multi_reduction <add>, %262, %cst_87 [1] : vector<2x8xf32> to vector<2xf32>
    %264 = vector.shape_cast %263 : vector<2xf32> to vector<2x1xf32>
    %265 = vector.broadcast %264 : vector<2x1xf32> to vector<2x8xf32>
    %266 = arith.divf %262, %265 : vector<2x8xf32>
    %267 = vector.shape_cast %266 : vector<2x8xf32> to vector<2x8x1xf32>
    %268 = vector.broadcast %267 : vector<2x8x1xf32> to vector<2x8x32xf32>
    %269 = arith.mulf %268, %1 : vector<2x8x32xf32>
    %cst_88 = arith.constant dense<0.000000e+00> : vector<2x32xf32>
    %270 = vector.multi_reduction <add>, %269, %cst_88 [1] : vector<2x8x32xf32> to vector<2x32xf32>
    %271 = tpu.concatenate %251, %270, %180 in 1 : vector<2x16xf32>, vector<2x32xf32>, vector<2x32xf32> -> vector<2x80xf32>
    %cst_89 = arith.constant dense<0.000000e+00> : vector<2x128xf32>
    %272 = tpu.matmul %271, %41, %cst_89 {dimension_numbers = #tpu.dot_dimension_numbers<[1], [0], [0], [1], [0, 0, 1, 1], [], []>} : vector<2x80xf32>, vector<80x128xf32>, vector<2x128xf32> -> vector<2x128xf32>
    %273 = vector.broadcast %43 : vector<1x128xf32> to vector<2x128xf32>
    %274 = arith.addf %272, %273 : vector<2x128xf32>
    %275 = vector.extract_strided_slice %274 {offsets = [0, 0], sizes = [2, 32], strides = [1, 1]} : vector<2x128xf32> to vector<2x32xf32>
    %276 = arith.negf %275 : vector<2x32xf32>
    %277 = math.exp %276 : vector<2x32xf32>
    %cst_90 = arith.constant 1.000000e+00 : f32
    %278 = vector.broadcast %cst_90 : f32 to vector<2x32xf32>
    %279 = arith.addf %278, %277 : vector<2x32xf32>
    %280 = arith.divf %278, %279 : vector<2x32xf32>
    %281 = vector.extract_strided_slice %274 {offsets = [0, 32], sizes = [2, 32], strides = [1, 1]} : vector<2x128xf32> to vector<2x32xf32>
    %282 = arith.negf %281 : vector<2x32xf32>
    %283 = math.exp %282 : vector<2x32xf32>
    %cst_91 = arith.constant 1.000000e+00 : f32
    %284 = vector.broadcast %cst_91 : f32 to vector<2x32xf32>
    %285 = arith.addf %284, %283 : vector<2x32xf32>
    %286 = arith.divf %284, %285 : vector<2x32xf32>
    %287 = vector.extract_strided_slice %274 {offsets = [0, 64], sizes = [2, 32], strides = [1, 1]} : vector<2x128xf32> to vector<2x32xf32>
    %288 = vector.extract_strided_slice %274 {offsets = [0, 96], sizes = [2, 32], strides = [1, 1]} : vector<2x128xf32> to vector<2x32xf32>
    %289 = arith.mulf %280, %288 : vector<2x32xf32>
    %290 = arith.addf %287, %289 : vector<2x32xf32>
    %291 = math.tanh %290 : vector<2x32xf32>
    %cst_92 = arith.constant 1.000000e+00 : f32
    %292 = vector.broadcast %cst_92 : f32 to vector<2x32xf32>
    %293 = arith.subf %292, %286 : vector<2x32xf32>
    %294 = arith.mulf %293, %291 : vector<2x32xf32>
    %295 = arith.mulf %286, %180 : vector<2x32xf32>
    %296 = arith.addf %294, %295 : vector<2x32xf32>
    %cst_93 = arith.constant 0.000000e+00 : f32
    %297 = vector.broadcast %cst_93 : f32 to vector<2x32xf32>
    %298 = arith.cmpf ogt, %296, %297 : vector<2x32xf32>
    %299 = math.exp %296 : vector<2x32xf32>
    %cst_94 = arith.constant 1.000000e+00 : f32
    %300 = vector.broadcast %cst_94 : f32 to vector<2x32xf32>
    %301 = arith.subf %299, %300 : vector<2x32xf32>
    %cst_95 = arith.constant 1.67326319 : f32
    %302 = vector.broadcast %cst_95 : f32 to vector<2x32xf32>
    %303 = arith.mulf %302, %301 : vector<2x32xf32>
    %304 = arith.select %298, %296, %303 : vector<2x32xi1>, vector<2x32xf32>
    %cst_96 = arith.constant 1.05070102 : f32
    %305 = vector.broadcast %cst_96 : f32 to vector<2x32xf32>
    %306 = arith.mulf %305, %304 : vector<2x32xf32>
    %307 = tpu.concatenate %296, %306 in 1 : vector<2x32xf32>, vector<2x32xf32> -> vector<2x64xf32>
    %cst_97 = arith.constant dense<0.000000e+00> : vector<2x128xf32>
    %308 = tpu.matmul %307, %6, %cst_97 {dimension_numbers = #tpu.dot_dimension_numbers<[1], [0], [0], [1], [0, 0, 1, 1], [], []>} : vector<2x64xf32>, vector<64x128xf32>, vector<2x128xf32> -> vector<2x128xf32>
    %309 = vector.broadcast %7 : vector<1x128xf32> to vector<2x128xf32>
    %310 = arith.addf %308, %309 : vector<2x128xf32>
    %311 = vector.extract_strided_slice %310 {offsets = [0, 5], sizes = [2, 1], strides = [1, 1]} : vector<2x128xf32> to vector<2x1xf32>
    %312 = vector.extract_strided_slice %310 {offsets = [0, 6], sizes = [2, 100], strides = [1, 1]} : vector<2x128xf32> to vector<2x100xf32>
    %313 = vector.shape_cast %312 : vector<2x100xf32> to vector<2x1x100xf32>
    %314 = vector.broadcast %313 : vector<2x1x100xf32> to vector<2x8x100xf32>
    %315 = arith.addf %314, %33 : vector<2x8x100xf32>
    %cst_98 = arith.constant 0.000000e+00 : f32
    %316 = vector.broadcast %cst_98 : f32 to vector<2x8x100xf32>
    %317 = arith.cmpf ogt, %315, %316 : vector<2x8x100xf32>
    %318 = math.exp %315 : vector<2x8x100xf32>
    %cst_99 = arith.constant 1.000000e+00 : f32
    %319 = vector.broadcast %cst_99 : f32 to vector<2x8x100xf32>
    %320 = arith.subf %318, %319 : vector<2x8x100xf32>
    %cst_100 = arith.constant 1.67326319 : f32
    %321 = vector.broadcast %cst_100 : f32 to vector<2x8x100xf32>
    %322 = arith.mulf %321, %320 : vector<2x8x100xf32>
    %323 = arith.select %317, %315, %322 : vector<2x8x100xi1>, vector<2x8x100xf32>
    %cst_101 = arith.constant 1.05070102 : f32
    %324 = vector.broadcast %cst_101 : f32 to vector<2x8x100xf32>
    %325 = arith.mulf %324, %323 : vector<2x8x100xf32>
    %326 = vector.shape_cast %11 : vector<1x100xf32> to vector<1x1x100xf32>
    %327 = vector.broadcast %326 : vector<1x1x100xf32> to vector<2x8x100xf32>
    %328 = arith.mulf %325, %327 : vector<2x8x100xf32>
    %cst_102 = arith.constant dense<0.000000e+00> : vector<2x8xf32>
    %329 = vector.multi_reduction <add>, %328, %cst_102 [2] : vector<2x8x100xf32> to vector<2x8xf32>
    %330 = vector.broadcast %12 : vector<1x1xf32> to vector<2x8xf32>
    %331 = arith.addf %329, %330 : vector<2x8xf32>
    %cst_103 = arith.constant -1.000000e+30 : f32
    %332 = vector.broadcast %cst_103 : f32 to vector<2x119xf32>
    %333 = tpu.concatenate %331, %311, %332 in 1 : vector<2x8xf32>, vector<2x1xf32>, vector<2x119xf32> -> vector<2x128xf32>
    %cst_104 = arith.constant dense<0xFF800000> : vector<2xf32>
    %334 = vector.multi_reduction <maximumf>, %333, %cst_104 [1] : vector<2x128xf32> to vector<2xf32>
    %335 = vector.shape_cast %334 : vector<2xf32> to vector<2x1xf32>
    %336 = vector.broadcast %335 : vector<2x1xf32> to vector<2x128xf32>
    %337 = arith.subf %333, %336 : vector<2x128xf32>
    %338 = math.exp %337 : vector<2x128xf32>
    %cst_105 = arith.constant dense<0.000000e+00> : vector<2xf32>
    %339 = vector.multi_reduction <add>, %338, %cst_105 [1] : vector<2x128xf32> to vector<2xf32>
    %340 = vector.shape_cast %339 : vector<2xf32> to vector<2x1xf32>
    %341 = math.log %340 : vector<2x1xf32>
    %342 = vector.broadcast %341 : vector<2x1xf32> to vector<2x128xf32>
    %343 = arith.subf %337, %342 : vector<2x128xf32>
    %c2 = arith.constant 2 : index
    %c0_106 = arith.constant 0 : index
    %c0_107 = arith.constant 0 : index
    %344 = vector.load %arg14[%c2, %c0_106, %c0_107] : memref<6x2x128xf32, #tpu.memory_space<vmem>>, vector<1x2x128xf32>
    %345 = vector.shape_cast %344 : vector<1x2x128xf32> to vector<2x128xf32>
    %346 = vector.shape_cast %343 : vector<2x128xf32> to vector<1x2x128xf32>
    tpu.vector_store %arg14[%c2, %c0_106, %c0_107], %346 {strides = array<i32>} : memref<6x2x128xf32, #tpu.memory_space<vmem>>, vector<1x2x128xf32>,
    %cst_108 = arith.constant dense<0xFF800000> : vector<2xf32>
    %347 = vector.multi_reduction <maximumf>, %333, %cst_108 [1] : vector<2x128xf32> to vector<2xf32>
    %348 = vector.shape_cast %347 : vector<2xf32> to vector<2x1xf32>
    %349 = vector.broadcast %348 : vector<2x1xf32> to vector<2x128xf32>
    %350 = arith.cmpf oeq, %333, %349 : vector<2x128xf32>
    %c128_i32_109 = arith.constant 128 : i32
    %351 = vector.broadcast %c128_i32_109 : i32 to vector<2x128xi32>
    %352 = arith.select %350, %34, %351 : vector<2x128xi1>, vector<2x128xi32>
    %cst_110 = arith.constant dense<2147483647> : vector<2xi32>
    %353 = vector.multi_reduction <minsi>, %352, %cst_110 [1] : vector<2x128xi32> to vector<2xi32>
    %354 = vector.shape_cast %353 : vector<2xi32> to vector<2x1xi32>
    %c7_i32_111 = arith.constant 7 : i32
    %355 = vector.broadcast %c7_i32_111 : i32 to vector<2x1xi32>
    %356 = arith.minsi %354, %355 : vector<2x1xi32>
    %357 = vector.broadcast %356 : vector<2x1xi32> to vector<2x8xi32>
    %358 = arith.cmpi eq, %36, %357 : vector<2x8xi32>
    %c0_i32_112 = arith.constant 0 : i32
    %359 = vector.broadcast %c0_i32_112 : i32 to vector<2x8xi32>
    %360 = arith.select %358, %0, %359 : vector<2x8xi1>, vector<2x8xi32>
    %cst_113 = arith.constant dense<0> : vector<2xi32>
    %361 = vector.multi_reduction <add>, %360, %cst_113 [1] : vector<2x8xi32> to vector<2xi32>
    %362 = vector.shape_cast %361 : vector<2xi32> to vector<2x1xi32>
    %363 = vector.broadcast %362 : vector<2x1xi32> to vector<2x50xi32>
    %364 = arith.cmpi eq, %37, %363 : vector<2x50xi32>
    %365 = arith.extui %364 : vector<2x50xi1> to vector<2x50xi32>
    %366 = arith.sitofp %365 : vector<2x50xi32> to vector<2x50xf32>
    %cst_114 = arith.constant dense<0.000000e+00> : vector<2x16xf32>
    %367 = tpu.matmul %366, %14, %cst_114 {dimension_numbers = #tpu.dot_dimension_numbers<[1], [0], [0], [1], [0, 0, 1, 1], [], []>} : vector<2x50xf32>, vector<50x16xf32>, vector<2x16xf32> -> vector<2x16xf32>
    %c1_115 = arith.constant 1 : index
    %c0_116 = arith.constant 0 : index
    %c0_117 = arith.constant 0 : index
    %368 = vector.load %arg6[%c1_115, %c0_116, %c0_117] : memref<2x80x128xf32, #tpu.memory_space<vmem>>, vector<1x80x128xf32>
    %369 = vector.shape_cast %368 : vector<1x80x128xf32> to vector<80x128xf32>
    %c1_118 = arith.constant 1 : index
    %c0_119 = arith.constant 0 : index
    %c0_120 = arith.constant 0 : index
    %370 = vector.load %arg7[%c1_118, %c0_119, %c0_120] : memref<2x1x128xf32, #tpu.memory_space<vmem>>, vector<1x1x128xf32>
    %371 = vector.shape_cast %370 : vector<1x1x128xf32> to vector<1x128xf32>
    %372 = arith.addf %2, %296 : vector<2x32xf32>
    %cst_121 = arith.constant 5.000000e-01 : f32
    %373 = vector.broadcast %cst_121 : f32 to vector<2x32xf32>
    %374 = arith.mulf %372, %373 : vector<2x32xf32>
    %375 = vector.broadcast %4 : vector<1x32xf32> to vector<2x32xf32>
    %376 = arith.mulf %374, %375 : vector<2x32xf32>
    %cst_122 = arith.constant dense<0.000000e+00> : vector<2xf32>
    %377 = vector.multi_reduction <add>, %376, %cst_122 [1] : vector<2x32xf32> to vector<2xf32>
    %378 = vector.shape_cast %377 : vector<2xf32> to vector<2x1xf32>
    %379 = vector.broadcast %378 : vector<2x1xf32> to vector<2x8xf32>
    %380 = arith.addf %18, %379 : vector<2x8xf32>
    %cst_123 = arith.constant dense<0xFF800000> : vector<2xf32>
    %381 = vector.multi_reduction <maximumf>, %380, %cst_123 [1] : vector<2x8xf32> to vector<2xf32>
    %382 = vector.shape_cast %381 : vector<2xf32> to vector<2x1xf32>
    %383 = vector.broadcast %382 : vector<2x1xf32> to vector<2x8xf32>
    %384 = arith.subf %380, %383 : vector<2x8xf32>
    %385 = math.exp %384 : vector<2x8xf32>
    %cst_124 = arith.constant dense<0.000000e+00> : vector<2xf32>
    %386 = vector.multi_reduction <add>, %385, %cst_124 [1] : vector<2x8xf32> to vector<2xf32>
    %387 = vector.shape_cast %386 : vector<2xf32> to vector<2x1xf32>
    %388 = vector.broadcast %387 : vector<2x1xf32> to vector<2x8xf32>
    %389 = arith.divf %385, %388 : vector<2x8xf32>
    %390 = vector.shape_cast %389 : vector<2x8xf32> to vector<2x8x1xf32>
    %391 = vector.broadcast %390 : vector<2x8x1xf32> to vector<2x8x32xf32>
    %392 = arith.mulf %391, %1 : vector<2x8x32xf32>
    %cst_125 = arith.constant dense<0.000000e+00> : vector<2x32xf32>
    %393 = vector.multi_reduction <add>, %392, %cst_125 [1] : vector<2x8x32xf32> to vector<2x32xf32>
    %394 = tpu.concatenate %367, %393, %374 in 1 : vector<2x16xf32>, vector<2x32xf32>, vector<2x32xf32> -> vector<2x80xf32>
    %cst_126 = arith.constant dense<0.000000e+00> : vector<2x128xf32>
    %395 = tpu.matmul %394, %369, %cst_126 {dimension_numbers = #tpu.dot_dimension_numbers<[1], [0], [0], [1], [0, 0, 1, 1], [], []>} : vector<2x80xf32>, vector<80x128xf32>, vector<2x128xf32> -> vector<2x128xf32>
    %396 = vector.broadcast %371 : vector<1x128xf32> to vector<2x128xf32>
    %397 = arith.addf %395, %396 : vector<2x128xf32>
    %398 = vector.extract_strided_slice %397 {offsets = [0, 0], sizes = [2, 32], strides = [1, 1]} : vector<2x128xf32> to vector<2x32xf32>
    %399 = arith.negf %398 : vector<2x32xf32>
    %400 = math.exp %399 : vector<2x32xf32>
    %cst_127 = arith.constant 1.000000e+00 : f32
    %401 = vector.broadcast %cst_127 : f32 to vector<2x32xf32>
    %402 = arith.addf %401, %400 : vector<2x32xf32>
    %403 = arith.divf %401, %402 : vector<2x32xf32>
    %404 = vector.extract_strided_slice %397 {offsets = [0, 32], sizes = [2, 32], strides = [1, 1]} : vector<2x128xf32> to vector<2x32xf32>
    %405 = arith.negf %404 : vector<2x32xf32>
    %406 = math.exp %405 : vector<2x32xf32>
    %cst_128 = arith.constant 1.000000e+00 : f32
    %407 = vector.broadcast %cst_128 : f32 to vector<2x32xf32>
    %408 = arith.addf %407, %406 : vector<2x32xf32>
    %409 = arith.divf %407, %408 : vector<2x32xf32>
    %410 = vector.extract_strided_slice %397 {offsets = [0, 64], sizes = [2, 32], strides = [1, 1]} : vector<2x128xf32> to vector<2x32xf32>
    %411 = vector.extract_strided_slice %397 {offsets = [0, 96], sizes = [2, 32], strides = [1, 1]} : vector<2x128xf32> to vector<2x32xf32>
    %412 = arith.mulf %403, %411 : vector<2x32xf32>
    %413 = arith.addf %410, %412 : vector<2x32xf32>
    %414 = math.tanh %413 : vector<2x32xf32>
    %cst_129 = arith.constant 1.000000e+00 : f32
    %415 = vector.broadcast %cst_129 : f32 to vector<2x32xf32>
    %416 = arith.subf %415, %409 : vector<2x32xf32>
    %417 = arith.mulf %416, %414 : vector<2x32xf32>
    %418 = arith.mulf %409, %374 : vector<2x32xf32>
    %419 = arith.addf %417, %418 : vector<2x32xf32>
    %cst_130 = arith.constant 0.000000e+00 : f32
    %420 = vector.broadcast %cst_130 : f32 to vector<2x32xf32>
    %421 = arith.cmpf ogt, %419, %420 : vector<2x32xf32>
    %422 = math.exp %419 : vector<2x32xf32>
    %cst_131 = arith.constant 1.000000e+00 : f32
    %423 = vector.broadcast %cst_131 : f32 to vector<2x32xf32>
    %424 = arith.subf %422, %423 : vector<2x32xf32>
    %cst_132 = arith.constant 1.67326319 : f32
    %425 = vector.broadcast %cst_132 : f32 to vector<2x32xf32>
    %426 = arith.mulf %425, %424 : vector<2x32xf32>
    %427 = arith.select %421, %419, %426 : vector<2x32xi1>, vector<2x32xf32>
    %cst_133 = arith.constant 1.05070102 : f32
    %428 = vector.broadcast %cst_133 : f32 to vector<2x32xf32>
    %429 = arith.mulf %428, %427 : vector<2x32xf32>
    %430 = tpu.concatenate %419, %429 in 1 : vector<2x32xf32>, vector<2x32xf32> -> vector<2x64xf32>
    %cst_134 = arith.constant dense<0.000000e+00> : vector<2x128xf32>
    %431 = tpu.matmul %430, %6, %cst_134 {dimension_numbers = #tpu.dot_dimension_numbers<[1], [0], [0], [1], [0, 0, 1, 1], [], []>} : vector<2x64xf32>, vector<64x128xf32>, vector<2x128xf32> -> vector<2x128xf32>
    %432 = vector.broadcast %7 : vector<1x128xf32> to vector<2x128xf32>
    %433 = arith.addf %431, %432 : vector<2x128xf32>
    %c6_i32_135 = arith.constant 6 : i32
    %434 = vector.broadcast %c6_i32_135 : i32 to vector<2x128xi32>
    %435 = arith.cmpi slt, %34, %434 : vector<2x128xi32>
    %cst_136 = arith.constant -1.000000e+30 : f32
    %436 = vector.broadcast %cst_136 : f32 to vector<2x128xf32>
    %437 = arith.select %435, %433, %436 : vector<2x128xi1>, vector<2x128xf32>
    %cst_137 = arith.constant dense<0xFF800000> : vector<2xf32>
    %438 = vector.multi_reduction <maximumf>, %437, %cst_137 [1] : vector<2x128xf32> to vector<2xf32>
    %439 = vector.shape_cast %438 : vector<2xf32> to vector<2x1xf32>
    %440 = vector.broadcast %439 : vector<2x1xf32> to vector<2x128xf32>
    %441 = arith.subf %437, %440 : vector<2x128xf32>
    %442 = math.exp %441 : vector<2x128xf32>
    %cst_138 = arith.constant dense<0.000000e+00> : vector<2xf32>
    %443 = vector.multi_reduction <add>, %442, %cst_138 [1] : vector<2x128xf32> to vector<2xf32>
    %444 = vector.shape_cast %443 : vector<2xf32> to vector<2x1xf32>
    %445 = math.log %444 : vector<2x1xf32>
    %446 = vector.broadcast %445 : vector<2x1xf32> to vector<2x128xf32>
    %447 = arith.subf %441, %446 : vector<2x128xf32>
    %c3 = arith.constant 3 : index
    %c0_139 = arith.constant 0 : index
    %c0_140 = arith.constant 0 : index
    %448 = vector.load %arg14[%c3, %c0_139, %c0_140] : memref<6x2x128xf32, #tpu.memory_space<vmem>>, vector<1x2x128xf32>
    %449 = vector.shape_cast %448 : vector<1x2x128xf32> to vector<2x128xf32>
    %450 = vector.shape_cast %447 : vector<2x128xf32> to vector<1x2x128xf32>
    tpu.vector_store %arg14[%c3, %c0_139, %c0_140], %450 {strides = array<i32>} : memref<6x2x128xf32, #tpu.memory_space<vmem>>, vector<1x2x128xf32>,
    %cst_141 = arith.constant dense<0xFF800000> : vector<2xf32>
    %451 = vector.multi_reduction <maximumf>, %437, %cst_141 [1] : vector<2x128xf32> to vector<2xf32>
    %452 = vector.shape_cast %451 : vector<2xf32> to vector<2x1xf32>
    %453 = vector.broadcast %452 : vector<2x1xf32> to vector<2x128xf32>
    %454 = arith.cmpf oeq, %437, %453 : vector<2x128xf32>
    %c128_i32_142 = arith.constant 128 : i32
    %455 = vector.broadcast %c128_i32_142 : i32 to vector<2x128xi32>
    %456 = arith.select %454, %34, %455 : vector<2x128xi1>, vector<2x128xi32>
    %cst_143 = arith.constant dense<2147483647> : vector<2xi32>
    %457 = vector.multi_reduction <minsi>, %456, %cst_143 [1] : vector<2x128xi32> to vector<2xi32>
    %458 = vector.shape_cast %457 : vector<2xi32> to vector<2x1xi32>
    %459 = vector.broadcast %458 : vector<2x1xi32> to vector<2x6xi32>
    %460 = arith.cmpi eq, %35, %459 : vector<2x6xi32>
    %461 = arith.extui %460 : vector<2x6xi1> to vector<2x6xi32>
    %462 = arith.sitofp %461 : vector<2x6xi32> to vector<2x6xf32>
    %cst_144 = arith.constant dense<0.000000e+00> : vector<2x16xf32>
    %463 = tpu.matmul %462, %13, %cst_144 {dimension_numbers = #tpu.dot_dimension_numbers<[1], [0], [0], [1], [0, 0, 1, 1], [], []>} : vector<2x6xf32>, vector<6x16xf32>, vector<2x16xf32> -> vector<2x16xf32>
    %464 = vector.broadcast %4 : vector<1x32xf32> to vector<2x32xf32>
    %465 = arith.mulf %419, %464 : vector<2x32xf32>
    %cst_145 = arith.constant dense<0.000000e+00> : vector<2xf32>
    %466 = vector.multi_reduction <add>, %465, %cst_145 [1] : vector<2x32xf32> to vector<2xf32>
    %467 = vector.shape_cast %466 : vector<2xf32> to vector<2x1xf32>
    %468 = vector.broadcast %467 : vector<2x1xf32> to vector<2x8xf32>
    %469 = arith.addf %18, %468 : vector<2x8xf32>
    %cst_146 = arith.constant dense<0xFF800000> : vector<2xf32>
    %470 = vector.multi_reduction <maximumf>, %469, %cst_146 [1] : vector<2x8xf32> to vector<2xf32>
    %471 = vector.shape_cast %470 : vector<2xf32> to vector<2x1xf32>
    %472 = vector.broadcast %471 : vector<2x1xf32> to vector<2x8xf32>
    %473 = arith.subf %469, %472 : vector<2x8xf32>
    %474 = math.exp %473 : vector<2x8xf32>
    %cst_147 = arith.constant dense<0.000000e+00> : vector<2xf32>
    %475 = vector.multi_reduction <add>, %474, %cst_147 [1] : vector<2x8xf32> to vector<2xf32>
    %476 = vector.shape_cast %475 : vector<2xf32> to vector<2x1xf32>
    %477 = vector.broadcast %476 : vector<2x1xf32> to vector<2x8xf32>
    %478 = arith.divf %474, %477 : vector<2x8xf32>
    %479 = vector.shape_cast %478 : vector<2x8xf32> to vector<2x8x1xf32>
    %480 = vector.broadcast %479 : vector<2x8x1xf32> to vector<2x8x32xf32>
    %481 = arith.mulf %480, %1 : vector<2x8x32xf32>
    %cst_148 = arith.constant dense<0.000000e+00> : vector<2x32xf32>
    %482 = vector.multi_reduction <add>, %481, %cst_148 [1] : vector<2x8x32xf32> to vector<2x32xf32>
    %483 = tpu.concatenate %463, %482, %419 in 1 : vector<2x16xf32>, vector<2x32xf32>, vector<2x32xf32> -> vector<2x80xf32>
    %cst_149 = arith.constant dense<0.000000e+00> : vector<2x128xf32>
    %484 = tpu.matmul %483, %369, %cst_149 {dimension_numbers = #tpu.dot_dimension_numbers<[1], [0], [0], [1], [0, 0, 1, 1], [], []>} : vector<2x80xf32>, vector<80x128xf32>, vector<2x128xf32> -> vector<2x128xf32>
    %485 = vector.broadcast %371 : vector<1x128xf32> to vector<2x128xf32>
    %486 = arith.addf %484, %485 : vector<2x128xf32>
    %487 = vector.extract_strided_slice %486 {offsets = [0, 0], sizes = [2, 32], strides = [1, 1]} : vector<2x128xf32> to vector<2x32xf32>
    %488 = arith.negf %487 : vector<2x32xf32>
    %489 = math.exp %488 : vector<2x32xf32>
    %cst_150 = arith.constant 1.000000e+00 : f32
    %490 = vector.broadcast %cst_150 : f32 to vector<2x32xf32>
    %491 = arith.addf %490, %489 : vector<2x32xf32>
    %492 = arith.divf %490, %491 : vector<2x32xf32>
    %493 = vector.extract_strided_slice %486 {offsets = [0, 32], sizes = [2, 32], strides = [1, 1]} : vector<2x128xf32> to vector<2x32xf32>
    %494 = arith.negf %493 : vector<2x32xf32>
    %495 = math.exp %494 : vector<2x32xf32>
    %cst_151 = arith.constant 1.000000e+00 : f32
    %496 = vector.broadcast %cst_151 : f32 to vector<2x32xf32>
    %497 = arith.addf %496, %495 : vector<2x32xf32>
    %498 = arith.divf %496, %497 : vector<2x32xf32>
    %499 = vector.extract_strided_slice %486 {offsets = [0, 64], sizes = [2, 32], strides = [1, 1]} : vector<2x128xf32> to vector<2x32xf32>
    %500 = vector.extract_strided_slice %486 {offsets = [0, 96], sizes = [2, 32], strides = [1, 1]} : vector<2x128xf32> to vector<2x32xf32>
    %501 = arith.mulf %492, %500 : vector<2x32xf32>
    %502 = arith.addf %499, %501 : vector<2x32xf32>
    %503 = math.tanh %502 : vector<2x32xf32>
    %cst_152 = arith.constant 1.000000e+00 : f32
    %504 = vector.broadcast %cst_152 : f32 to vector<2x32xf32>
    %505 = arith.subf %504, %498 : vector<2x32xf32>
    %506 = arith.mulf %505, %503 : vector<2x32xf32>
    %507 = arith.mulf %498, %419 : vector<2x32xf32>
    %508 = arith.addf %506, %507 : vector<2x32xf32>
    %cst_153 = arith.constant 0.000000e+00 : f32
    %509 = vector.broadcast %cst_153 : f32 to vector<2x32xf32>
    %510 = arith.cmpf ogt, %508, %509 : vector<2x32xf32>
    %511 = math.exp %508 : vector<2x32xf32>
    %cst_154 = arith.constant 1.000000e+00 : f32
    %512 = vector.broadcast %cst_154 : f32 to vector<2x32xf32>
    %513 = arith.subf %511, %512 : vector<2x32xf32>
    %cst_155 = arith.constant 1.67326319 : f32
    %514 = vector.broadcast %cst_155 : f32 to vector<2x32xf32>
    %515 = arith.mulf %514, %513 : vector<2x32xf32>
    %516 = arith.select %510, %508, %515 : vector<2x32xi1>, vector<2x32xf32>
    %cst_156 = arith.constant 1.05070102 : f32
    %517 = vector.broadcast %cst_156 : f32 to vector<2x32xf32>
    %518 = arith.mulf %517, %516 : vector<2x32xf32>
    %519 = tpu.concatenate %508, %518 in 1 : vector<2x32xf32>, vector<2x32xf32> -> vector<2x64xf32>
    %cst_157 = arith.constant dense<0.000000e+00> : vector<2x128xf32>
    %520 = tpu.matmul %519, %6, %cst_157 {dimension_numbers = #tpu.dot_dimension_numbers<[1], [0], [0], [1], [0, 0, 1, 1], [], []>} : vector<2x64xf32>, vector<64x128xf32>, vector<2x128xf32> -> vector<2x128xf32>
    %521 = vector.broadcast %7 : vector<1x128xf32> to vector<2x128xf32>
    %522 = arith.addf %520, %521 : vector<2x128xf32>
    %523 = vector.extract_strided_slice %522 {offsets = [0, 5], sizes = [2, 1], strides = [1, 1]} : vector<2x128xf32> to vector<2x1xf32>
    %524 = vector.extract_strided_slice %522 {offsets = [0, 6], sizes = [2, 100], strides = [1, 1]} : vector<2x128xf32> to vector<2x100xf32>
    %525 = vector.shape_cast %524 : vector<2x100xf32> to vector<2x1x100xf32>
    %526 = vector.broadcast %525 : vector<2x1x100xf32> to vector<2x8x100xf32>
    %527 = arith.addf %526, %33 : vector<2x8x100xf32>
    %cst_158 = arith.constant 0.000000e+00 : f32
    %528 = vector.broadcast %cst_158 : f32 to vector<2x8x100xf32>
    %529 = arith.cmpf ogt, %527, %528 : vector<2x8x100xf32>
    %530 = math.exp %527 : vector<2x8x100xf32>
    %cst_159 = arith.constant 1.000000e+00 : f32
    %531 = vector.broadcast %cst_159 : f32 to vector<2x8x100xf32>
    %532 = arith.subf %530, %531 : vector<2x8x100xf32>
    %cst_160 = arith.constant 1.67326319 : f32
    %533 = vector.broadcast %cst_160 : f32 to vector<2x8x100xf32>
    %534 = arith.mulf %533, %532 : vector<2x8x100xf32>
    %535 = arith.select %529, %527, %534 : vector<2x8x100xi1>, vector<2x8x100xf32>
    %cst_161 = arith.constant 1.05070102 : f32
    %536 = vector.broadcast %cst_161 : f32 to vector<2x8x100xf32>
    %537 = arith.mulf %536, %535 : vector<2x8x100xf32>
    %538 = vector.shape_cast %11 : vector<1x100xf32> to vector<1x1x100xf32>
    %539 = vector.broadcast %538 : vector<1x1x100xf32> to vector<2x8x100xf32>
    %540 = arith.mulf %537, %539 : vector<2x8x100xf32>
    %cst_162 = arith.constant dense<0.000000e+00> : vector<2x8xf32>
    %541 = vector.multi_reduction <add>, %540, %cst_162 [2] : vector<2x8x100xf32> to vector<2x8xf32>
    %542 = vector.broadcast %12 : vector<1x1xf32> to vector<2x8xf32>
    %543 = arith.addf %541, %542 : vector<2x8xf32>
    %cst_163 = arith.constant -1.000000e+30 : f32
    %544 = vector.broadcast %cst_163 : f32 to vector<2x119xf32>
    %545 = tpu.concatenate %543, %523, %544 in 1 : vector<2x8xf32>, vector<2x1xf32>, vector<2x119xf32> -> vector<2x128xf32>
    %cst_164 = arith.constant dense<0xFF800000> : vector<2xf32>
    %546 = vector.multi_reduction <maximumf>, %545, %cst_164 [1] : vector<2x128xf32> to vector<2xf32>
    %547 = vector.shape_cast %546 : vector<2xf32> to vector<2x1xf32>
    %548 = vector.broadcast %547 : vector<2x1xf32> to vector<2x128xf32>
    %549 = arith.subf %545, %548 : vector<2x128xf32>
    %550 = math.exp %549 : vector<2x128xf32>
    %cst_165 = arith.constant dense<0.000000e+00> : vector<2xf32>
    %551 = vector.multi_reduction <add>, %550, %cst_165 [1] : vector<2x128xf32> to vector<2xf32>
    %552 = vector.shape_cast %551 : vector<2xf32> to vector<2x1xf32>
    %553 = math.log %552 : vector<2x1xf32>
    %554 = vector.broadcast %553 : vector<2x1xf32> to vector<2x128xf32>
    %555 = arith.subf %549, %554 : vector<2x128xf32>
    %c4 = arith.constant 4 : index
    %c0_166 = arith.constant 0 : index
    %c0_167 = arith.constant 0 : index
    %556 = vector.load %arg14[%c4, %c0_166, %c0_167] : memref<6x2x128xf32, #tpu.memory_space<vmem>>, vector<1x2x128xf32>
    %557 = vector.shape_cast %556 : vector<1x2x128xf32> to vector<2x128xf32>
    %558 = vector.shape_cast %555 : vector<2x128xf32> to vector<1x2x128xf32>
    tpu.vector_store %arg14[%c4, %c0_166, %c0_167], %558 {strides = array<i32>} : memref<6x2x128xf32, #tpu.memory_space<vmem>>, vector<1x2x128xf32>,
    %cst_168 = arith.constant dense<0xFF800000> : vector<2xf32>
    %559 = vector.multi_reduction <maximumf>, %545, %cst_168 [1] : vector<2x128xf32> to vector<2xf32>
    %560 = vector.shape_cast %559 : vector<2xf32> to vector<2x1xf32>
    %561 = vector.broadcast %560 : vector<2x1xf32> to vector<2x128xf32>
    %562 = arith.cmpf oeq, %545, %561 : vector<2x128xf32>
    %c128_i32_169 = arith.constant 128 : i32
    %563 = vector.broadcast %c128_i32_169 : i32 to vector<2x128xi32>
    %564 = arith.select %562, %34, %563 : vector<2x128xi1>, vector<2x128xi32>
    %cst_170 = arith.constant dense<2147483647> : vector<2xi32>
    %565 = vector.multi_reduction <minsi>, %564, %cst_170 [1] : vector<2x128xi32> to vector<2xi32>
    %566 = vector.shape_cast %565 : vector<2xi32> to vector<2x1xi32>
    %c7_i32_171 = arith.constant 7 : i32
    %567 = vector.broadcast %c7_i32_171 : i32 to vector<2x1xi32>
    %568 = arith.minsi %566, %567 : vector<2x1xi32>
    %569 = vector.broadcast %568 : vector<2x1xi32> to vector<2x8xi32>
    %570 = arith.cmpi eq, %36, %569 : vector<2x8xi32>
    %c0_i32_172 = arith.constant 0 : i32
    %571 = vector.broadcast %c0_i32_172 : i32 to vector<2x8xi32>
    %572 = arith.select %570, %0, %571 : vector<2x8xi1>, vector<2x8xi32>
    %cst_173 = arith.constant dense<0> : vector<2xi32>
    %573 = vector.multi_reduction <add>, %572, %cst_173 [1] : vector<2x8xi32> to vector<2xi32>
    %574 = vector.shape_cast %573 : vector<2xi32> to vector<2x1xi32>
    %575 = vector.broadcast %574 : vector<2x1xi32> to vector<2x50xi32>
    %576 = arith.cmpi eq, %37, %575 : vector<2x50xi32>
    %577 = arith.extui %576 : vector<2x50xi1> to vector<2x50xi32>
    %578 = arith.sitofp %577 : vector<2x50xi32> to vector<2x50xf32>
    %cst_174 = arith.constant dense<0.000000e+00> : vector<2x16xf32>
    %579 = tpu.matmul %578, %14, %cst_174 {dimension_numbers = #tpu.dot_dimension_numbers<[1], [0], [0], [1], [0, 0, 1, 1], [], []>} : vector<2x50xf32>, vector<50x16xf32>, vector<2x16xf32> -> vector<2x16xf32>
    %580 = vector.broadcast %4 : vector<1x32xf32> to vector<2x32xf32>
    %581 = arith.mulf %508, %580 : vector<2x32xf32>
    %cst_175 = arith.constant dense<0.000000e+00> : vector<2xf32>
    %582 = vector.multi_reduction <add>, %581, %cst_175 [1] : vector<2x32xf32> to vector<2xf32>
    %583 = vector.shape_cast %582 : vector<2xf32> to vector<2x1xf32>
    %584 = vector.broadcast %583 : vector<2x1xf32> to vector<2x8xf32>
    %585 = arith.addf %18, %584 : vector<2x8xf32>
    %cst_176 = arith.constant dense<0xFF800000> : vector<2xf32>
    %586 = vector.multi_reduction <maximumf>, %585, %cst_176 [1] : vector<2x8xf32> to vector<2xf32>
    %587 = vector.shape_cast %586 : vector<2xf32> to vector<2x1xf32>
    %588 = vector.broadcast %587 : vector<2x1xf32> to vector<2x8xf32>
    %589 = arith.subf %585, %588 : vector<2x8xf32>
    %590 = math.exp %589 : vector<2x8xf32>
    %cst_177 = arith.constant dense<0.000000e+00> : vector<2xf32>
    %591 = vector.multi_reduction <add>, %590, %cst_177 [1] : vector<2x8xf32> to vector<2xf32>
    %592 = vector.shape_cast %591 : vector<2xf32> to vector<2x1xf32>
    %593 = vector.broadcast %592 : vector<2x1xf32> to vector<2x8xf32>
    %594 = arith.divf %590, %593 : vector<2x8xf32>
    %595 = vector.shape_cast %594 : vector<2x8xf32> to vector<2x8x1xf32>
    %596 = vector.broadcast %595 : vector<2x8x1xf32> to vector<2x8x32xf32>
    %597 = arith.mulf %596, %1 : vector<2x8x32xf32>
    %cst_178 = arith.constant dense<0.000000e+00> : vector<2x32xf32>
    %598 = vector.multi_reduction <add>, %597, %cst_178 [1] : vector<2x8x32xf32> to vector<2x32xf32>
    %599 = tpu.concatenate %579, %598, %508 in 1 : vector<2x16xf32>, vector<2x32xf32>, vector<2x32xf32> -> vector<2x80xf32>
    %cst_179 = arith.constant dense<0.000000e+00> : vector<2x128xf32>
    %600 = tpu.matmul %599, %369, %cst_179 {dimension_numbers = #tpu.dot_dimension_numbers<[1], [0], [0], [1], [0, 0, 1, 1], [], []>} : vector<2x80xf32>, vector<80x128xf32>, vector<2x128xf32> -> vector<2x128xf32>
    %601 = vector.broadcast %371 : vector<1x128xf32> to vector<2x128xf32>
    %602 = arith.addf %600, %601 : vector<2x128xf32>
    %603 = vector.extract_strided_slice %602 {offsets = [0, 0], sizes = [2, 32], strides = [1, 1]} : vector<2x128xf32> to vector<2x32xf32>
    %604 = arith.negf %603 : vector<2x32xf32>
    %605 = math.exp %604 : vector<2x32xf32>
    %cst_180 = arith.constant 1.000000e+00 : f32
    %606 = vector.broadcast %cst_180 : f32 to vector<2x32xf32>
    %607 = arith.addf %606, %605 : vector<2x32xf32>
    %608 = arith.divf %606, %607 : vector<2x32xf32>
    %609 = vector.extract_strided_slice %602 {offsets = [0, 32], sizes = [2, 32], strides = [1, 1]} : vector<2x128xf32> to vector<2x32xf32>
    %610 = arith.negf %609 : vector<2x32xf32>
    %611 = math.exp %610 : vector<2x32xf32>
    %cst_181 = arith.constant 1.000000e+00 : f32
    %612 = vector.broadcast %cst_181 : f32 to vector<2x32xf32>
    %613 = arith.addf %612, %611 : vector<2x32xf32>
    %614 = arith.divf %612, %613 : vector<2x32xf32>
    %615 = vector.extract_strided_slice %602 {offsets = [0, 64], sizes = [2, 32], strides = [1, 1]} : vector<2x128xf32> to vector<2x32xf32>
    %616 = vector.extract_strided_slice %602 {offsets = [0, 96], sizes = [2, 32], strides = [1, 1]} : vector<2x128xf32> to vector<2x32xf32>
    %617 = arith.mulf %608, %616 : vector<2x32xf32>
    %618 = arith.addf %615, %617 : vector<2x32xf32>
    %619 = math.tanh %618 : vector<2x32xf32>
    %cst_182 = arith.constant 1.000000e+00 : f32
    %620 = vector.broadcast %cst_182 : f32 to vector<2x32xf32>
    %621 = arith.subf %620, %614 : vector<2x32xf32>
    %622 = arith.mulf %621, %619 : vector<2x32xf32>
    %623 = arith.mulf %614, %508 : vector<2x32xf32>
    %624 = arith.addf %622, %623 : vector<2x32xf32>
    %cst_183 = arith.constant 0.000000e+00 : f32
    %625 = vector.broadcast %cst_183 : f32 to vector<2x32xf32>
    %626 = arith.cmpf ogt, %624, %625 : vector<2x32xf32>
    %627 = math.exp %624 : vector<2x32xf32>
    %cst_184 = arith.constant 1.000000e+00 : f32
    %628 = vector.broadcast %cst_184 : f32 to vector<2x32xf32>
    %629 = arith.subf %627, %628 : vector<2x32xf32>
    %cst_185 = arith.constant 1.67326319 : f32
    %630 = vector.broadcast %cst_185 : f32 to vector<2x32xf32>
    %631 = arith.mulf %630, %629 : vector<2x32xf32>
    %632 = arith.select %626, %624, %631 : vector<2x32xi1>, vector<2x32xf32>
    %cst_186 = arith.constant 1.05070102 : f32
    %633 = vector.broadcast %cst_186 : f32 to vector<2x32xf32>
    %634 = arith.mulf %633, %632 : vector<2x32xf32>
    %635 = tpu.concatenate %624, %634 in 1 : vector<2x32xf32>, vector<2x32xf32> -> vector<2x64xf32>
    %cst_187 = arith.constant dense<0.000000e+00> : vector<2x128xf32>
    %636 = tpu.matmul %635, %6, %cst_187 {dimension_numbers = #tpu.dot_dimension_numbers<[1], [0], [0], [1], [0, 0, 1, 1], [], []>} : vector<2x64xf32>, vector<64x128xf32>, vector<2x128xf32> -> vector<2x128xf32>
    %637 = vector.broadcast %7 : vector<1x128xf32> to vector<2x128xf32>
    %638 = arith.addf %636, %637 : vector<2x128xf32>
    %639 = vector.extract_strided_slice %638 {offsets = [0, 5], sizes = [2, 1], strides = [1, 1]} : vector<2x128xf32> to vector<2x1xf32>
    %640 = vector.extract_strided_slice %638 {offsets = [0, 6], sizes = [2, 100], strides = [1, 1]} : vector<2x128xf32> to vector<2x100xf32>
    %641 = vector.shape_cast %640 : vector<2x100xf32> to vector<2x1x100xf32>
    %642 = vector.broadcast %641 : vector<2x1x100xf32> to vector<2x8x100xf32>
    %643 = arith.addf %642, %33 : vector<2x8x100xf32>
    %cst_188 = arith.constant 0.000000e+00 : f32
    %644 = vector.broadcast %cst_188 : f32 to vector<2x8x100xf32>
    %645 = arith.cmpf ogt, %643, %644 : vector<2x8x100xf32>
    %646 = math.exp %643 : vector<2x8x100xf32>
    %cst_189 = arith.constant 1.000000e+00 : f32
    %647 = vector.broadcast %cst_189 : f32 to vector<2x8x100xf32>
    %648 = arith.subf %646, %647 : vector<2x8x100xf32>
    %cst_190 = arith.constant 1.67326319 : f32
    %649 = vector.broadcast %cst_190 : f32 to vector<2x8x100xf32>
    %650 = arith.mulf %649, %648 : vector<2x8x100xf32>
    %651 = arith.select %645, %643, %650 : vector<2x8x100xi1>, vector<2x8x100xf32>
    %cst_191 = arith.constant 1.05070102 : f32
    %652 = vector.broadcast %cst_191 : f32 to vector<2x8x100xf32>
    %653 = arith.mulf %652, %651 : vector<2x8x100xf32>
    %654 = vector.shape_cast %11 : vector<1x100xf32> to vector<1x1x100xf32>
    %655 = vector.broadcast %654 : vector<1x1x100xf32> to vector<2x8x100xf32>
    %656 = arith.mulf %653, %655 : vector<2x8x100xf32>
    %cst_192 = arith.constant dense<0.000000e+00> : vector<2x8xf32>
    %657 = vector.multi_reduction <add>, %656, %cst_192 [2] : vector<2x8x100xf32> to vector<2x8xf32>
    %658 = vector.broadcast %12 : vector<1x1xf32> to vector<2x8xf32>
    %659 = arith.addf %657, %658 : vector<2x8xf32>
    %cst_193 = arith.constant -1.000000e+30 : f32
    %660 = vector.broadcast %cst_193 : f32 to vector<2x119xf32>
    %661 = tpu.concatenate %659, %639, %660 in 1 : vector<2x8xf32>, vector<2x1xf32>, vector<2x119xf32> -> vector<2x128xf32>
    %cst_194 = arith.constant dense<0xFF800000> : vector<2xf32>
    %662 = vector.multi_reduction <maximumf>, %661, %cst_194 [1] : vector<2x128xf32> to vector<2xf32>
    %663 = vector.shape_cast %662 : vector<2xf32> to vector<2x1xf32>
    %664 = vector.broadcast %663 : vector<2x1xf32> to vector<2x128xf32>
    %665 = arith.subf %661, %664 : vector<2x128xf32>
    %666 = math.exp %665 : vector<2x128xf32>
    %cst_195 = arith.constant dense<0.000000e+00> : vector<2xf32>
    %667 = vector.multi_reduction <add>, %666, %cst_195 [1] : vector<2x128xf32> to vector<2xf32>
    %668 = vector.shape_cast %667 : vector<2xf32> to vector<2x1xf32>
    %669 = math.log %668 : vector<2x1xf32>
    %670 = vector.broadcast %669 : vector<2x1xf32> to vector<2x128xf32>
    %671 = arith.subf %665, %670 : vector<2x128xf32>
    %c5 = arith.constant 5 : index
    %c0_196 = arith.constant 0 : index
    %c0_197 = arith.constant 0 : index
    %672 = vector.load %arg14[%c5, %c0_196, %c0_197] : memref<6x2x128xf32, #tpu.memory_space<vmem>>, vector<1x2x128xf32>
    %673 = vector.shape_cast %672 : vector<1x2x128xf32> to vector<2x128xf32>
    %674 = vector.shape_cast %671 : vector<2x128xf32> to vector<1x2x128xf32>
    tpu.vector_store %arg14[%c5, %c0_196, %c0_197], %674 {strides = array<i32>} : memref<6x2x128xf32, #tpu.memory_space<vmem>>, vector<1x2x128xf32>,
    %cst_198 = arith.constant dense<0xFF800000> : vector<2xf32>
    %675 = vector.multi_reduction <maximumf>, %661, %cst_198 [1] : vector<2x128xf32> to vector<2xf32>
    %676 = vector.shape_cast %675 : vector<2xf32> to vector<2x1xf32>
    %677 = vector.broadcast %676 : vector<2x1xf32> to vector<2x128xf32>
    %678 = arith.cmpf oeq, %661, %677 : vector<2x128xf32>
    %c128_i32_199 = arith.constant 128 : i32
    %679 = vector.broadcast %c128_i32_199 : i32 to vector<2x128xi32>
    %680 = arith.select %678, %34, %679 : vector<2x128xi1>, vector<2x128xi32>
    %cst_200 = arith.constant dense<2147483647> : vector<2xi32>
    %681 = vector.multi_reduction <minsi>, %680, %cst_200 [1] : vector<2x128xi32> to vector<2xi32>
    %682 = vector.shape_cast %681 : vector<2xi32> to vector<2x1xi32>
    %683 = tpu.concatenate %130, %238, %354, %458, %566, %682 in 1 : vector<2x1xi32>, vector<2x1xi32>, vector<2x1xi32>, vector<2x1xi32>, vector<2x1xi32>, vector<2x1xi32> -> vector<2x6xi32>
    %c0_201 = arith.constant 0 : index
    %c0_202 = arith.constant 0 : index
    %684 = vector.load %arg15[%c0_201, %c0_202] : memref<2x6xi32, #tpu.memory_space<vmem>>, vector<2x6xi32>
    tpu.vector_store %arg15[%c0_201, %c0_202], %683 {strides = array<i32>} : memref<2x6xi32, #tpu.memory_space<vmem>>, vector<2x6xi32>,
    return
  }
  func.func @transform_0(%arg0: i32) -> (i32, i32) {
    %c0_i32 = arith.constant 0 : i32
    %c0_i32_0 = arith.constant 0 : i32
    %c0_i32_1 = arith.constant 0 : i32
    return %c0_i32, %c0_i32_0 : i32, i32
  }
  func.func @transform_1(%arg0: i32) -> (i32, i32, i32) {
    %c0_i32 = arith.constant 0 : i32
    %c0_i32_0 = arith.constant 0 : i32
    %c0_i32_1 = arith.constant 0 : i32
    %c0_i32_2 = arith.constant 0 : i32
    return %c0_i32, %c0_i32_0, %c0_i32_1 : i32, i32, i32
  }
  func.func @transform_2(%arg0: i32) -> (i32, i32) {
    %c0_i32 = arith.constant 0 : i32
    %c0_i32_0 = arith.constant 0 : i32
    %c0_i32_1 = arith.constant 0 : i32
    return %c0_i32, %c0_i32_0 : i32, i32
  }
  func.func @transform_3(%arg0: i32) -> (i32, i32) {
    %c0_i32 = arith.constant 0 : i32
    %c0_i32_0 = arith.constant 0 : i32
    %c0_i32_1 = arith.constant 0 : i32
    return %c0_i32, %c0_i32_0 : i32, i32
  }
  func.func @transform_4(%arg0: i32) -> (i32, i32) {
    %c0_i32 = arith.constant 0 : i32
    %c0_i32_0 = arith.constant 0 : i32
    %c0_i32_1 = arith.constant 0 : i32
    return %c0_i32, %c0_i32_0 : i32, i32
  }
  func.func @transform_5(%arg0: i32) -> (i32, i32, i32) {
    %c0_i32 = arith.constant 0 : i32
    %c0_i32_0 = arith.constant 0 : i32
    %c0_i32_1 = arith.constant 0 : i32
    %c0_i32_2 = arith.constant 0 : i32
    return %c0_i32, %c0_i32_0, %c0_i32_1 : i32, i32, i32
  }
  func.func @transform_6(%arg0: i32) -> (i32, i32, i32) {
    %c0_i32 = arith.constant 0 : i32
    %c0_i32_0 = arith.constant 0 : i32
    %c0_i32_1 = arith.constant 0 : i32
    %c0_i32_2 = arith.constant 0 : i32
    return %c0_i32, %c0_i32_0, %c0_i32_1 : i32, i32, i32
  }
  func.func @transform_7(%arg0: i32) -> (i32, i32) {
    %c0_i32 = arith.constant 0 : i32
    %c0_i32_0 = arith.constant 0 : i32
    %c0_i32_1 = arith.constant 0 : i32
    return %c0_i32, %c0_i32_0 : i32, i32
  }
  func.func @transform_8(%arg0: i32) -> (i32, i32) {
    %c0_i32 = arith.constant 0 : i32
    %c0_i32_0 = arith.constant 0 : i32
    %c0_i32_1 = arith.constant 0 : i32
    return %c0_i32, %c0_i32_0 : i32, i32
  }
  func.func @transform_9(%arg0: i32) -> (i32, i32) {
    %c0_i32 = arith.constant 0 : i32
    %c0_i32_0 = arith.constant 0 : i32
    %c0_i32_1 = arith.constant 0 : i32
    return %c0_i32, %c0_i32_0 : i32, i32
  }
  func.func @transform_10(%arg0: i32) -> (i32, i32) {
    %c0_i32 = arith.constant 0 : i32
    %c0_i32_0 = arith.constant 0 : i32
    %c0_i32_1 = arith.constant 0 : i32
    return %c0_i32, %c0_i32_0 : i32, i32
  }
  func.func @transform_11(%arg0: i32) -> (i32, i32) {
    %c0_i32 = arith.constant 0 : i32
    %c0_i32_0 = arith.constant 0 : i32
    %c0_i32_1 = arith.constant 0 : i32
    return %c0_i32, %c0_i32_0 : i32, i32
  }
  func.func @transform_12(%arg0: i32) -> (i32, i32) {
    %c0_i32 = arith.constant 0 : i32
    %c0_i32_0 = arith.constant 0 : i32
    %c0_i32_1 = arith.constant 0 : i32
    return %c0_i32, %c0_i32_0 : i32, i32
  }
  func.func @transform_13(%arg0: i32) -> (i32, i32, i32) {
    %c0_i32 = arith.constant 0 : i32
    %c0_i32_0 = arith.constant 0 : i32
    %c0_i32_1 = arith.constant 0 : i32
    %c0_i32_2 = arith.constant 0 : i32
    return %c0_i32, %c0_i32_0, %c0_i32_1 : i32, i32, i32
  }
  func.func @transform_14(%arg0: i32) -> (i32, i32) {
    %c0_i32 = arith.constant 0 : i32
    %c0_i32_0 = arith.constant 0 : i32
    %c0_i32_1 = arith.constant 0 : i32
    return %c0_i32, %c0_i32_0 : i32, i32
  }
}

</mosaic_0001>

<llo_original>
// kernel: multi_decoder_forward.1
$region0: #{multi_decoder_forward.1}
  #allocation0 [shape = 'u32[]', space=smem, size = 0x4, offset = 0x4, fixed_abs, tag = 'smem constant byte address 0x4 - core index']
  #allocation1 [shape = 'u32[72,128]{1,0:T(1,128)}', space=vmem, size = 0x9000, scoped, tag = 'internal scratch']
  %s0 = inlined_call_operand.vmem [shape: s32[2,8], index: 0, kind: input, shape index: {}]
  %s1 = inlined_call_operand.hbm [shape: f32[2,8,32], index: 1, kind: input, shape index: {}]
  %s2 = inlined_call_operand.vmem [shape: f32[2,32], index: 2, kind: input, shape index: {}]
  %s3 = inlined_call_operand.vmem [shape: f32[2,16], index: 3, kind: input, shape index: {}]
  %s4 = inlined_call_operand.hbm [shape: f32[2,32], index: 4, kind: input, shape index: {}]
  %s5 = inlined_call_operand.hbm [shape: f32[2,80,128], index: 5, kind: input, shape index: {}]
  %s6 = inlined_call_operand.hbm [shape: f32[2,1,128], index: 6, kind: input, shape index: {}]
  %s7 = inlined_call_operand.vmem [shape: f32[64,128], index: 7, kind: input, shape index: {}]
  %s8 = inlined_call_operand.vmem [shape: f32[1,128], index: 8, kind: input, shape index: {}]
  %s9 = inlined_call_operand.hbm [shape: f32[32,100], index: 9, kind: input, shape index: {}]
  %s10 = inlined_call_operand.hbm [shape: f32[2,101], index: 10, kind: input, shape index: {}]
  %s11 = inlined_call_operand.vmem [shape: f32[6,16], index: 11, kind: input, shape index: {}]
  %s12 = inlined_call_operand.vmem [shape: f32[50,16], index: 12, kind: input, shape index: {}]
  %s13 = inlined_call_operand.vmem [shape: f32[6,2,128], index: 13, kind: output, shape index: {0}]
  %s14 = inlined_call_operand.vmem [shape: s32[2,6], index: 14, kind: output, shape index: {1}]
  %15 = xla_tuple %s13, %s14
  %s16 = sld [smem:[#allocation0]]
  $region94: #{multi_decoder_forward.1} parent=0
    _
  %s18 = ssub.s32 1, %s16
  %s19 = scalar_select 0, %s18, %s16
  $region1: #{multi_decoder_forward.1} parent=0
    #allocation2 [shape = 'u8[8192]{0}', space=vmem, size = 0x2000, scoped, tag = 'input window, operand 1, single buffered']
    #allocation3 [shape = 's32[1]{0}', space=sflag, size = 0x4, scoped, tag = 'scoped memory for multi_decoder_forward.1']
    #allocation4 [shape = 'u8[1024]{0}', space=vmem, size = 0x400, scoped, tag = 'input window, operand 4, single buffered']
    #allocation5 [shape = 's32[1]{0}', space=sflag, size = 0x4, scoped, tag = 'scoped memory for multi_decoder_forward.1']
    #allocation6 [shape = 'u8[81920]{0}', space=vmem, size = 0x14000, scoped, tag = 'input window, operand 5, single buffered']
    #allocation7 [shape = 'u8[1024]{0}', space=vmem, size = 0x400, scoped, tag = 'input window, operand 6, single buffered']
    #allocation8 [shape = 's32[1]{0}', space=sflag, size = 0x4, scoped, tag = 'scoped memory for multi_decoder_forward.1']
    #allocation9 [shape = 'u8[16384]{0}', space=vmem, size = 0x4000, scoped, tag = 'input window, operand 9, single buffered']
    #allocation10 [shape = 'u8[1024]{0}', space=vmem, size = 0x400, scoped, tag = 'input window, operand 10, single buffered']
    #allocation11 [shape = 's32[1]{0}', space=sflag, size = 0x4, scoped, tag = 'scoped memory for multi_decoder_forward.1']
    %20 = vsyncpa [#allocation3], 0
    %21 = vsyncpa [#allocation5], 0
    %22 = vsyncpa [#allocation8], 0
    %23 = vsyncpa [#allocation11], 0
    // Predicated region
    $region2: #{multi_decoder_forward.1} parent=1 // pred_check
      _
    $region3: #{multi_decoder_forward.1} parent=1 // pred_check_branch
      %25 = sbr.rel (0) target = $region5
    $region4: #{multi_decoder_forward.1} parent=1 // pred_region
      _
    $region5: #{multi_decoder_forward.1} parent=1 // pred_fallthru
      _
    // Predicated region
    $region6: #{multi_decoder_forward.1} parent=1 // pred_check
      _
    $region7: #{multi_decoder_forward.1} parent=1 // pred_check_branch
      %27 = sbr.rel (0) target = $region9
    $region8: #{multi_decoder_forward.1} parent=1 // pred_region
      %29 = vsyncadd [#allocation3], 0
      %s30 = sshll.u32 %s1, 4
      %s31 = int_to_ptr.hbm [resolvable:$true] %s30
      %s32 = sshll.u32 [#allocation2], 4
      %s33 = int_to_ptr.vmem [resolvable:$true] %s32
      %38 = dma.hbm_to_vmem [thread:$0]  %s31, 256, %s33, [#allocation3], 128, 128, 8
    $region9: #{multi_decoder_forward.1} parent=1 // pred_fallthru
      _
    // Predicated region
    $region10: #{multi_decoder_forward.1} parent=1 // pred_check
      _
    $region11: #{multi_decoder_forward.1} parent=1 // pred_check_branch
      %40 = sbr.rel (0) target = $region13
    $region12: #{multi_decoder_forward.1} parent=1 // pred_region
      _
    $region13: #{multi_decoder_forward.1} parent=1 // pred_fallthru
      _
    // Predicated region
    $region14: #{multi_decoder_forward.1} parent=1 // pred_check
      _
    $region15: #{multi_decoder_forward.1} parent=1 // pred_check_branch
      %42 = sbr.rel (0) target = $region17
    $region16: #{multi_decoder_forward.1} parent=1 // pred_region
      _
    $region17: #{multi_decoder_forward.1} parent=1 // pred_fallthru
      _
    // Predicated region
    $region18: #{multi_decoder_forward.1} parent=1 // pred_check
      _
    $region19: #{multi_decoder_forward.1} parent=1 // pred_check_branch
      %44 = sbr.rel (0) target = $region21
    $region20: #{multi_decoder_forward.1} parent=1 // pred_region
      %46 = vsyncadd [#allocation5], 0
      %s48 = sshll.u32 %s4, 4
      %s49 = int_to_ptr.hbm [resolvable:$true] %s48
      %s50 = sshll.u32 [#allocation4], 4
      %s51 = int_to_ptr.vmem [resolvable:$true] %s50
      %53 = dma.hbm_to_vmem [thread:$0]  %s49, 32, %s51, [#allocation5]
    $region21: #{multi_decoder_forward.1} parent=1 // pred_fallthru
      _
    // Predicated region
    $region22: #{multi_decoder_forward.1} parent=1 // pred_check
      _
    $region23: #{multi_decoder_forward.1} parent=1 // pred_check_branch
      %55 = sbr.rel (0) target = $region25
    $region24: #{multi_decoder_forward.1} parent=1 // pred_region
      %57 = vsyncadd [#allocation5], 0
      %s58 = sshll.u32 %s5, 4
      %s59 = int_to_ptr.hbm [resolvable:$true] %s58
      %s60 = sshll.u32 [#allocation6], 4
      %s61 = int_to_ptr.vmem [resolvable:$true] %s60
      %66 = dma.hbm_to_vmem [thread:$0]  %s59, 2560, %s61, [#allocation5], 128, 128, 8
    $region25: #{multi_decoder_forward.1} parent=1 // pred_fallthru
      _
    // Predicated region
    $region26: #{multi_decoder_forward.1} parent=1 // pred_check
      _
    $region27: #{multi_decoder_forward.1} parent=1 // pred_check_branch
      %68 = sbr.rel (0) target = $region29
    $region28: #{multi_decoder_forward.1} parent=1 // pred_region
      %70 = vsyncadd [#allocation8], 0
      %s71 = sshll.u32 %s6, 4
      %s72 = int_to_ptr.hbm [resolvable:$true] %s71
      %s73 = sshll.u32 [#allocation7], 4
      %s74 = int_to_ptr.vmem [resolvable:$true] %s73
      %79 = dma.hbm_to_vmem [thread:$0]  %s72, 32, %s74, [#allocation8], 16, 16, 1
    $region29: #{multi_decoder_forward.1} parent=1 // pred_fallthru
      _
    // Predicated region
    $region30: #{multi_decoder_forward.1} parent=1 // pred_check
      _
    $region31: #{multi_decoder_forward.1} parent=1 // pred_check_branch
      %81 = sbr.rel (0) target = $region33
    $region32: #{multi_decoder_forward.1} parent=1 // pred_region
      _
    $region33: #{multi_decoder_forward.1} parent=1 // pred_fallthru
      _
    // Predicated region
    $region34: #{multi_decoder_forward.1} parent=1 // pred_check
      _
    $region35: #{multi_decoder_forward.1} parent=1 // pred_check_branch
      %83 = sbr.rel (0) target = $region37
    $region36: #{multi_decoder_forward.1} parent=1 // pred_region
      _
    $region37: #{multi_decoder_forward.1} parent=1 // pred_fallthru
      _
    // Predicated region
    $region38: #{multi_decoder_forward.1} parent=1 // pred_check
      _
    $region39: #{multi_decoder_forward.1} parent=1 // pred_check_branch
      %85 = sbr.rel (0) target = $region41
    $region40: #{multi_decoder_forward.1} parent=1 // pred_region
      %87 = vsyncadd [#allocation8], 0
      %s88 = sshll.u32 %s9, 4
      %s89 = int_to_ptr.hbm [resolvable:$true] %s88
      %s90 = sshll.u32 [#allocation9], 4
      %s91 = int_to_ptr.vmem [resolvable:$true] %s90
      %96 = dma.hbm_to_vmem [thread:$0]  %s89, 512, %s91, [#allocation8], 128, 128, 8
    $region41: #{multi_decoder_forward.1} parent=1 // pred_fallthru
      _
    // Predicated region
    $region42: #{multi_decoder_forward.1} parent=1 // pred_check
      _
    $region43: #{multi_decoder_forward.1} parent=1 // pred_check_branch
      %98 = sbr.rel (0) target = $region45
    $region44: #{multi_decoder_forward.1} parent=1 // pred_region
      %100 = vsyncadd [#allocation11], 0
      %s102 = sshll.u32 %s10, 4
      %s103 = int_to_ptr.hbm [resolvable:$true] %s102
      %s104 = sshll.u32 [#allocation10], 4
      %s105 = int_to_ptr.vmem [resolvable:$true] %s104
      %107 = dma.hbm_to_vmem [thread:$0]  %s103, 32, %s105, [#allocation11]
    $region45: #{multi_decoder_forward.1} parent=1 // pred_fallthru
      _
    // Predicated region
    $region46: #{multi_decoder_forward.1} parent=1 // pred_check
      _
    $region47: #{multi_decoder_forward.1} parent=1 // pred_check_branch
      %109 = sbr.rel (0) target = $region49
    $region48: #{multi_decoder_forward.1} parent=1 // pred_region
      _
    $region49: #{multi_decoder_forward.1} parent=1 // pred_fallthru
      _
    // Predicated region
    $region50: #{multi_decoder_forward.1} parent=1 // pred_check
      _
    $region51: #{multi_decoder_forward.1} parent=1 // pred_check_branch
      %111 = sbr.rel (0) target = $region53
    $region52: #{multi_decoder_forward.1} parent=1 // pred_region
      _
    $region53: #{multi_decoder_forward.1} parent=1 // pred_fallthru
      _
    // Predicated region
    $region54: #{multi_decoder_forward.1} parent=1 // pred_check
      _
    $region55: #{multi_decoder_forward.1} parent=1 // pred_check_branch
      %113 = sbr.rel (0) target = $region57
    $region56: #{multi_decoder_forward.1} parent=1 // pred_region
      %115 = dma.done [#allocation3], 256
    $region57: #{multi_decoder_forward.1} parent=1 // pred_fallthru
      _
    // Predicated region
    $region58: #{multi_decoder_forward.1} parent=1 // pred_check
      _
    $region59: #{multi_decoder_forward.1} parent=1 // pred_check_branch
      %117 = sbr.rel (0) target = $region61
    $region60: #{multi_decoder_forward.1} parent=1 // pred_region
      %119 = dma.done [#allocation5], 32
    $region61: #{multi_decoder_forward.1} parent=1 // pred_fallthru
      _
    // Predicated region
    $region62: #{multi_decoder_forward.1} parent=1 // pred_check
      _
    $region63: #{multi_decoder_forward.1} parent=1 // pred_check_branch
      %121 = sbr.rel (0) target = $region65
    $region64: #{multi_decoder_forward.1} parent=1 // pred_region
      %123 = dma.done [#allocation5], 2560
    $region65: #{multi_decoder_forward.1} parent=1 // pred_fallthru
      _
    // Predicated region
    $region66: #{multi_decoder_forward.1} parent=1 // pred_check
      _
    $region67: #{multi_decoder_forward.1} parent=1 // pred_check_branch
      %125 = sbr.rel (0) target = $region69
    $region68: #{multi_decoder_forward.1} parent=1 // pred_region
      %127 = dma.done [#allocation8], 32
    $region69: #{multi_decoder_forward.1} parent=1 // pred_fallthru
      _
    // Predicated region
    $region70: #{multi_decoder_forward.1} parent=1 // pred_check
      _
    $region71: #{multi_decoder_forward.1} parent=1 // pred_check_branch
      %129 = sbr.rel (0) target = $region73
    $region72: #{multi_decoder_forward.1} parent=1 // pred_region
      %131 = dma.done [#allocation8], 512
    $region73: #{multi_decoder_forward.1} parent=1 // pred_fallthru
      _
    // Predicated region
    $region74: #{multi_decoder_forward.1} parent=1 // pred_check
      _
    $region75: #{multi_decoder_forward.1} parent=1 // pred_check_branch
      %133 = sbr.rel (0) target = $region77
    $region76: #{multi_decoder_forward.1} parent=1 // pred_region
      %135 = dma.done [#allocation11], 32
    $region77: #{multi_decoder_forward.1} parent=1 // pred_fallthru
      _
    %v136 = vld [vmem:[%s0] sm:$0x3]
    %v137 = vld [vmem:[#allocation2] sm:$0xff]
    %v138 = vld [vmem:[#allocation2 + $0x8] sm:$0xff]
    %v139 = vld [vmem:[%s2] sm:$0x3]
    %v140 = vld [vmem:[#allocation4] sm:$0x3]
    %v141 = vld [vmem:[%s7] sm:$0xff]
    %v142 = vld [vmem:[%s7 + $0x8] sm:$0xff]
    %v143 = vld [vmem:[%s7 + $0x10] sm:$0xff]
    %v144 = vld [vmem:[%s7 + $0x18] sm:$0xff]
    %v145 = vld [vmem:[%s7 + $0x20] sm:$0xff]
    %v146 = vld [vmem:[%s7 + $0x28] sm:$0xff]
    %v147 = vld [vmem:[%s7 + $0x30] sm:$0xff]
    %v148 = vld [vmem:[%s7 + $0x38] sm:$0xff]
    %v149 = vld [vmem:[%s8] sm:$0x1]
    %v150 = vld [vmem:[#allocation9] sm:$0xff]
    %v151 = vld [vmem:[#allocation9 + $0x8] sm:$0xff]
    %v152 = vld [vmem:[#allocation9 + $0x10] sm:$0xff]
    %v153 = vld [vmem:[#allocation9 + $0x18] sm:$0xff]
    %v154 = vld [vmem:[#allocation10] sm:$0x3]
    %v155 = vld [vmem:[%s11] sm:$0x3f]
    %v156 = vld [vmem:[%s12] sm:$0xff]
    %v157 = vld [vmem:[%s12 + $0x8] sm:$0xff]
    %v158 = vld [vmem:[%s12 + $0x10] sm:$0xff]
    %v159 = vld [vmem:[%s12 + $0x18] sm:$0xff]
    %v160 = vld [vmem:[%s12 + $0x20] sm:$0xff]
    %v161 = vld [vmem:[%s12 + $0x28] sm:$0xff]
    %v162 = vld [vmem:[%s12 + $0x30] sm:$0x3]
    %v163 = vperm.slane %v140, 1
    %v164 = vmul.f32 %v137, %v163
    %v165 = vmul.f32 %v138, %v163
    %vm166 = vcmask 261120
    %v167 = vsel %vm166, %v164, 0.0
    %168 = vadd.xlane.f32.xlu0 %v167
    %v169 = vpop.xlane.xlu0 %168
    %v170 = vsel %vm166, %v165, 0.0
    %171 = vadd.xlane.f32.xlu0 %v170
    %v172 = vpop.xlane.xlu0 %171
    %vm173 = vcmp.gt.f32.partialorder %v137, 0.0
    %vm174 = vcmp.gt.f32.partialorder %v138, 0.0
    %v175 = vmul.f32 %v137, 1.442695
    %v176 = vpow.pop %v175
    %v177 = vmul.f32 %v138, 1.442695
    %v178 = vpow.pop %v177
    %v179 = vsub.f32 %v176, 1.0
    %v180 = vsub.f32 %v178, 1.0
    %v181 = vmul.f32 %v179, 1.6732632
    %v182 = vmul.f32 %v180, 1.6732632
    %v183 = vsel %vm173, %v137, %v181
    %v184 = vsel %vm174, %v138, %v182
    %v185 = vmul.f32 %v183, 1.050701
    %v186 = vmul.f32 %v184, 1.050701
    %v187 = vperm.slane %v154, 0
    %v189 = vsel %vm166, %v185, 0
    %v192 = vsel %vm166, %v186, 0
    %194 = vmatpush.msra.mxu0 0.0
    %195 = vmatpush.msra.mxu0 0.0
    %196 = vmatpush.msra.mxu0 0.0
    %197 = vmatpush.msra.mxu0 0.0
    %198 = vmatpush.msra.mxu0 0.0
    %199 = vmatpush.msra.mxu0 0.0
    %200 = vmatpush.msra.mxu0 0.0
    %201 = vmatpush.msra.mxu0 0.0
    %202 = vmatpush.msra.mxu0 0.0
    %203 = vmatpush.msra.mxu0 0.0
    %204 = vmatpush.msra.mxu0 0.0
    %205 = vmatpush.msra.mxu0 0.0
    %206 = vmatpush.msra.mxu0 %v153
    %207 = vmatpush.msra.mxu0 %v152
    %208 = vmatpush.msra.mxu0 %v151
    %209 = vmatpush.msra.mxu0 %v150
    %210 = vmatmul.f32.gmra.mxu0 %v189
    %v211 = vpop.f32.mrf.mxu0
    %v212 = vadd.f32 %v187, %v211
    %213 = vmatmul.f32.gmra.mxu0 %v192
    %v214 = vpop.f32.mrf.mxu0
    %v215 = vadd.f32 %v187, %v214
    %216 = vdwg.mxu0
    %v217 = vlaneseq
    %v218 = vand.u32 %v217, 127
    %v219 = vld [vmem:[%s3] sm:$0x3]
    %v220 = vld [vmem:[#allocation6] sm:$0xff]
    %v221 = vld [vmem:[#allocation6 + $0x8] sm:$0xff]
    %v222 = vld [vmem:[#allocation6 + $0x10] sm:$0xff]
    %v223 = vld [vmem:[#allocation6 + $0x18] sm:$0xff]
    %v224 = vld [vmem:[#allocation6 + $0x20] sm:$0xff]
    %v225 = vld [vmem:[#allocation6 + $0x28] sm:$0xff]
    %v226 = vld [vmem:[#allocation6 + $0x30] sm:$0xff]
    %v227 = vld [vmem:[#allocation6 + $0x38] sm:$0xff]
    %v228 = vld [vmem:[#allocation6 + $0x40] sm:$0xff]
    %v229 = vld [vmem:[#allocation6 + $0x48] sm:$0xff]
    %v230 = vld [vmem:[#allocation7] sm:$0x1]
    %v231 = vadd.f32 %v139, 0.0
    %v232 = vmul.f32 %v231, 0.5
    %v233 = vperm.slane %v140, 0
    %v234 = vmul.f32 %v232, %v233
    %vm235 = vcmask 254976
    %v236 = vsel %vm235, %v234, 0.0
    %237 = vadd.xlane.f32.xlu0 %v236
    %v238 = vpop.xlane.xlu0 %237
    %v240 = vperm.slane %v238, 0
    %v241 = vperm.slane %v238, 1
    %v244 = vadd.f32 %v169, %v240
    %v245 = vadd.f32 %v172, %v241
    %248 = vset.pattern.permute.xlu0 0
    %249 = vperm.xlu0 %248, %v244
    %v250 = vpop.permute.xlu0 %249
    %251 = vset.pattern.permute.xlu0 0
    %252 = vperm.xlu0 %251, %v245
    %v253 = vpop.permute.xlu0 %252
    %v254 = vperm.slane %v250, %v218
    %v255 = vperm.slane %v253, %v218
    %vm256 = vcmask 1041409
    %v257 = vsel %vm256, %v255, %v254
    %vm259 = vcmask 58368
    %v260 = vsel %vm259, %v257, -inf
    %261 = vmax.xlane.f32.xlu0 %v260
    %v262 = vpop.xlane.xlu0 %261
    %v264 = vperm.slane %v262, 0
    %v265 = vperm.slane %v262, 1
    %v268 = vsub.f32 %v244, %v264
    %v269 = vsub.f32 %v245, %v265
    %v270 = vmul.f32 %v268, 1.442695
    %v271 = vpow.pop %v270
    %v272 = vmul.f32 %v269, 1.442695
    %v273 = vpow.pop %v272
    %276 = vset.pattern.permute.xlu0 0
    %277 = vperm.xlu0 %276, %v271
    %v278 = vpop.permute.xlu0 %277
    %279 = vset.pattern.permute.xlu0 0
    %280 = vperm.xlu0 %279, %v273
    %v281 = vpop.permute.xlu0 %280
    %v282 = vperm.slane %v278, %v218
    %v283 = vperm.slane %v281, %v218
    %v284 = vsel %vm256, %v283, %v282
    %v286 = vsel %vm259, %v284, 0.0
    %287 = vadd.xlane.f32.xlu0 %v286
    %v288 = vpop.xlane.xlu0 %287
    %v290 = vperm.slane %v288, 0
    %v291 = vperm.slane %v288, 1
    %v294 = vrcp.pop %v290
    %v295 = vmul.f32 %v290, %v294
    %v296 = vsub.f32 1.0, %v295
    %v297 = vmul.f32 %v294, %v296
    %v298 = vadd.f32 %v294, %v297
    %vm299 = vweird.f32 %v290
    %vm300 = vweird.f32 %v294
    %vm301 = vmor %vm299, %vm300
    %v302 = vsel %vm301, %v294, %v298
    %v303 = vand.u32 2147483647, %v290
    %vm304 = vcmp.eq.f32.partialorder %v303, 8.507059e+37
    %v305 = vand.u32 %v290, 2147483648
    %v306 = vor.u32 1.1754944e-38, %v305
    %v307 = vsel %vm304, %v306, %v302
    %v308 = vmul.f32 %v271, %v307
    %v309 = vrcp.pop %v291
    %v310 = vmul.f32 %v291, %v309
    %v311 = vsub.f32 1.0, %v310
    %v312 = vmul.f32 %v309, %v311
    %v313 = vadd.f32 %v309, %v312
    %vm314 = vweird.f32 %v291
    %vm315 = vweird.f32 %v309
    %vm316 = vmor %vm314, %vm315
    %v317 = vsel %vm316, %v309, %v313
    %v318 = vand.u32 2147483647, %v291
    %vm319 = vcmp.eq.f32.partialorder %v318, 8.507059e+37
    %v320 = vand.u32 %v291, 2147483648
    %v321 = vor.u32 1.1754944e-38, %v320
    %v322 = vsel %vm319, %v321, %v317
    %v323 = vmul.f32 %v273, %v322
    %325 = vset.pattern.permute.xlu0 0
    %326 = vperm.xlu0 %325, %v308
    %v327 = vpop.permute.xlu0 %326
    %330 = vset.pattern.permute.xlu0 0
    %331 = vperm.xlu0 %330, %v323
    %v332 = vpop.permute.xlu0 %331
    %v334 = vmul.f32 %v327, %v137
    %v335 = vmul.f32 %v332, %v138
    %v336 = vsel %vm166, %v334, 0.0
    %v337 = vrot.slane %v336, 4
    %v338 = vadd.f32 %v336, %v337
    %v339 = vrot.slane %v338, 2
    %v340 = vadd.f32 %v338, %v339
    %v341 = vrot.slane %v340, 1
    %v342 = vadd.f32 %v340, %v341
    %v343 = vsel %vm166, %v335, 0.0
    %v344 = vrot.slane %v343, 4
    %v345 = vadd.f32 %v343, %v344
    %v346 = vrot.slane %v345, 2
    %v347 = vadd.f32 %v345, %v346
    %v348 = vrot.slane %v347, 1
    %v349 = vadd.f32 %v347, %v348
    %v352 = vsel %vm256, %v349, %v342
    %353 = vrot.lane.b32.xlu0 %v352, 16
    %v354 = vpop.permute.xlu0 %353
    %357 = vrot.lane.b32.xlu0 %v232, 48
    %v358 = vpop.permute.xlu0 %357
    %vm360 = vcmask 130048
    %v361 = vsel %vm360, %v219, %v354
    %vm362 = vcmask 392192
    %v363 = vsel %vm362, %v361, %v358
    %v365 = vperm.slane %v230, 0
    %vm367 = vcmask 654336
    %v369 = vsel %vm367, %v363, 0
    %371 = vmatpush.msra.mxu0 0.0
    %372 = vmatpush.msra.mxu0 0.0
    %373 = vmatpush.msra.mxu0 0.0
    %374 = vmatpush.msra.mxu0 0.0
    %375 = vmatpush.msra.mxu0 0.0
    %376 = vmatpush.msra.mxu0 0.0
    %377 = vmatpush.msra.mxu0 %v229
    %378 = vmatpush.msra.mxu0 %v228
    %379 = vmatpush.msra.mxu0 %v227
    %380 = vmatpush.msra.mxu0 %v226
    %381 = vmatpush.msra.mxu0 %v225
    %382 = vmatpush.msra.mxu0 %v224
    %383 = vmatpush.msra.mxu0 %v223
    %384 = vmatpush.msra.mxu0 %v222
    %385 = vmatpush.msra.mxu0 %v221
    %386 = vmatpush.msra.mxu0 %v220
    %387 = vmatmul.f32.gmra.mxu0 %v369
    %v388 = vpop.f32.mrf.mxu0
    %v389 = vadd.f32 %v365, %v388
    %390 = vdwg.mxu0
    %v391 = vxor.u32 %v389, 2147483648
    %v392 = vmul.f32 %v391, 1.442695
    %v393 = vpow.pop %v392
    %v394 = vadd.f32 %v393, 1.0
    %v395 = vrcp.pop %v394
    %v396 = vmul.f32 %v394, %v395
    %v397 = vsub.f32 1.0, %v396
    %v398 = vmul.f32 %v395, %v397
    %v399 = vadd.f32 %v395, %v398
    %vm400 = vweird.f32 %v394
    %vm401 = vweird.f32 %v395
    %vm402 = vmor %vm400, %vm401
    %v403 = vsel %vm402, %v395, %v399
    %v404 = vand.u32 2147483647, %v394
    %vm405 = vcmp.eq.f32.partialorder %v404, 8.507059e+37
    %v406 = vand.u32 %v394, 2147483648
    %v407 = vor.u32 1.1754944e-38, %v406
    %v408 = vsel %vm405, %v407, %v403
    %v409 = vmul.f32 1.0, %v408
    %411 = vrot.lane.b32.xlu0 %v389, 32
    %v412 = vpop.permute.xlu0 %411
    %v414 = vmul.f32 %v409, %v412
    %416 = vrot.lane.b32.xlu0 %v414, 64
    %v417 = vpop.permute.xlu0 %416
    %v419 = vadd.f32 %v389, %v417
    %v420 = vtanh.pop %v419
    %v421 = vsub.f32 1.0, %v409
    %423 = vrot.lane.b32.xlu0 %v420, 96
    %v424 = vpop.permute.xlu0 %423
    %v426 = vmul.f32 %v421, %v424
    %427 = vrot.lane.b32.xlu0 %v232, 32
    %v428 = vpop.permute.xlu0 %427
    %v430 = vmul.f32 %v409, %v428
    %v431 = vadd.f32 %v426, %v430
    %vm432 = vcmp.gt.f32.partialorder %v431, 0.0
    %v433 = vmul.f32 %v431, 1.442695
    %v434 = vpow.pop %v433
    %v435 = vsub.f32 %v434, 1.0
    %v436 = vmul.f32 %v435, 1.6732632
    %v437 = vsel %vm432, %v431, %v436
    %v438 = vmul.f32 %v437, 1.050701
    %440 = vrot.lane.b32.xlu0 %v431, 96
    %v441 = vpop.permute.xlu0 %440
    %v443 = vsel %vm166, %v441, %v438
    %v445 = vperm.slane %v149, 0
    %vm447 = vcmask 523264
    %v449 = vsel %vm447, %v443, 0
    %451 = vmatpush.msra.mxu0 0.0
    %452 = vmatpush.msra.mxu0 0.0
    %453 = vmatpush.msra.mxu0 0.0
    %454 = vmatpush.msra.mxu0 0.0
    %455 = vmatpush.msra.mxu0 0.0
    %456 = vmatpush.msra.mxu0 0.0
    %457 = vmatpush.msra.mxu0 0.0
    %458 = vmatpush.msra.mxu0 0.0
    %459 = vmatpush.msra.mxu0 %v148
    %460 = vmatpush.msra.mxu0 %v147
    %461 = vmatpush.msra.mxu0 %v146
    %462 = vmatpush.msra.mxu0 %v145
    %463 = vmatpush.msra.mxu0 %v144
    %464 = vmatpush.msra.mxu0 %v143
    %465 = vmatpush.msra.mxu0 %v142
    %466 = vmatpush.msra.mxu0 %v141
    %467 = vmatmul.f32.gmra.mxu0 %v449
    %v468 = vpop.f32.mrf.mxu0
    %v469 = vadd.f32 %v445, %v468
    %470 = vdwg.mxu0
    %vm471 = vcmp.lt.s32.totalorder %v218, 6
    %v472 = vsel %vm471, %v469, -1e+30
    %vm473 = vcmask 1041408
    %v474 = vsel %vm473, %v472, -inf
    %475 = vmax.xlane.f32.xlu0 %v474
    %v476 = vpop.xlane.xlu0 %475
    %v477 = vsub.f32 %v472, %v476
    %v478 = vmul.f32 %v477, 1.442695
    %v479 = vpow.pop %v478
    %v480 = vsel %vm473, %v479, 0.0
    %481 = vadd.xlane.f32.xlu0 %v480
    %v482 = vpop.xlane.xlu0 %481
    %v483 = vlog2.pop %v482
    %v484 = vmul.f32 %v483, 0.6931472
    %v485 = vsub.f32 %v477, %v484
    %486 = vst [vmem:[%s13] sm:$0x3] %v485
    %vm487 = vcmp.eq.f32.partialorder %v472, %v476
    %v488 = vsel %vm487, %v218, 128
    %v489 = vsel %vm473, %v488, 2147483647
    %v490 = vand.u32 %v489, 65535
    %v491 = vshra.s32 %v489, 16
    %v492 = vcvt.s32.f32 %v490
    %v493 = vcvt.s32.f32 %v491
    %494 = vmin.xlane.f32.xlu0 %v493
    %v495 = vpop.xlane.xlu0 %494
    %vm496 = vcmp.eq.f32.partialorder %v493, %v495
    %v497 = vsel %vm496, %v492, inf
    %498 = vmin.xlane.f32.xlu0 %v497
    %v499 = vpop.xlane.xlu0 %498
    %v500 = vcvt.f32.s32 %v499
    %v501 = vcvt.f32.s32 %v495
    %v502 = vshll.u32 %v501, 16
    %v503 = vadd.s32 %v502, %v500
    %vm504 = vcmp.eq.s32.totalorder %v218, %v503
    %v505 = vsel %vm504, 1, 0
    %v506 = vcvt.s32.f32 %v505
    %vm507 = vcmask 48128
    %v509 = vsel %vm507, %v506, 0
    %vm511 = vcmask 1045504
    %v513 = vsel %vm511, %v155, 0
    %515 = vmatpush.msra.mxu0 0.0
    %516 = vmatpush.msra.mxu0 0.0
    %517 = vmatpush.msra.mxu0 0.0
    %518 = vmatpush.msra.mxu0 0.0
    %519 = vmatpush.msra.mxu0 0.0
    %520 = vmatpush.msra.mxu0 0.0
    %521 = vmatpush.msra.mxu0 0.0
    %522 = vmatpush.msra.mxu0 0.0
    %523 = vmatpush.msra.mxu0 0.0
    %524 = vmatpush.msra.mxu0 0.0
    %525 = vmatpush.msra.mxu0 0.0
    %526 = vmatpush.msra.mxu0 0.0
    %527 = vmatpush.msra.mxu0 0.0
    %528 = vmatpush.msra.mxu0 0.0
    %529 = vmatpush.msra.mxu0 0.0
    %530 = vmatpush.msra.mxu0 %v513
    %531 = vmatmul.f32.gmra.mxu0 %v509
    %v532 = vpop.f32.mrf.mxu0
    %v533 = vadd.f32 0.0, %v532
    %534 = vdwg.mxu0
    %536 = vrot.lane.b32.xlu0 %v233, 32
    %v537 = vpop.permute.xlu0 %536
    %v539 = vmul.f32 %v431, %v537
    %541 = vrot.lane.b32.xlu0 %v539, 96
    %v542 = vpop.permute.xlu0 %541
    %v544 = vsel %vm235, %v542, 0.0
    %545 = vadd.xlane.f32.xlu0 %v544
    %v546 = vpop.xlane.xlu0 %545
    %v548 = vperm.slane %v546, 0
    %v549 = vperm.slane %v546, 1
    %v552 = vadd.f32 %v169, %v548
    %v553 = vadd.f32 %v172, %v549
    %556 = vset.pattern.permute.xlu0 0
    %557 = vperm.xlu0 %556, %v552
    %v558 = vpop.permute.xlu0 %557
    %559 = vset.pattern.permute.xlu0 0
    %560 = vperm.xlu0 %559, %v553
    %v561 = vpop.permute.xlu0 %560
    %v562 = vperm.slane %v558, %v218
    %v563 = vperm.slane %v561, %v218
    %v564 = vsel %vm256, %v563, %v562
    %v566 = vsel %vm259, %v564, -inf
    %567 = vmax.xlane.f32.xlu0 %v566
    %v568 = vpop.xlane.xlu0 %567
    %v570 = vperm.slane %v568, 0
    %v571 = vperm.slane %v568, 1
    %v574 = vsub.f32 %v552, %v570
    %v575 = vsub.f32 %v553, %v571
    %v576 = vmul.f32 %v574, 1.442695
    %v577 = vpow.pop %v576
    %v578 = vmul.f32 %v575, 1.442695
    %v579 = vpow.pop %v578
    %582 = vset.pattern.permute.xlu0 0
    %583 = vperm.xlu0 %582, %v577
    %v584 = vpop.permute.xlu0 %583
    %585 = vset.pattern.permute.xlu0 0
    %586 = vperm.xlu0 %585, %v579
    %v587 = vpop.permute.xlu0 %586
    %v588 = vperm.slane %v584, %v218
    %v589 = vperm.slane %v587, %v218
    %v590 = vsel %vm256, %v589, %v588
    %v592 = vsel %vm259, %v590, 0.0
    %593 = vadd.xlane.f32.xlu0 %v592
    %v594 = vpop.xlane.xlu0 %593
    %v596 = vperm.slane %v594, 0
    %v597 = vperm.slane %v594, 1
    %v600 = vrcp.pop %v596
    %v601 = vmul.f32 %v596, %v600
    %v602 = vsub.f32 1.0, %v601
    %v603 = vmul.f32 %v600, %v602
    %v604 = vadd.f32 %v600, %v603
    %vm605 = vweird.f32 %v596
    %vm606 = vweird.f32 %v600
    %vm607 = vmor %vm605, %vm606
    %v608 = vsel %vm607, %v600, %v604
    %v609 = vand.u32 2147483647, %v596
    %vm610 = vcmp.eq.f32.partialorder %v609, 8.507059e+37
    %v611 = vand.u32 %v596, 2147483648
    %v612 = vor.u32 1.1754944e-38, %v611
    %v613 = vsel %vm610, %v612, %v608
    %v614 = vmul.f32 %v577, %v613
    %v615 = vrcp.pop %v597
    %v616 = vmul.f32 %v597, %v615
    %v617 = vsub.f32 1.0, %v616
    %v618 = vmul.f32 %v615, %v617
    %v619 = vadd.f32 %v615, %v618
    %vm620 = vweird.f32 %v597
    %vm621 = vweird.f32 %v615
    %vm622 = vmor %vm620, %vm621
    %v623 = vsel %vm622, %v615, %v619
    %v624 = vand.u32 2147483647, %v597
    %vm625 = vcmp.eq.f32.partialorder %v624, 8.507059e+37
    %v626 = vand.u32 %v597, 2147483648
    %v627 = vor.u32 1.1754944e-38, %v626
    %v628 = vsel %vm625, %v627, %v623
    %v629 = vmul.f32 %v579, %v628
    %631 = vset.pattern.permute.xlu0 0
    %632 = vperm.xlu0 %631, %v614
    %v633 = vpop.permute.xlu0 %632
    %636 = vset.pattern.permute.xlu0 0
    %637 = vperm.xlu0 %636, %v629
    %v638 = vpop.permute.xlu0 %637
    %v640 = vmul.f32 %v633, %v137
    %v641 = vmul.f32 %v638, %v138
    %v642 = vsel %vm166, %v640, 0.0
    %v643 = vrot.slane %v642, 4
    %v644 = vadd.f32 %v642, %v643
    %v645 = vrot.slane %v644, 2
    %v646 = vadd.f32 %v644, %v645
    %v647 = vrot.slane %v646, 1
    %v648 = vadd.f32 %v646, %v647
    %v649 = vsel %vm166, %v641, 0.0
    %v650 = vrot.slane %v649, 4
    %v651 = vadd.f32 %v649, %v650
    %v652 = vrot.slane %v651, 2
    %v653 = vadd.f32 %v651, %v652
    %v654 = vrot.slane %v653, 1
    %v655 = vadd.f32 %v653, %v654
    %v658 = vsel %vm256, %v655, %v648
    %659 = vrot.lane.b32.xlu0 %v658, 16
    %v660 = vpop.permute.xlu0 %659
    %662 = vrot.lane.b32.xlu0 %v431, 16
    %v663 = vpop.permute.xlu0 %662
    %v665 = vsel %vm360, %v533, %v660
    %v666 = vsel %vm362, %v665, %v663
    %v668 = vsel %vm367, %v666, 0
    %670 = vmatpush.msra.mxu0 0.0
    %671 = vmatpush.msra.mxu0 0.0
    %672 = vmatpush.msra.mxu0 0.0
    %673 = vmatpush.msra.mxu0 0.0
    %674 = vmatpush.msra.mxu0 0.0
    %675 = vmatpush.msra.mxu0 0.0
    %676 = vmatpush.msra.mxu0 %v229
    %677 = vmatpush.msra.mxu0 %v228
    %678 = vmatpush.msra.mxu0 %v227
    %679 = vmatpush.msra.mxu0 %v226
    %680 = vmatpush.msra.mxu0 %v225
    %681 = vmatpush.msra.mxu0 %v224
    %682 = vmatpush.msra.mxu0 %v223
    %683 = vmatpush.msra.mxu0 %v222
    %684 = vmatpush.msra.mxu0 %v221
    %685 = vmatpush.msra.mxu0 %v220
    %686 = vmatmul.f32.gmra.mxu0 %v668
    %v687 = vpop.f32.mrf.mxu0
    %v688 = vadd.f32 %v365, %v687
    %689 = vdwg.mxu0
    %v690 = vxor.u32 %v688, 2147483648
    %v691 = vmul.f32 %v690, 1.442695
    %v692 = vpow.pop %v691
    %v693 = vadd.f32 %v692, 1.0
    %v694 = vrcp.pop %v693
    %v695 = vmul.f32 %v693, %v694
    %v696 = vsub.f32 1.0, %v695
    %v697 = vmul.f32 %v694, %v696
    %v698 = vadd.f32 %v694, %v697
    %vm699 = vweird.f32 %v693
    %vm700 = vweird.f32 %v694
    %vm701 = vmor %vm699, %vm700
    %v702 = vsel %vm701, %v694, %v698
    %v703 = vand.u32 2147483647, %v693
    %vm704 = vcmp.eq.f32.partialorder %v703, 8.507059e+37
    %v705 = vand.u32 %v693, 2147483648
    %v706 = vor.u32 1.1754944e-38, %v705
    %v707 = vsel %vm704, %v706, %v702
    %v708 = vmul.f32 1.0, %v707
    %710 = vrot.lane.b32.xlu0 %v688, 32
    %v711 = vpop.permute.xlu0 %710
    %v713 = vmul.f32 %v708, %v711
    %715 = vrot.lane.b32.xlu0 %v713, 64
    %v716 = vpop.permute.xlu0 %715
    %v718 = vadd.f32 %v688, %v716
    %v719 = vtanh.pop %v718
    %v720 = vsub.f32 1.0, %v708
    %722 = vrot.lane.b32.xlu0 %v719, 96
    %v723 = vpop.permute.xlu0 %722
    %v725 = vmul.f32 %v720, %v723
    %v726 = vmul.f32 %v708, %v431
    %v727 = vadd.f32 %v725, %v726
    %vm728 = vcmp.gt.f32.partialorder %v727, 0.0
    %v729 = vmul.f32 %v727, 1.442695
    %v730 = vpow.pop %v729
    %v731 = vsub.f32 %v730, 1.0
    %v732 = vmul.f32 %v731, 1.6732632
    %v733 = vsel %vm728, %v727, %v732
    %v734 = vmul.f32 %v733, 1.050701
    %736 = vrot.lane.b32.xlu0 %v727, 96
    %v737 = vpop.permute.xlu0 %736
    %v739 = vsel %vm166, %v737, %v734
    %v741 = vsel %vm447, %v739, 0
    %743 = vmatpush.msra.mxu0 0.0
    %744 = vmatpush.msra.mxu0 0.0
    %745 = vmatpush.msra.mxu0 0.0
    %746 = vmatpush.msra.mxu0 0.0
    %747 = vmatpush.msra.mxu0 0.0
    %748 = vmatpush.msra.mxu0 0.0
    %749 = vmatpush.msra.mxu0 0.0
    %750 = vmatpush.msra.mxu0 0.0
    %751 = vmatpush.msra.mxu0 %v148
    %752 = vmatpush.msra.mxu0 %v147
    %753 = vmatpush.msra.mxu0 %v146
    %754 = vmatpush.msra.mxu0 %v145
    %755 = vmatpush.msra.mxu0 %v144
    %756 = vmatpush.msra.mxu0 %v143
    %757 = vmatpush.msra.mxu0 %v142
    %758 = vmatpush.msra.mxu0 %v141
    %759 = vmatmul.f32.gmra.mxu0 %v741
    %v760 = vpop.f32.mrf.mxu0
    %v761 = vadd.f32 %v445, %v760
    %762 = vdwg.mxu0
    %v764 = vrot.slane %v761, 1
    %v765 = vperm.slane %v761, 0
    %v766 = vperm.slane %v764, 0
    %771 = vrot.lane.b32.xlu0 %v212, 6
    %v772 = vpop.permute.xlu0 %771
    %773 = vrot.lane.b32.xlu0 %v215, 6
    %v774 = vpop.permute.xlu0 %773
    %v777 = vadd.f32 %v765, %v772
    %v778 = vadd.f32 %v766, %v774
    %vm779 = vcmp.gt.f32.partialorder %v777, 0.0
    %vm780 = vcmp.gt.f32.partialorder %v778, 0.0
    %v781 = vmul.f32 %v777, 1.442695
    %v782 = vpow.pop %v781
    %v783 = vmul.f32 %v778, 1.442695
    %v784 = vpow.pop %v783
    %v785 = vsub.f32 %v782, 1.0
    %v786 = vsub.f32 %v784, 1.0
    %v787 = vmul.f32 %v785, 1.6732632
    %v788 = vmul.f32 %v786, 1.6732632
    %v789 = vsel %vm779, %v777, %v787
    %v790 = vsel %vm780, %v778, %v788
    %v791 = vmul.f32 %v789, 1.050701
    %v792 = vmul.f32 %v790, 1.050701
    %v793 = vperm.slane %v154, 1
    %795 = vrot.lane.b32.xlu0 %v793, 6
    %v796 = vpop.permute.xlu0 %795
    %v798 = vmul.f32 %v791, %v796
    %v799 = vmul.f32 %v792, %v796
    %802 = vrot.lane.b32.xlu0 %v798, 122
    %v803 = vpop.permute.xlu0 %802
    %804 = vrot.lane.b32.xlu0 %v799, 122
    %v805 = vpop.permute.xlu0 %804
    %vm808 = vcmask 818176
    %v809 = vsel %vm808, %v803, 0.0
    %810 = vadd.xlane.f32.xlu0 %v809
    %v811 = vpop.xlane.xlu0 %810
    %v812 = vsel %vm808, %v805, 0.0
    %813 = vadd.xlane.f32.xlu0 %v812
    %v814 = vpop.xlane.xlu0 %813
    %v816 = vrot.slane %v154, 1
    %817 = vrot.lane.b32.xlu0 %v816, 28
    %v818 = vpop.permute.xlu0 %817
    %s819 = vtos %v818
    %v820 = vstv %s819
    %v822 = vadd.f32 %v811, %v820
    %v823 = vadd.f32 %v814, %v820
    %v826 = vperm.slane %v822, %v218
    %v827 = vperm.slane %v823, %v218
    %v828 = vsel %vm256, %v827, %v826
    %830 = vrot.lane.b32.xlu0 %v761, 3
    %v831 = vpop.permute.xlu0 %830
    %vm833 = vcmask 64512
    %v834 = vsel %vm833, %v828, %v831
    %vm835 = vcmask 72704
    %v836 = vsel %vm835, %v834, -1e+30
    %v837 = vsel %vm473, %v836, -inf
    %838 = vmax.xlane.f32.xlu0 %v837
    %v839 = vpop.xlane.xlu0 %838
    %v840 = vsub.f32 %v836, %v839
    %v841 = vmul.f32 %v840, 1.442695
    %v842 = vpow.pop %v841
    %v843 = vsel %vm473, %v842, 0.0
    %844 = vadd.xlane.f32.xlu0 %v843
    %v845 = vpop.xlane.xlu0 %844
    %v846 = vlog2.pop %v845
    %v847 = vmul.f32 %v846, 0.6931472
    %v848 = vsub.f32 %v840, %v847
    %s849 = scalar_lea.vmem %s13, 2
    %850 = vst [vmem:[%s849] sm:$0x3] %v848
    %vm851 = vcmp.eq.f32.partialorder %v836, %v839
    %v852 = vsel %vm851, %v218, 128
    %v853 = vsel %vm473, %v852, 2147483647
    %v854 = vand.u32 %v853, 65535
    %v855 = vshra.s32 %v853, 16
    %v856 = vcvt.s32.f32 %v854
    %v857 = vcvt.s32.f32 %v855
    %858 = vmin.xlane.f32.xlu0 %v857
    %v859 = vpop.xlane.xlu0 %858
    %vm860 = vcmp.eq.f32.partialorder %v857, %v859
    %v861 = vsel %vm860, %v856, inf
    %862 = vmin.xlane.f32.xlu0 %v861
    %v863 = vpop.xlane.xlu0 %862
    %v864 = vcvt.f32.s32 %v863
    %v865 = vcvt.f32.s32 %v859
    %v866 = vshll.u32 %v865, 16
    %v867 = vadd.s32 %v866, %v864
    %vm868 = vcmp.lt.s32.totalorder %v867, 7
    %v869 = vsel %vm868, %v867, 7
    %vm870 = vcmp.eq.s32.totalorder %v218, %v869
    %v871 = vsel %vm870, %v136, 0
    %v872 = vsel %vm259, %v871, 0
    %v873 = vand.u32 %v872, 65535
    %v874 = vshrl.u32 %v872, 16
    %v875 = vcvt.s32.f32 %v873
    %v876 = vcvt.s32.f32 %v874
    %877 = vadd.xlane.f32.xlu0 %v875
    %v878 = vpop.xlane.xlu0 %877
    %879 = vadd.xlane.f32.xlu0 %v876
    %v880 = vpop.xlane.xlu0 %879
    %v881 = vcvt.f32.s32 %v878
    %v882 = vcvt.f32.s32 %v880
    %v883 = vshll.u32 %v882, 16
    %v884 = vadd.s32 %v883, %v881
    %vm885 = vcmp.eq.s32.totalorder %v218, %v884
    %v886 = vsel %vm885, 1, 0
    %v887 = vcvt.s32.f32 %v886
    %vm888 = vcmask 408576
    %v890 = vsel %vm888, %v887, 0
    %v893 = vsel %vm473, %v162, 0
    %895 = vmatpush.msra.mxu0 0.0
    %896 = vmatpush.msra.mxu0 0.0
    %897 = vmatpush.msra.mxu0 0.0
    %898 = vmatpush.msra.mxu0 0.0
    %899 = vmatpush.msra.mxu0 0.0
    %900 = vmatpush.msra.mxu0 0.0
    %901 = vmatpush.msra.mxu0 0.0
    %902 = vmatpush.msra.mxu0 0.0
    %903 = vmatpush.msra.mxu0 0.0
    %904 = vmatpush.msra.mxu0 %v893
    %905 = vmatpush.msra.mxu0 %v161
    %906 = vmatpush.msra.mxu0 %v160
    %907 = vmatpush.msra.mxu0 %v159
    %908 = vmatpush.msra.mxu0 %v158
    %909 = vmatpush.msra.mxu0 %v157
    %910 = vmatpush.msra.mxu0 %v156
    %911 = vmatmul.f32.gmra.mxu0 %v890
    %v912 = vpop.f32.mrf.mxu0
    %v913 = vadd.f32 0.0, %v912
    %914 = vdwg.mxu0
    %v915 = vmul.f32 %v727, %v537
    %917 = vrot.lane.b32.xlu0 %v915, 96
    %v918 = vpop.permute.xlu0 %917
    %v920 = vsel %vm235, %v918, 0.0
    %921 = vadd.xlane.f32.xlu0 %v920
    %v922 = vpop.xlane.xlu0 %921
    %v924 = vperm.slane %v922, 0
    %v925 = vperm.slane %v922, 1
    %v928 = vadd.f32 %v169, %v924
    %v929 = vadd.f32 %v172, %v925
    %932 = vset.pattern.permute.xlu0 0
    %933 = vperm.xlu0 %932, %v928
    %v934 = vpop.permute.xlu0 %933
    %935 = vset.pattern.permute.xlu0 0
    %936 = vperm.xlu0 %935, %v929
    %v937 = vpop.permute.xlu0 %936
    %v938 = vperm.slane %v934, %v218
    %v939 = vperm.slane %v937, %v218
    %v940 = vsel %vm256, %v939, %v938
    %v942 = vsel %vm259, %v940, -inf
    %943 = vmax.xlane.f32.xlu0 %v942
    %v944 = vpop.xlane.xlu0 %943
    %v946 = vperm.slane %v944, 0
    %v947 = vperm.slane %v944, 1
    %v950 = vsub.f32 %v928, %v946
    %v951 = vsub.f32 %v929, %v947
    %v952 = vmul.f32 %v950, 1.442695
    %v953 = vpow.pop %v952
    %v954 = vmul.f32 %v951, 1.442695
    %v955 = vpow.pop %v954
    %958 = vset.pattern.permute.xlu0 0
    %959 = vperm.xlu0 %958, %v953
    %v960 = vpop.permute.xlu0 %959
    %961 = vset.pattern.permute.xlu0 0
    %962 = vperm.xlu0 %961, %v955
    %v963 = vpop.permute.xlu0 %962
    %v964 = vperm.slane %v960, %v218
    %v965 = vperm.slane %v963, %v218
    %v966 = vsel %vm256, %v965, %v964
    %v968 = vsel %vm259, %v966, 0.0
    %969 = vadd.xlane.f32.xlu0 %v968
    %v970 = vpop.xlane.xlu0 %969
    %v972 = vperm.slane %v970, 0
    %v973 = vperm.slane %v970, 1
    %v976 = vrcp.pop %v972
    %v977 = vmul.f32 %v972, %v976
    %v978 = vsub.f32 1.0, %v977
    %v979 = vmul.f32 %v976, %v978
    %v980 = vadd.f32 %v976, %v979
    %vm981 = vweird.f32 %v972
    %vm982 = vweird.f32 %v976
    %vm983 = vmor %vm981, %vm982
    %v984 = vsel %vm983, %v976, %v980
    %v985 = vand.u32 2147483647, %v972
    %vm986 = vcmp.eq.f32.partialorder %v985, 8.507059e+37
    %v987 = vand.u32 %v972, 2147483648
    %v988 = vor.u32 1.1754944e-38, %v987
    %v989 = vsel %vm986, %v988, %v984
    %v990 = vmul.f32 %v953, %v989
    %v991 = vrcp.pop %v973
    %v992 = vmul.f32 %v973, %v991
    %v993 = vsub.f32 1.0, %v992
    %v994 = vmul.f32 %v991, %v993
    %v995 = vadd.f32 %v991, %v994
    %vm996 = vweird.f32 %v973
    %vm997 = vweird.f32 %v991
    %vm998 = vmor %vm996, %vm997
    %v999 = vsel %vm998, %v991, %v995
    %v1000 = vand.u32 2147483647, %v973
    %vm1001 = vcmp.eq.f32.partialorder %v1000, 8.507059e+37
    %v1002 = vand.u32 %v973, 2147483648
    %v1003 = vor.u32 1.1754944e-38, %v1002
    %v1004 = vsel %vm1001, %v1003, %v999
    %v1005 = vmul.f32 %v955, %v1004
    %1007 = vset.pattern.permute.xlu0 0
    %1008 = vperm.xlu0 %1007, %v990
    %v1009 = vpop.permute.xlu0 %1008
    %1012 = vset.pattern.permute.xlu0 0
    %1013 = vperm.xlu0 %1012, %v1005
    %v1014 = vpop.permute.xlu0 %1013
    %v1016 = vmul.f32 %v1009, %v137
    %v1017 = vmul.f32 %v1014, %v138
    %v1018 = vsel %vm166, %v1016, 0.0
    %v1019 = vrot.slane %v1018, 4
    %v1020 = vadd.f32 %v1018, %v1019
    %v1021 = vrot.slane %v1020, 2
    %v1022 = vadd.f32 %v1020, %v1021
    %v1023 = vrot.slane %v1022, 1
    %v1024 = vadd.f32 %v1022, %v1023
    %v1025 = vsel %vm166, %v1017, 0.0
    %v1026 = vrot.slane %v1025, 4
    %v1027 = vadd.f32 %v1025, %v1026
    %v1028 = vrot.slane %v1027, 2
    %v1029 = vadd.f32 %v1027, %v1028
    %v1030 = vrot.slane %v1029, 1
    %v1031 = vadd.f32 %v1029, %v1030
    %v1034 = vsel %vm256, %v1031, %v1024
    %1035 = vrot.lane.b32.xlu0 %v1034, 16
    %v1036 = vpop.permute.xlu0 %1035
    %1038 = vrot.lane.b32.xlu0 %v727, 16
    %v1039 = vpop.permute.xlu0 %1038
    %v1041 = vsel %vm360, %v913, %v1036
    %v1042 = vsel %vm362, %v1041, %v1039
    %v1044 = vsel %vm367, %v1042, 0
    %1046 = vmatpush.msra.mxu0 0.0
    %1047 = vmatpush.msra.mxu0 0.0
    %1048 = vmatpush.msra.mxu0 0.0
    %1049 = vmatpush.msra.mxu0 0.0
    %1050 = vmatpush.msra.mxu0 0.0
    %1051 = vmatpush.msra.mxu0 0.0
    %1052 = vmatpush.msra.mxu0 %v229
    %1053 = vmatpush.msra.mxu0 %v228
    %1054 = vmatpush.msra.mxu0 %v227
    %1055 = vmatpush.msra.mxu0 %v226
    %1056 = vmatpush.msra.mxu0 %v225
    %1057 = vmatpush.msra.mxu0 %v224
    %1058 = vmatpush.msra.mxu0 %v223
    %1059 = vmatpush.msra.mxu0 %v222
    %1060 = vmatpush.msra.mxu0 %v221
    %1061 = vmatpush.msra.mxu0 %v220
    %1062 = vmatmul.f32.gmra.mxu0 %v1044
    %v1063 = vpop.f32.mrf.mxu0
    %v1064 = vadd.f32 %v365, %v1063
    %1065 = vdwg.mxu0
    %v1066 = vxor.u32 %v1064, 2147483648
    %v1067 = vmul.f32 %v1066, 1.442695
    %v1068 = vpow.pop %v1067
    %v1069 = vadd.f32 %v1068, 1.0
    %v1070 = vrcp.pop %v1069
    %v1071 = vmul.f32 %v1069, %v1070
    %v1072 = vsub.f32 1.0, %v1071
    %v1073 = vmul.f32 %v1070, %v1072
    %v1074 = vadd.f32 %v1070, %v1073
    %vm1075 = vweird.f32 %v1069
    %vm1076 = vweird.f32 %v1070
    %vm1077 = vmor %vm1075, %vm1076
    %v1078 = vsel %vm1077, %v1070, %v1074
    %v1079 = vand.u32 2147483647, %v1069
    %vm1080 = vcmp.eq.f32.partialorder %v1079, 8.507059e+37
    %v1081 = vand.u32 %v1069, 2147483648
    %v1082 = vor.u32 1.1754944e-38, %v1081
    %v1083 = vsel %vm1080, %v1082, %v1078
    %v1084 = vmul.f32 1.0, %v1083
    %1086 = vrot.lane.b32.xlu0 %v1064, 32
    %v1087 = vpop.permute.xlu0 %1086
    %v1089 = vmul.f32 %v1084, %v1087
    %1091 = vrot.lane.b32.xlu0 %v1089, 64
    %v1092 = vpop.permute.xlu0 %1091
    %v1094 = vadd.f32 %v1064, %v1092
    %v1095 = vtanh.pop %v1094
    %v1096 = vsub.f32 1.0, %v1084
    %1098 = vrot.lane.b32.xlu0 %v1095, 96
    %v1099 = vpop.permute.xlu0 %1098
    %v1101 = vmul.f32 %v1096, %v1099
    %v1102 = vmul.f32 %v1084, %v727
    %v1103 = vadd.f32 %v1101, %v1102
    %vm1104 = vcmp.gt.f32.partialorder %v1103, 0.0
    %v1105 = vmul.f32 %v1103, 1.442695
    %v1106 = vpow.pop %v1105
    %v1107 = vsub.f32 %v1106, 1.0
    %v1108 = vmul.f32 %v1107, 1.6732632
    %v1109 = vsel %vm1104, %v1103, %v1108
    %v1110 = vmul.f32 %v1109, 1.050701
    %1112 = vrot.lane.b32.xlu0 %v1103, 96
    %v1113 = vpop.permute.xlu0 %1112
    %v1115 = vsel %vm166, %v1113, %v1110
    %v1117 = vsel %vm447, %v1115, 0
    %1119 = vmatpush.msra.mxu0 0.0
    %1120 = vmatpush.msra.mxu0 0.0
    %1121 = vmatpush.msra.mxu0 0.0
    %1122 = vmatpush.msra.mxu0 0.0
    %1123 = vmatpush.msra.mxu0 0.0
    %1124 = vmatpush.msra.mxu0 0.0
    %1125 = vmatpush.msra.mxu0 0.0
    %1126 = vmatpush.msra.mxu0 0.0
    %1127 = vmatpush.msra.mxu0 %v148
    %1128 = vmatpush.msra.mxu0 %v147
    %1129 = vmatpush.msra.mxu0 %v146
    %1130 = vmatpush.msra.mxu0 %v145
    %1131 = vmatpush.msra.mxu0 %v144
    %1132 = vmatpush.msra.mxu0 %v143
    %1133 = vmatpush.msra.mxu0 %v142
    %1134 = vmatpush.msra.mxu0 %v141
    %1135 = vmatmul.f32.gmra.mxu0 %v1117
    %v1136 = vpop.f32.mrf.mxu0
    %v1137 = vadd.f32 %v445, %v1136
    %1138 = vdwg.mxu0
    %v1140 = vrot.slane %v1137, 1
    %v1141 = vperm.slane %v1137, 0
    %v1142 = vperm.slane %v1140, 0
    %v1145 = vadd.f32 %v1141, %v772
    %v1146 = vadd.f32 %v1142, %v774
    %vm1147 = vcmp.gt.f32.partialorder %v1145, 0.0
    %vm1148 = vcmp.gt.f32.partialorder %v1146, 0.0
    %v1149 = vmul.f32 %v1145, 1.442695
    %v1150 = vpow.pop %v1149
    %v1151 = vmul.f32 %v1146, 1.442695
    %v1152 = vpow.pop %v1151
    %v1153 = vsub.f32 %v1150, 1.0
    %v1154 = vsub.f32 %v1152, 1.0
    %v1155 = vmul.f32 %v1153, 1.6732632
    %v1156 = vmul.f32 %v1154, 1.6732632
    %v1157 = vsel %vm1147, %v1145, %v1155
    %v1158 = vsel %vm1148, %v1146, %v1156
    %v1159 = vmul.f32 %v1157, 1.050701
    %v1160 = vmul.f32 %v1158, 1.050701
    %v1161 = vmul.f32 %v1159, %v796
    %v1162 = vmul.f32 %v1160, %v796
    %1165 = vrot.lane.b32.xlu0 %v1161, 122
    %v1166 = vpop.permute.xlu0 %1165
    %1167 = vrot.lane.b32.xlu0 %v1162, 122
    %v1168 = vpop.permute.xlu0 %1167
    %v1171 = vsel %vm808, %v1166, 0.0
    %1172 = vadd.xlane.f32.xlu0 %v1171
    %v1173 = vpop.xlane.xlu0 %1172
    %v1174 = vsel %vm808, %v1168, 0.0
    %1175 = vadd.xlane.f32.xlu0 %v1174
    %v1176 = vpop.xlane.xlu0 %1175
    %v1177 = vadd.f32 %v1173, %v820
    %v1178 = vadd.f32 %v1176, %v820
    %v1181 = vperm.slane %v1177, %v218
    %v1182 = vperm.slane %v1178, %v218
    %v1183 = vsel %vm256, %v1182, %v1181
    %1185 = vrot.lane.b32.xlu0 %v1137, 3
    %v1186 = vpop.permute.xlu0 %1185
    %v1188 = vsel %vm833, %v1183, %v1186
    %v1189 = vsel %vm835, %v1188, -1e+30
    %v1190 = vsel %vm473, %v1189, -inf
    %1191 = vmax.xlane.f32.xlu0 %v1190
    %v1192 = vpop.xlane.xlu0 %1191
    %v1193 = vsub.f32 %v1189, %v1192
    %v1194 = vmul.f32 %v1193, 1.442695
    %v1195 = vpow.pop %v1194
    %v1196 = vsel %vm473, %v1195, 0.0
    %1197 = vadd.xlane.f32.xlu0 %v1196
    %v1198 = vpop.xlane.xlu0 %1197
    %v1199 = vlog2.pop %v1198
    %v1200 = vmul.f32 %v1199, 0.6931472
    %v1201 = vsub.f32 %v1193, %v1200
    %s1202 = scalar_lea.vmem %s13, 4
    %1203 = vst [vmem:[%s1202] sm:$0x3] %v1201
    %vm1204 = vcmp.eq.f32.partialorder %v1189, %v1192
    %v1205 = vsel %vm1204, %v218, 128
    %v1206 = vsel %vm473, %v1205, 2147483647
    %v1207 = vand.u32 %v1206, 65535
    %v1208 = vshra.s32 %v1206, 16
    %v1209 = vcvt.s32.f32 %v1207
    %v1210 = vcvt.s32.f32 %v1208
    %1211 = vmin.xlane.f32.xlu0 %v1210
    %v1212 = vpop.xlane.xlu0 %1211
    %vm1213 = vcmp.eq.f32.partialorder %v1210, %v1212
    %v1214 = vsel %vm1213, %v1209, inf
    %1215 = vmin.xlane.f32.xlu0 %v1214
    %v1216 = vpop.xlane.xlu0 %1215
    %v1217 = vcvt.f32.s32 %v1216
    %v1218 = vcvt.f32.s32 %v1212
    %v1219 = vshll.u32 %v1218, 16
    %v1220 = vadd.s32 %v1219, %v1217
    %vm1221 = vcmp.lt.s32.totalorder %v1220, 7
    %v1222 = vsel %vm1221, %v1220, 7
    %vm1223 = vcmp.eq.s32.totalorder %v218, %v1222
    %v1224 = vsel %vm1223, %v136, 0
    %v1225 = vsel %vm259, %v1224, 0
    %v1226 = vand.u32 %v1225, 65535
    %v1227 = vshrl.u32 %v1225, 16
    %v1228 = vcvt.s32.f32 %v1226
    %v1229 = vcvt.s32.f32 %v1227
    %1230 = vadd.xlane.f32.xlu0 %v1228
    %v1231 = vpop.xlane.xlu0 %1230
    %1232 = vadd.xlane.f32.xlu0 %v1229
    %v1233 = vpop.xlane.xlu0 %1232
    %v1234 = vcvt.f32.s32 %v1231
    %v1235 = vcvt.f32.s32 %v1233
    %v1236 = vshll.u32 %v1235, 16
    %v1237 = vadd.s32 %v1236, %v1234
    %vm1238 = vcmp.eq.s32.totalorder %v218, %v1237
    %v1239 = vsel %vm1238, 1, 0
    %v1240 = vcvt.s32.f32 %v1239
    %v1242 = vsel %vm888, %v1240, 0
    %1244 = vmatpush.msra.mxu0 0.0
    %1245 = vmatpush.msra.mxu0 0.0
    %1246 = vmatpush.msra.mxu0 0.0
    %1247 = vmatpush.msra.mxu0 0.0
    %1248 = vmatpush.msra.mxu0 0.0
    %1249 = vmatpush.msra.mxu0 0.0
    %1250 = vmatpush.msra.mxu0 0.0
    %1251 = vmatpush.msra.mxu0 0.0
    %1252 = vmatpush.msra.mxu0 0.0
    %1253 = vmatpush.msra.mxu0 %v893
    %1254 = vmatpush.msra.mxu0 %v161
    %1255 = vmatpush.msra.mxu0 %v160
    %1256 = vmatpush.msra.mxu0 %v159
    %1257 = vmatpush.msra.mxu0 %v158
    %1258 = vmatpush.msra.mxu0 %v157
    %1259 = vmatpush.msra.mxu0 %v156
    %1260 = vmatmul.f32.gmra.mxu0 %v1242
    %v1261 = vpop.f32.mrf.mxu0
    %v1262 = vadd.f32 0.0, %v1261
    %1263 = vdwg.mxu0
    %s1264 = scalar_lea.vmem [#allocation6], 80
    %v1265 = vld [vmem:[%s1264] sm:$0xff]
    %v1266 = vld [vmem:[%s1264 + $0x8] sm:$0xff]
    %v1267 = vld [vmem:[%s1264 + $0x10] sm:$0xff]
    %v1268 = vld [vmem:[%s1264 + $0x18] sm:$0xff]
    %v1269 = vld [vmem:[%s1264 + $0x20] sm:$0xff]
    %v1270 = vld [vmem:[%s1264 + $0x28] sm:$0xff]
    %v1271 = vld [vmem:[%s1264 + $0x30] sm:$0xff]
    %v1272 = vld [vmem:[%s1264 + $0x38] sm:$0xff]
    %v1273 = vld [vmem:[%s1264 + $0x40] sm:$0xff]
    %v1274 = vld [vmem:[%s1264 + $0x48] sm:$0xff]
    %s1275 = scalar_lea.vmem [#allocation7], 1
    %v1276 = vld [vmem:[%s1275] sm:$0x1]
    %v1277 = vadd.f32 %v139, %v1113
    %v1278 = vmul.f32 %v1277, 0.5
    %v1279 = vmul.f32 %v1278, %v233
    %v1280 = vsel %vm235, %v1279, 0.0
    %1281 = vadd.xlane.f32.xlu0 %v1280
    %v1282 = vpop.xlane.xlu0 %1281
    %v1284 = vperm.slane %v1282, 0
    %v1285 = vperm.slane %v1282, 1
    %v1288 = vadd.f32 %v169, %v1284
    %v1289 = vadd.f32 %v172, %v1285
    %1292 = vset.pattern.permute.xlu0 0
    %1293 = vperm.xlu0 %1292, %v1288
    %v1294 = vpop.permute.xlu0 %1293
    %1295 = vset.pattern.permute.xlu0 0
    %1296 = vperm.xlu0 %1295, %v1289
    %v1297 = vpop.permute.xlu0 %1296
    %v1298 = vperm.slane %v1294, %v218
    %v1299 = vperm.slane %v1297, %v218
    %v1300 = vsel %vm256, %v1299, %v1298
    %v1302 = vsel %vm259, %v1300, -inf
    %1303 = vmax.xlane.f32.xlu0 %v1302
    %v1304 = vpop.xlane.xlu0 %1303
    %v1306 = vperm.slane %v1304, 0
    %v1307 = vperm.slane %v1304, 1
    %v1310 = vsub.f32 %v1288, %v1306
    %v1311 = vsub.f32 %v1289, %v1307
    %v1312 = vmul.f32 %v1310, 1.442695
    %v1313 = vpow.pop %v1312
    %v1314 = vmul.f32 %v1311, 1.442695
    %v1315 = vpow.pop %v1314
    %1318 = vset.pattern.permute.xlu0 0
    %1319 = vperm.xlu0 %1318, %v1313
    %v1320 = vpop.permute.xlu0 %1319
    %1321 = vset.pattern.permute.xlu0 0
    %1322 = vperm.xlu0 %1321, %v1315
    %v1323 = vpop.permute.xlu0 %1322
    %v1324 = vperm.slane %v1320, %v218
    %v1325 = vperm.slane %v1323, %v218
    %v1326 = vsel %vm256, %v1325, %v1324
    %v1328 = vsel %vm259, %v1326, 0.0
    %1329 = vadd.xlane.f32.xlu0 %v1328
    %v1330 = vpop.xlane.xlu0 %1329
    %v1332 = vperm.slane %v1330, 0
    %v1333 = vperm.slane %v1330, 1
    %v1336 = vrcp.pop %v1332
    %v1337 = vmul.f32 %v1332, %v1336
    %v1338 = vsub.f32 1.0, %v1337
    %v1339 = vmul.f32 %v1336, %v1338
    %v1340 = vadd.f32 %v1336, %v1339
    %vm1341 = vweird.f32 %v1332
    %vm1342 = vweird.f32 %v1336
    %vm1343 = vmor %vm1341, %vm1342
    %v1344 = vsel %vm1343, %v1336, %v1340
    %v1345 = vand.u32 2147483647, %v1332
    %vm1346 = vcmp.eq.f32.partialorder %v1345, 8.507059e+37
    %v1347 = vand.u32 %v1332, 2147483648
    %v1348 = vor.u32 1.1754944e-38, %v1347
    %v1349 = vsel %vm1346, %v1348, %v1344
    %v1350 = vmul.f32 %v1313, %v1349
    %v1351 = vrcp.pop %v1333
    %v1352 = vmul.f32 %v1333, %v1351
    %v1353 = vsub.f32 1.0, %v1352
    %v1354 = vmul.f32 %v1351, %v1353
    %v1355 = vadd.f32 %v1351, %v1354
    %vm1356 = vweird.f32 %v1333
    %vm1357 = vweird.f32 %v1351
    %vm1358 = vmor %vm1356, %vm1357
    %v1359 = vsel %vm1358, %v1351, %v1355
    %v1360 = vand.u32 2147483647, %v1333
    %vm1361 = vcmp.eq.f32.partialorder %v1360, 8.507059e+37
    %v1362 = vand.u32 %v1333, 2147483648
    %v1363 = vor.u32 1.1754944e-38, %v1362
    %v1364 = vsel %vm1361, %v1363, %v1359
    %v1365 = vmul.f32 %v1315, %v1364
    %1367 = vset.pattern.permute.xlu0 0
    %1368 = vperm.xlu0 %1367, %v1350
    %v1369 = vpop.permute.xlu0 %1368
    %1372 = vset.pattern.permute.xlu0 0
    %1373 = vperm.xlu0 %1372, %v1365
    %v1374 = vpop.permute.xlu0 %1373
    %v1376 = vmul.f32 %v1369, %v137
    %v1377 = vmul.f32 %v1374, %v138
    %v1378 = vsel %vm166, %v1376, 0.0
    %v1379 = vrot.slane %v1378, 4
    %v1380 = vadd.f32 %v1378, %v1379
    %v1381 = vrot.slane %v1380, 2
    %v1382 = vadd.f32 %v1380, %v1381
    %v1383 = vrot.slane %v1382, 1
    %v1384 = vadd.f32 %v1382, %v1383
    %v1385 = vsel %vm166, %v1377, 0.0
    %v1386 = vrot.slane %v1385, 4
    %v1387 = vadd.f32 %v1385, %v1386
    %v1388 = vrot.slane %v1387, 2
    %v1389 = vadd.f32 %v1387, %v1388
    %v1390 = vrot.slane %v1389, 1
    %v1391 = vadd.f32 %v1389, %v1390
    %v1394 = vsel %vm256, %v1391, %v1384
    %1395 = vrot.lane.b32.xlu0 %v1394, 16
    %v1396 = vpop.permute.xlu0 %1395
    %1399 = vrot.lane.b32.xlu0 %v1278, 48
    %v1400 = vpop.permute.xlu0 %1399
    %v1402 = vsel %vm360, %v1262, %v1396
    %v1403 = vsel %vm362, %v1402, %v1400
    %v1405 = vperm.slane %v1276, 0
    %v1408 = vsel %vm367, %v1403, 0
    %1410 = vmatpush.msra.mxu0 0.0
    %1411 = vmatpush.msra.mxu0 0.0
    %1412 = vmatpush.msra.mxu0 0.0
    %1413 = vmatpush.msra.mxu0 0.0
    %1414 = vmatpush.msra.mxu0 0.0
    %1415 = vmatpush.msra.mxu0 0.0
    %1416 = vmatpush.msra.mxu0 %v1274
    %1417 = vmatpush.msra.mxu0 %v1273
    %1418 = vmatpush.msra.mxu0 %v1272
    %1419 = vmatpush.msra.mxu0 %v1271
    %1420 = vmatpush.msra.mxu0 %v1270
    %1421 = vmatpush.msra.mxu0 %v1269
    %1422 = vmatpush.msra.mxu0 %v1268
    %1423 = vmatpush.msra.mxu0 %v1267
    %1424 = vmatpush.msra.mxu0 %v1266
    %1425 = vmatpush.msra.mxu0 %v1265
    %1426 = vmatmul.f32.gmra.mxu0 %v1408
    %v1427 = vpop.f32.mrf.mxu0
    %v1428 = vadd.f32 %v1405, %v1427
    %1429 = vdwg.mxu0
    %v1430 = vxor.u32 %v1428, 2147483648
    %v1431 = vmul.f32 %v1430, 1.442695
    %v1432 = vpow.pop %v1431
    %v1433 = vadd.f32 %v1432, 1.0
    %v1434 = vrcp.pop %v1433
    %v1435 = vmul.f32 %v1433, %v1434
    %v1436 = vsub.f32 1.0, %v1435
    %v1437 = vmul.f32 %v1434, %v1436
    %v1438 = vadd.f32 %v1434, %v1437
    %vm1439 = vweird.f32 %v1433
    %vm1440 = vweird.f32 %v1434
    %vm1441 = vmor %vm1439, %vm1440
    %v1442 = vsel %vm1441, %v1434, %v1438
    %v1443 = vand.u32 2147483647, %v1433
    %vm1444 = vcmp.eq.f32.partialorder %v1443, 8.507059e+37
    %v1445 = vand.u32 %v1433, 2147483648
    %v1446 = vor.u32 1.1754944e-38, %v1445
    %v1447 = vsel %vm1444, %v1446, %v1442
    %v1448 = vmul.f32 1.0, %v1447
    %1450 = vrot.lane.b32.xlu0 %v1428, 32
    %v1451 = vpop.permute.xlu0 %1450
    %v1453 = vmul.f32 %v1448, %v1451
    %1455 = vrot.lane.b32.xlu0 %v1453, 64
    %v1456 = vpop.permute.xlu0 %1455
    %v1458 = vadd.f32 %v1428, %v1456
    %v1459 = vtanh.pop %v1458
    %v1460 = vsub.f32 1.0, %v1448
    %1462 = vrot.lane.b32.xlu0 %v1459, 96
    %v1463 = vpop.permute.xlu0 %1462
    %v1465 = vmul.f32 %v1460, %v1463
    %1466 = vrot.lane.b32.xlu0 %v1278, 32
    %v1467 = vpop.permute.xlu0 %1466
    %v1469 = vmul.f32 %v1448, %v1467
    %v1470 = vadd.f32 %v1465, %v1469
    %vm1471 = vcmp.gt.f32.partialorder %v1470, 0.0
    %v1472 = vmul.f32 %v1470, 1.442695
    %v1473 = vpow.pop %v1472
    %v1474 = vsub.f32 %v1473, 1.0
    %v1475 = vmul.f32 %v1474, 1.6732632
    %v1476 = vsel %vm1471, %v1470, %v1475
    %v1477 = vmul.f32 %v1476, 1.050701
    %1479 = vrot.lane.b32.xlu0 %v1470, 96
    %v1480 = vpop.permute.xlu0 %1479
    %v1482 = vsel %vm166, %v1480, %v1477
    %v1484 = vsel %vm447, %v1482, 0
    %1486 = vmatpush.msra.mxu0 0.0
    %1487 = vmatpush.msra.mxu0 0.0
    %1488 = vmatpush.msra.mxu0 0.0
    %1489 = vmatpush.msra.mxu0 0.0
    %1490 = vmatpush.msra.mxu0 0.0
    %1491 = vmatpush.msra.mxu0 0.0
    %1492 = vmatpush.msra.mxu0 0.0
    %1493 = vmatpush.msra.mxu0 0.0
    %1494 = vmatpush.msra.mxu0 %v148
    %1495 = vmatpush.msra.mxu0 %v147
    %1496 = vmatpush.msra.mxu0 %v146
    %1497 = vmatpush.msra.mxu0 %v145
    %1498 = vmatpush.msra.mxu0 %v144
    %1499 = vmatpush.msra.mxu0 %v143
    %1500 = vmatpush.msra.mxu0 %v142
    %1501 = vmatpush.msra.mxu0 %v141
    %1502 = vmatmul.f32.gmra.mxu0 %v1484
    %v1503 = vpop.f32.mrf.mxu0
    %v1504 = vadd.f32 %v445, %v1503
    %1505 = vdwg.mxu0
    %v1506 = vsel %vm471, %v1504, -1e+30
    %v1507 = vsel %vm473, %v1506, -inf
    %1508 = vmax.xlane.f32.xlu0 %v1507
    %v1509 = vpop.xlane.xlu0 %1508
    %v1510 = vsub.f32 %v1506, %v1509
    %v1511 = vmul.f32 %v1510, 1.442695
    %v1512 = vpow.pop %v1511
    %v1513 = vsel %vm473, %v1512, 0.0
    %1514 = vadd.xlane.f32.xlu0 %v1513
    %v1515 = vpop.xlane.xlu0 %1514
    %v1516 = vlog2.pop %v1515
    %v1517 = vmul.f32 %v1516, 0.6931472
    %v1518 = vsub.f32 %v1510, %v1517
    %s1519 = scalar_lea.vmem %s13, 6
    %1520 = vst [vmem:[%s1519] sm:$0x3] %v1518
    %vm1521 = vcmp.eq.f32.partialorder %v1506, %v1509
    %v1522 = vsel %vm1521, %v218, 128
    %v1523 = vsel %vm473, %v1522, 2147483647
    %v1524 = vand.u32 %v1523, 65535
    %v1525 = vshra.s32 %v1523, 16
    %v1526 = vcvt.s32.f32 %v1524
    %v1527 = vcvt.s32.f32 %v1525
    %1528 = vmin.xlane.f32.xlu0 %v1527
    %v1529 = vpop.xlane.xlu0 %1528
    %vm1530 = vcmp.eq.f32.partialorder %v1527, %v1529
    %v1531 = vsel %vm1530, %v1526, inf
    %1532 = vmin.xlane.f32.xlu0 %v1531
    %v1533 = vpop.xlane.xlu0 %1532
    %v1534 = vcvt.f32.s32 %v1533
    %v1535 = vcvt.f32.s32 %v1529
    %v1536 = vshll.u32 %v1535, 16
    %v1537 = vadd.s32 %v1536, %v1534
    %vm1538 = vcmp.eq.s32.totalorder %v218, %v1537
    %v1539 = vsel %vm1538, 1, 0
    %v1540 = vcvt.s32.f32 %v1539
    %v1542 = vsel %vm507, %v1540, 0
    %1544 = vmatpush.msra.mxu0 0.0
    %1545 = vmatpush.msra.mxu0 0.0
    %1546 = vmatpush.msra.mxu0 0.0
    %1547 = vmatpush.msra.mxu0 0.0
    %1548 = vmatpush.msra.mxu0 0.0
    %1549 = vmatpush.msra.mxu0 0.0
    %1550 = vmatpush.msra.mxu0 0.0
    %1551 = vmatpush.msra.mxu0 0.0
    %1552 = vmatpush.msra.mxu0 0.0
    %1553 = vmatpush.msra.mxu0 0.0
    %1554 = vmatpush.msra.mxu0 0.0
    %1555 = vmatpush.msra.mxu0 0.0
    %1556 = vmatpush.msra.mxu0 0.0
    %1557 = vmatpush.msra.mxu0 0.0
    %1558 = vmatpush.msra.mxu0 0.0
    %1559 = vmatpush.msra.mxu0 %v513
    %1560 = vmatmul.f32.gmra.mxu0 %v1542
    %v1561 = vpop.f32.mrf.mxu0
    %v1562 = vadd.f32 0.0, %v1561
    %1563 = vdwg.mxu0
    %v1564 = vmul.f32 %v1470, %v537
    %1566 = vrot.lane.b32.xlu0 %v1564, 96
    %v1567 = vpop.permute.xlu0 %1566
    %v1569 = vsel %vm235, %v1567, 0.0
    %1570 = vadd.xlane.f32.xlu0 %v1569
    %v1571 = vpop.xlane.xlu0 %1570
    %v1573 = vperm.slane %v1571, 0
    %v1574 = vperm.slane %v1571, 1
    %v1577 = vadd.f32 %v169, %v1573
    %v1578 = vadd.f32 %v172, %v1574
    %1581 = vset.pattern.permute.xlu0 0
    %1582 = vperm.xlu0 %1581, %v1577
    %v1583 = vpop.permute.xlu0 %1582
    %1584 = vset.pattern.permute.xlu0 0
    %1585 = vperm.xlu0 %1584, %v1578
    %v1586 = vpop.permute.xlu0 %1585
    %v1587 = vperm.slane %v1583, %v218
    %v1588 = vperm.slane %v1586, %v218
    %v1589 = vsel %vm256, %v1588, %v1587
    %v1591 = vsel %vm259, %v1589, -inf
    %1592 = vmax.xlane.f32.xlu0 %v1591
    %v1593 = vpop.xlane.xlu0 %1592
    %v1595 = vperm.slane %v1593, 0
    %v1596 = vperm.slane %v1593, 1
    %v1599 = vsub.f32 %v1577, %v1595
    %v1600 = vsub.f32 %v1578, %v1596
    %v1601 = vmul.f32 %v1599, 1.442695
    %v1602 = vpow.pop %v1601
    %v1603 = vmul.f32 %v1600, 1.442695
    %v1604 = vpow.pop %v1603
    %1607 = vset.pattern.permute.xlu0 0
    %1608 = vperm.xlu0 %1607, %v1602
    %v1609 = vpop.permute.xlu0 %1608
    %1610 = vset.pattern.permute.xlu0 0
    %1611 = vperm.xlu0 %1610, %v1604
    %v1612 = vpop.permute.xlu0 %1611
    %v1613 = vperm.slane %v1609, %v218
    %v1614 = vperm.slane %v1612, %v218
    %v1615 = vsel %vm256, %v1614, %v1613
    %v1617 = vsel %vm259, %v1615, 0.0
    %1618 = vadd.xlane.f32.xlu0 %v1617
    %v1619 = vpop.xlane.xlu0 %1618
    %v1621 = vperm.slane %v1619, 0
    %v1622 = vperm.slane %v1619, 1
    %v1625 = vrcp.pop %v1621
    %v1626 = vmul.f32 %v1621, %v1625
    %v1627 = vsub.f32 1.0, %v1626
    %v1628 = vmul.f32 %v1625, %v1627
    %v1629 = vadd.f32 %v1625, %v1628
    %vm1630 = vweird.f32 %v1621
    %vm1631 = vweird.f32 %v1625
    %vm1632 = vmor %vm1630, %vm1631
    %v1633 = vsel %vm1632, %v1625, %v1629
    %v1634 = vand.u32 2147483647, %v1621
    %vm1635 = vcmp.eq.f32.partialorder %v1634, 8.507059e+37
    %v1636 = vand.u32 %v1621, 2147483648
    %v1637 = vor.u32 1.1754944e-38, %v1636
    %v1638 = vsel %vm1635, %v1637, %v1633
    %v1639 = vmul.f32 %v1602, %v1638
    %v1640 = vrcp.pop %v1622
    %v1641 = vmul.f32 %v1622, %v1640
    %v1642 = vsub.f32 1.0, %v1641
    %v1643 = vmul.f32 %v1640, %v1642
    %v1644 = vadd.f32 %v1640, %v1643
    %vm1645 = vweird.f32 %v1622
    %vm1646 = vweird.f32 %v1640
    %vm1647 = vmor %vm1645, %vm1646
    %v1648 = vsel %vm1647, %v1640, %v1644
    %v1649 = vand.u32 2147483647, %v1622
    %vm1650 = vcmp.eq.f32.partialorder %v1649, 8.507059e+37
    %v1651 = vand.u32 %v1622, 2147483648
    %v1652 = vor.u32 1.1754944e-38, %v1651
    %v1653 = vsel %vm1650, %v1652, %v1648
    %v1654 = vmul.f32 %v1604, %v1653
    %1656 = vset.pattern.permute.xlu0 0
    %1657 = vperm.xlu0 %1656, %v1639
    %v1658 = vpop.permute.xlu0 %1657
    %1661 = vset.pattern.permute.xlu0 0
    %1662 = vperm.xlu0 %1661, %v1654
    %v1663 = vpop.permute.xlu0 %1662
    %v1665 = vmul.f32 %v1658, %v137
    %v1666 = vmul.f32 %v1663, %v138
    %v1667 = vsel %vm166, %v1665, 0.0
    %v1668 = vrot.slane %v1667, 4
    %v1669 = vadd.f32 %v1667, %v1668
    %v1670 = vrot.slane %v1669, 2
    %v1671 = vadd.f32 %v1669, %v1670
    %v1672 = vrot.slane %v1671, 1
    %v1673 = vadd.f32 %v1671, %v1672
    %v1674 = vsel %vm166, %v1666, 0.0
    %v1675 = vrot.slane %v1674, 4
    %v1676 = vadd.f32 %v1674, %v1675
    %v1677 = vrot.slane %v1676, 2
    %v1678 = vadd.f32 %v1676, %v1677
    %v1679 = vrot.slane %v1678, 1
    %v1680 = vadd.f32 %v1678, %v1679
    %v1683 = vsel %vm256, %v1680, %v1673
    %1684 = vrot.lane.b32.xlu0 %v1683, 16
    %v1685 = vpop.permute.xlu0 %1684
    %1687 = vrot.lane.b32.xlu0 %v1470, 16
    %v1688 = vpop.permute.xlu0 %1687
    %v1690 = vsel %vm360, %v1562, %v1685
    %v1691 = vsel %vm362, %v1690, %v1688
    %v1693 = vsel %vm367, %v1691, 0
    %1695 = vmatpush.msra.mxu0 0.0
    %1696 = vmatpush.msra.mxu0 0.0
    %1697 = vmatpush.msra.mxu0 0.0
    %1698 = vmatpush.msra.mxu0 0.0
    %1699 = vmatpush.msra.mxu0 0.0
    %1700 = vmatpush.msra.mxu0 0.0
    %1701 = vmatpush.msra.mxu0 %v1274
    %1702 = vmatpush.msra.mxu0 %v1273
    %1703 = vmatpush.msra.mxu0 %v1272
    %1704 = vmatpush.msra.mxu0 %v1271
    %1705 = vmatpush.msra.mxu0 %v1270
    %1706 = vmatpush.msra.mxu0 %v1269
    %1707 = vmatpush.msra.mxu0 %v1268
    %1708 = vmatpush.msra.mxu0 %v1267
    %1709 = vmatpush.msra.mxu0 %v1266
    %1710 = vmatpush.msra.mxu0 %v1265
    %1711 = vmatmul.f32.gmra.mxu0 %v1693
    %v1712 = vpop.f32.mrf.mxu0
    %v1713 = vadd.f32 %v1405, %v1712
    %1714 = vdwg.mxu0
    %v1715 = vxor.u32 %v1713, 2147483648
    %v1716 = vmul.f32 %v1715, 1.442695
    %v1717 = vpow.pop %v1716
    %v1718 = vadd.f32 %v1717, 1.0
    %v1719 = vrcp.pop %v1718
    %v1720 = vmul.f32 %v1718, %v1719
    %v1721 = vsub.f32 1.0, %v1720
    %v1722 = vmul.f32 %v1719, %v1721
    %v1723 = vadd.f32 %v1719, %v1722
    %vm1724 = vweird.f32 %v1718
    %vm1725 = vweird.f32 %v1719
    %vm1726 = vmor %vm1724, %vm1725
    %v1727 = vsel %vm1726, %v1719, %v1723
    %v1728 = vand.u32 2147483647, %v1718
    %vm1729 = vcmp.eq.f32.partialorder %v1728, 8.507059e+37
    %v1730 = vand.u32 %v1718, 2147483648
    %v1731 = vor.u32 1.1754944e-38, %v1730
    %v1732 = vsel %vm1729, %v1731, %v1727
    %v1733 = vmul.f32 1.0, %v1732
    %1735 = vrot.lane.b32.xlu0 %v1713, 32
    %v1736 = vpop.permute.xlu0 %1735
    %v1738 = vmul.f32 %v1733, %v1736
    %1740 = vrot.lane.b32.xlu0 %v1738, 64
    %v1741 = vpop.permute.xlu0 %1740
    %v1743 = vadd.f32 %v1713, %v1741
    %v1744 = vtanh.pop %v1743
    %v1745 = vsub.f32 1.0, %v1733
    %1747 = vrot.lane.b32.xlu0 %v1744, 96
    %v1748 = vpop.permute.xlu0 %1747
    %v1750 = vmul.f32 %v1745, %v1748
    %v1751 = vmul.f32 %v1733, %v1470
    %v1752 = vadd.f32 %v1750, %v1751
    %vm1753 = vcmp.gt.f32.partialorder %v1752, 0.0
    %v1754 = vmul.f32 %v1752, 1.442695
    %v1755 = vpow.pop %v1754
    %v1756 = vsub.f32 %v1755, 1.0
    %v1757 = vmul.f32 %v1756, 1.6732632
    %v1758 = vsel %vm1753, %v1752, %v1757
    %v1759 = vmul.f32 %v1758, 1.050701
    %1761 = vrot.lane.b32.xlu0 %v1752, 96
    %v1762 = vpop.permute.xlu0 %1761
    %v1764 = vsel %vm166, %v1762, %v1759
    %v1766 = vsel %vm447, %v1764, 0
    %1768 = vmatpush.msra.mxu0 0.0
    %1769 = vmatpush.msra.mxu0 0.0
    %1770 = vmatpush.msra.mxu0 0.0
    %1771 = vmatpush.msra.mxu0 0.0
    %1772 = vmatpush.msra.mxu0 0.0
    %1773 = vmatpush.msra.mxu0 0.0
    %1774 = vmatpush.msra.mxu0 0.0
    %1775 = vmatpush.msra.mxu0 0.0
    %1776 = vmatpush.msra.mxu0 %v148
    %1777 = vmatpush.msra.mxu0 %v147
    %1778 = vmatpush.msra.mxu0 %v146
    %1779 = vmatpush.msra.mxu0 %v145
    %1780 = vmatpush.msra.mxu0 %v144
    %1781 = vmatpush.msra.mxu0 %v143
    %1782 = vmatpush.msra.mxu0 %v142
    %1783 = vmatpush.msra.mxu0 %v141
    %1784 = vmatmul.f32.gmra.mxu0 %v1766
    %v1785 = vpop.f32.mrf.mxu0
    %v1786 = vadd.f32 %v445, %v1785
    %1787 = vdwg.mxu0
    %v1789 = vrot.slane %v1786, 1
    %v1790 = vperm.slane %v1786, 0
    %v1791 = vperm.slane %v1789, 0
    %v1794 = vadd.f32 %v1790, %v772
    %v1795 = vadd.f32 %v1791, %v774
    %vm1796 = vcmp.gt.f32.partialorder %v1794, 0.0
    %vm1797 = vcmp.gt.f32.partialorder %v1795, 0.0
    %v1798 = vmul.f32 %v1794, 1.442695
    %v1799 = vpow.pop %v1798
    %v1800 = vmul.f32 %v1795, 1.442695
    %v1801 = vpow.pop %v1800
    %v1802 = vsub.f32 %v1799, 1.0
    %v1803 = vsub.f32 %v1801, 1.0
    %v1804 = vmul.f32 %v1802, 1.6732632
    %v1805 = vmul.f32 %v1803, 1.6732632
    %v1806 = vsel %vm1796, %v1794, %v1804
    %v1807 = vsel %vm1797, %v1795, %v1805
    %v1808 = vmul.f32 %v1806, 1.050701
    %v1809 = vmul.f32 %v1807, 1.050701
    %v1810 = vmul.f32 %v1808, %v796
    %v1811 = vmul.f32 %v1809, %v796
    %1814 = vrot.lane.b32.xlu0 %v1810, 122
    %v1815 = vpop.permute.xlu0 %1814
    %1816 = vrot.lane.b32.xlu0 %v1811, 122
    %v1817 = vpop.permute.xlu0 %1816
    %v1820 = vsel %vm808, %v1815, 0.0
    %1821 = vadd.xlane.f32.xlu0 %v1820
    %v1822 = vpop.xlane.xlu0 %1821
    %v1823 = vsel %vm808, %v1817, 0.0
    %1824 = vadd.xlane.f32.xlu0 %v1823
    %v1825 = vpop.xlane.xlu0 %1824
    %v1826 = vadd.f32 %v1822, %v820
    %v1827 = vadd.f32 %v1825, %v820
    %v1830 = vperm.slane %v1826, %v218
    %v1831 = vperm.slane %v1827, %v218
    %v1832 = vsel %vm256, %v1831, %v1830
    %1834 = vrot.lane.b32.xlu0 %v1786, 3
    %v1835 = vpop.permute.xlu0 %1834
    %v1837 = vsel %vm833, %v1832, %v1835
    %v1838 = vsel %vm835, %v1837, -1e+30
    %v1839 = vsel %vm473, %v1838, -inf
    %1840 = vmax.xlane.f32.xlu0 %v1839
    %v1841 = vpop.xlane.xlu0 %1840
    %v1842 = vsub.f32 %v1838, %v1841
    %v1843 = vmul.f32 %v1842, 1.442695
    %v1844 = vpow.pop %v1843
    %v1845 = vsel %vm473, %v1844, 0.0
    %1846 = vadd.xlane.f32.xlu0 %v1845
    %v1847 = vpop.xlane.xlu0 %1846
    %v1848 = vlog2.pop %v1847
    %v1849 = vmul.f32 %v1848, 0.6931472
    %v1850 = vsub.f32 %v1842, %v1849
    %s1851 = scalar_lea.vmem %s13, 8
    %1852 = vst [vmem:[%s1851] sm:$0x3] %v1850
    %vm1853 = vcmp.eq.f32.partialorder %v1838, %v1841
    %v1854 = vsel %vm1853, %v218, 128
    %v1855 = vsel %vm473, %v1854, 2147483647
    %v1856 = vand.u32 %v1855, 65535
    %v1857 = vshra.s32 %v1855, 16
    %v1858 = vcvt.s32.f32 %v1856
    %v1859 = vcvt.s32.f32 %v1857
    %1860 = vmin.xlane.f32.xlu0 %v1859
    %v1861 = vpop.xlane.xlu0 %1860
    %vm1862 = vcmp.eq.f32.partialorder %v1859, %v1861
    %v1863 = vsel %vm1862, %v1858, inf
    %1864 = vmin.xlane.f32.xlu0 %v1863
    %v1865 = vpop.xlane.xlu0 %1864
    %v1866 = vcvt.f32.s32 %v1865
    %v1867 = vcvt.f32.s32 %v1861
    %v1868 = vshll.u32 %v1867, 16
    %v1869 = vadd.s32 %v1868, %v1866
    %vm1870 = vcmp.lt.s32.totalorder %v1869, 7
    %v1871 = vsel %vm1870, %v1869, 7
    %vm1872 = vcmp.eq.s32.totalorder %v218, %v1871
    %v1873 = vsel %vm1872, %v136, 0
    %v1874 = vsel %vm259, %v1873, 0
    %v1875 = vand.u32 %v1874, 65535
    %v1876 = vshrl.u32 %v1874, 16
    %v1877 = vcvt.s32.f32 %v1875
    %v1878 = vcvt.s32.f32 %v1876
    %1879 = vadd.xlane.f32.xlu0 %v1877
    %v1880 = vpop.xlane.xlu0 %1879
    %1881 = vadd.xlane.f32.xlu0 %v1878
    %v1882 = vpop.xlane.xlu0 %1881
    %v1883 = vcvt.f32.s32 %v1880
    %v1884 = vcvt.f32.s32 %v1882
    %v1885 = vshll.u32 %v1884, 16
    %v1886 = vadd.s32 %v1885, %v1883
    %vm1887 = vcmp.eq.s32.totalorder %v218, %v1886
    %v1888 = vsel %vm1887, 1, 0
    %v1889 = vcvt.s32.f32 %v1888
    %v1891 = vsel %vm888, %v1889, 0
    %1893 = vmatpush.msra.mxu0 0.0
    %1894 = vmatpush.msra.mxu0 0.0
    %1895 = vmatpush.msra.mxu0 0.0
    %1896 = vmatpush.msra.mxu0 0.0
    %1897 = vmatpush.msra.mxu0 0.0
    %1898 = vmatpush.msra.mxu0 0.0
    %1899 = vmatpush.msra.mxu0 0.0
    %1900 = vmatpush.msra.mxu0 0.0
    %1901 = vmatpush.msra.mxu0 0.0
    %1902 = vmatpush.msra.mxu0 %v893
    %1903 = vmatpush.msra.mxu0 %v161
    %1904 = vmatpush.msra.mxu0 %v160
    %1905 = vmatpush.msra.mxu0 %v159
    %1906 = vmatpush.msra.mxu0 %v158
    %1907 = vmatpush.msra.mxu0 %v157
    %1908 = vmatpush.msra.mxu0 %v156
    %1909 = vmatmul.f32.gmra.mxu0 %v1891
    %v1910 = vpop.f32.mrf.mxu0
    %v1911 = vadd.f32 0.0, %v1910
    %1912 = vdwg.mxu0
    %v1913 = vmul.f32 %v1752, %v537
    %1915 = vrot.lane.b32.xlu0 %v1913, 96
    %v1916 = vpop.permute.xlu0 %1915
    %v1918 = vsel %vm235, %v1916, 0.0
    %1919 = vadd.xlane.f32.xlu0 %v1918
    %v1920 = vpop.xlane.xlu0 %1919
    %v1922 = vperm.slane %v1920, 0
    %v1923 = vperm.slane %v1920, 1
    %v1926 = vadd.f32 %v169, %v1922
    %v1927 = vadd.f32 %v172, %v1923
    %1930 = vset.pattern.permute.xlu0 0
    %1931 = vperm.xlu0 %1930, %v1926
    %v1932 = vpop.permute.xlu0 %1931
    %1933 = vset.pattern.permute.xlu0 0
    %1934 = vperm.xlu0 %1933, %v1927
    %v1935 = vpop.permute.xlu0 %1934
    %v1936 = vperm.slane %v1932, %v218
    %v1937 = vperm.slane %v1935, %v218
    %v1938 = vsel %vm256, %v1937, %v1936
    %v1940 = vsel %vm259, %v1938, -inf
    %1941 = vmax.xlane.f32.xlu0 %v1940
    %v1942 = vpop.xlane.xlu0 %1941
    %v1944 = vperm.slane %v1942, 0
    %v1945 = vperm.slane %v1942, 1
    %v1948 = vsub.f32 %v1926, %v1944
    %v1949 = vsub.f32 %v1927, %v1945
    %v1950 = vmul.f32 %v1948, 1.442695
    %v1951 = vpow.pop %v1950
    %v1952 = vmul.f32 %v1949, 1.442695
    %v1953 = vpow.pop %v1952
    %1956 = vset.pattern.permute.xlu0 0
    %1957 = vperm.xlu0 %1956, %v1951
    %v1958 = vpop.permute.xlu0 %1957
    %1959 = vset.pattern.permute.xlu0 0
    %1960 = vperm.xlu0 %1959, %v1953
    %v1961 = vpop.permute.xlu0 %1960
    %v1962 = vperm.slane %v1958, %v218
    %v1963 = vperm.slane %v1961, %v218
    %v1964 = vsel %vm256, %v1963, %v1962
    %v1966 = vsel %vm259, %v1964, 0.0
    %1967 = vadd.xlane.f32.xlu0 %v1966
    %v1968 = vpop.xlane.xlu0 %1967
    %v1970 = vperm.slane %v1968, 0
    %v1971 = vperm.slane %v1968, 1
    %v1974 = vrcp.pop %v1970
    %v1975 = vmul.f32 %v1970, %v1974
    %v1976 = vsub.f32 1.0, %v1975
    %v1977 = vmul.f32 %v1974, %v1976
    %v1978 = vadd.f32 %v1974, %v1977
    %vm1979 = vweird.f32 %v1970
    %vm1980 = vweird.f32 %v1974
    %vm1981 = vmor %vm1979, %vm1980
    %v1982 = vsel %vm1981, %v1974, %v1978
    %v1983 = vand.u32 2147483647, %v1970
    %vm1984 = vcmp.eq.f32.partialorder %v1983, 8.507059e+37
    %v1985 = vand.u32 %v1970, 2147483648
    %v1986 = vor.u32 1.1754944e-38, %v1985
    %v1987 = vsel %vm1984, %v1986, %v1982
    %v1988 = vmul.f32 %v1951, %v1987
    %v1989 = vrcp.pop %v1971
    %v1990 = vmul.f32 %v1971, %v1989
    %v1991 = vsub.f32 1.0, %v1990
    %v1992 = vmul.f32 %v1989, %v1991
    %v1993 = vadd.f32 %v1989, %v1992
    %vm1994 = vweird.f32 %v1971
    %vm1995 = vweird.f32 %v1989
    %vm1996 = vmor %vm1994, %vm1995
    %v1997 = vsel %vm1996, %v1989, %v1993
    %v1998 = vand.u32 2147483647, %v1971
    %vm1999 = vcmp.eq.f32.partialorder %v1998, 8.507059e+37
    %v2000 = vand.u32 %v1971, 2147483648
    %v2001 = vor.u32 1.1754944e-38, %v2000
    %v2002 = vsel %vm1999, %v2001, %v1997
    %v2003 = vmul.f32 %v1953, %v2002
    %2005 = vset.pattern.permute.xlu0 0
    %2006 = vperm.xlu0 %2005, %v1988
    %v2007 = vpop.permute.xlu0 %2006
    %2010 = vset.pattern.permute.xlu0 0
    %2011 = vperm.xlu0 %2010, %v2003
    %v2012 = vpop.permute.xlu0 %2011
    %v2014 = vmul.f32 %v2007, %v137
    %v2015 = vmul.f32 %v2012, %v138
    %v2016 = vsel %vm166, %v2014, 0.0
    %v2017 = vrot.slane %v2016, 4
    %v2018 = vadd.f32 %v2016, %v2017
    %v2019 = vrot.slane %v2018, 2
    %v2020 = vadd.f32 %v2018, %v2019
    %v2021 = vrot.slane %v2020, 1
    %v2022 = vadd.f32 %v2020, %v2021
    %v2023 = vsel %vm166, %v2015, 0.0
    %v2024 = vrot.slane %v2023, 4
    %v2025 = vadd.f32 %v2023, %v2024
    %v2026 = vrot.slane %v2025, 2
    %v2027 = vadd.f32 %v2025, %v2026
    %v2028 = vrot.slane %v2027, 1
    %v2029 = vadd.f32 %v2027, %v2028
    %v2032 = vsel %vm256, %v2029, %v2022
    %2033 = vrot.lane.b32.xlu0 %v2032, 16
    %v2034 = vpop.permute.xlu0 %2033
    %2036 = vrot.lane.b32.xlu0 %v1752, 16
    %v2037 = vpop.permute.xlu0 %2036
    %v2039 = vsel %vm360, %v1911, %v2034
    %v2040 = vsel %vm362, %v2039, %v2037
    %v2042 = vsel %vm367, %v2040, 0
    %2044 = vmatpush.msra.mxu0 0.0
    %2045 = vmatpush.msra.mxu0 0.0
    %2046 = vmatpush.msra.mxu0 0.0
    %2047 = vmatpush.msra.mxu0 0.0
    %2048 = vmatpush.msra.mxu0 0.0
    %2049 = vmatpush.msra.mxu0 0.0
    %2050 = vmatpush.msra.mxu0 %v1274
    %2051 = vmatpush.msra.mxu0 %v1273
    %2052 = vmatpush.msra.mxu0 %v1272
    %2053 = vmatpush.msra.mxu0 %v1271
    %2054 = vmatpush.msra.mxu0 %v1270
    %2055 = vmatpush.msra.mxu0 %v1269
    %2056 = vmatpush.msra.mxu0 %v1268
    %2057 = vmatpush.msra.mxu0 %v1267
    %2058 = vmatpush.msra.mxu0 %v1266
    %2059 = vmatpush.msra.mxu0 %v1265
    %2060 = vmatmul.f32.gmra.mxu0 %v2042
    %v2061 = vpop.f32.mrf.mxu0
    %v2062 = vadd.f32 %v1405, %v2061
    %2063 = vdwg.mxu0
    %v2064 = vxor.u32 %v2062, 2147483648
    %v2065 = vmul.f32 %v2064, 1.442695
    %v2066 = vpow.pop %v2065
    %v2067 = vadd.f32 %v2066, 1.0
    %v2068 = vrcp.pop %v2067
    %v2069 = vmul.f32 %v2067, %v2068
    %v2070 = vsub.f32 1.0, %v2069
    %v2071 = vmul.f32 %v2068, %v2070
    %v2072 = vadd.f32 %v2068, %v2071
    %vm2073 = vweird.f32 %v2067
    %vm2074 = vweird.f32 %v2068
    %vm2075 = vmor %vm2073, %vm2074
    %v2076 = vsel %vm2075, %v2068, %v2072
    %v2077 = vand.u32 2147483647, %v2067
    %vm2078 = vcmp.eq.f32.partialorder %v2077, 8.507059e+37
    %v2079 = vand.u32 %v2067, 2147483648
    %v2080 = vor.u32 1.1754944e-38, %v2079
    %v2081 = vsel %vm2078, %v2080, %v2076
    %v2082 = vmul.f32 1.0, %v2081
    %2084 = vrot.lane.b32.xlu0 %v2062, 32
    %v2085 = vpop.permute.xlu0 %2084
    %v2087 = vmul.f32 %v2082, %v2085
    %2089 = vrot.lane.b32.xlu0 %v2087, 64
    %v2090 = vpop.permute.xlu0 %2089
    %v2092 = vadd.f32 %v2062, %v2090
    %v2093 = vtanh.pop %v2092
    %v2094 = vsub.f32 1.0, %v2082
    %2096 = vrot.lane.b32.xlu0 %v2093, 96
    %v2097 = vpop.permute.xlu0 %2096
    %v2099 = vmul.f32 %v2094, %v2097
    %v2100 = vmul.f32 %v2082, %v1752
    %v2101 = vadd.f32 %v2099, %v2100
    %vm2102 = vcmp.gt.f32.partialorder %v2101, 0.0
    %v2103 = vmul.f32 %v2101, 1.442695
    %v2104 = vpow.pop %v2103
    %v2105 = vsub.f32 %v2104, 1.0
    %v2106 = vmul.f32 %v2105, 1.6732632
    %v2107 = vsel %vm2102, %v2101, %v2106
    %v2108 = vmul.f32 %v2107, 1.050701
    %2110 = vrot.lane.b32.xlu0 %v2101, 96
    %v2111 = vpop.permute.xlu0 %2110
    %v2113 = vsel %vm166, %v2111, %v2108
    %v2115 = vsel %vm447, %v2113, 0
    %2117 = vmatpush.msra.mxu0 0.0
    %2118 = vmatpush.msra.mxu0 0.0
    %2119 = vmatpush.msra.mxu0 0.0
    %2120 = vmatpush.msra.mxu0 0.0
    %2121 = vmatpush.msra.mxu0 0.0
    %2122 = vmatpush.msra.mxu0 0.0
    %2123 = vmatpush.msra.mxu0 0.0
    %2124 = vmatpush.msra.mxu0 0.0
    %2125 = vmatpush.msra.mxu0 %v148
    %2126 = vmatpush.msra.mxu0 %v147
    %2127 = vmatpush.msra.mxu0 %v146
    %2128 = vmatpush.msra.mxu0 %v145
    %2129 = vmatpush.msra.mxu0 %v144
    %2130 = vmatpush.msra.mxu0 %v143
    %2131 = vmatpush.msra.mxu0 %v142
    %2132 = vmatpush.msra.mxu0 %v141
    %2133 = vmatmul.f32.gmra.mxu0 %v2115
    %v2134 = vpop.f32.mrf.mxu0
    %v2135 = vadd.f32 %v445, %v2134
    %2136 = vdwg.mxu0
    %v2138 = vrot.slane %v2135, 1
    %v2139 = vperm.slane %v2135, 0
    %v2140 = vperm.slane %v2138, 0
    %v2143 = vadd.f32 %v2139, %v772
    %v2144 = vadd.f32 %v2140, %v774
    %vm2145 = vcmp.gt.f32.partialorder %v2143, 0.0
    %vm2146 = vcmp.gt.f32.partialorder %v2144, 0.0
    %v2147 = vmul.f32 %v2143, 1.442695
    %v2148 = vpow.pop %v2147
    %v2149 = vmul.f32 %v2144, 1.442695
    %v2150 = vpow.pop %v2149
    %v2151 = vsub.f32 %v2148, 1.0
    %v2152 = vsub.f32 %v2150, 1.0
    %v2153 = vmul.f32 %v2151, 1.6732632
    %v2154 = vmul.f32 %v2152, 1.6732632
    %v2155 = vsel %vm2145, %v2143, %v2153
    %v2156 = vsel %vm2146, %v2144, %v2154
    %v2157 = vmul.f32 %v2155, 1.050701
    %v2158 = vmul.f32 %v2156, 1.050701
    %v2159 = vmul.f32 %v2157, %v796
    %v2160 = vmul.f32 %v2158, %v796
    %2163 = vrot.lane.b32.xlu0 %v2159, 122
    %v2164 = vpop.permute.xlu0 %2163
    %2165 = vrot.lane.b32.xlu0 %v2160, 122
    %v2166 = vpop.permute.xlu0 %2165
    %v2169 = vsel %vm808, %v2164, 0.0
    %2170 = vadd.xlane.f32.xlu0 %v2169
    %v2171 = vpop.xlane.xlu0 %2170
    %v2172 = vsel %vm808, %v2166, 0.0
    %2173 = vadd.xlane.f32.xlu0 %v2172
    %v2174 = vpop.xlane.xlu0 %2173
    %v2175 = vadd.f32 %v2171, %v820
    %v2176 = vadd.f32 %v2174, %v820
    %v2179 = vperm.slane %v2175, %v218
    %v2180 = vperm.slane %v2176, %v218
    %v2181 = vsel %vm256, %v2180, %v2179
    %2183 = vrot.lane.b32.xlu0 %v2135, 3
    %v2184 = vpop.permute.xlu0 %2183
    %v2186 = vsel %vm833, %v2181, %v2184
    %v2187 = vsel %vm835, %v2186, -1e+30
    %v2188 = vsel %vm473, %v2187, -inf
    %2189 = vmax.xlane.f32.xlu0 %v2188
    %v2190 = vpop.xlane.xlu0 %2189
    %v2191 = vsub.f32 %v2187, %v2190
    %v2192 = vmul.f32 %v2191, 1.442695
    %v2193 = vpow.pop %v2192
    %v2194 = vsel %vm473, %v2193, 0.0
    %2195 = vadd.xlane.f32.xlu0 %v2194
    %v2196 = vpop.xlane.xlu0 %2195
    %v2197 = vlog2.pop %v2196
    %v2198 = vmul.f32 %v2197, 0.6931472
    %v2199 = vsub.f32 %v2191, %v2198
    %s2200 = scalar_lea.vmem %s13, 10
    %2201 = vst [vmem:[%s2200] sm:$0x3] %v2199
    %vm2202 = vcmp.eq.f32.partialorder %v2187, %v2190
    %v2203 = vsel %vm2202, %v218, 128
    %v2204 = vsel %vm473, %v2203, 2147483647
    %v2205 = vand.u32 %v2204, 65535
    %v2206 = vshra.s32 %v2204, 16
    %v2207 = vcvt.s32.f32 %v2205
    %v2208 = vcvt.s32.f32 %v2206
    %2209 = vmin.xlane.f32.xlu0 %v2208
    %v2210 = vpop.xlane.xlu0 %2209
    %vm2211 = vcmp.eq.f32.partialorder %v2208, %v2210
    %v2212 = vsel %vm2211, %v2207, inf
    %2213 = vmin.xlane.f32.xlu0 %v2212
    %v2214 = vpop.xlane.xlu0 %2213
    %v2215 = vcvt.f32.s32 %v2214
    %v2216 = vcvt.f32.s32 %v2210
    %v2217 = vshll.u32 %v2216, 16
    %v2218 = vadd.s32 %v2217, %v2215
    %vm2219 = vcmask 7168
    %v2220 = vsel %vm2219, %v503, %v867
    %vm2221 = vcmask 15360
    %v2222 = vsel %vm2221, %v2220, %v1220
    %vm2223 = vcmask 23552
    %v2224 = vsel %vm2223, %v2222, %v1537
    %vm2225 = vcmask 31744
    %v2226 = vsel %vm2225, %v2224, %v1869
    %vm2227 = vcmask 39936
    %v2228 = vsel %vm2227, %v2226, %v2218
    %vm2229 = vcmask 41984
    %2230 = vst.msk [vmem:[%s14] sm:$0x3] %vm2229, %v2228
    // Predicated region
    $region78: #{multi_decoder_forward.1} parent=1 // pred_check
      _
    $region79: #{multi_decoder_forward.1} parent=1 // pred_check_branch
      %2232 = sbr.rel (0) target = $region81
    $region80: #{multi_decoder_forward.1} parent=1 // pred_region
      _
    $region81: #{multi_decoder_forward.1} parent=1 // pred_fallthru
      _
    // Predicated region
    $region82: #{multi_decoder_forward.1} parent=1 // pred_check
      _
    $region83: #{multi_decoder_forward.1} parent=1 // pred_check_branch
      %2234 = sbr.rel (0) target = $region85
    $region84: #{multi_decoder_forward.1} parent=1 // pred_region
      _
    $region85: #{multi_decoder_forward.1} parent=1 // pred_fallthru
      _
    // Predicated region
    $region86: #{multi_decoder_forward.1} parent=1 // pred_check
      _
    $region87: #{multi_decoder_forward.1} parent=1 // pred_check_branch
      %2236 = sbr.rel (0) target = $region89
    $region88: #{multi_decoder_forward.1} parent=1 // pred_region
      _
    $region89: #{multi_decoder_forward.1} parent=1 // pred_fallthru
      _
    // Predicated region
    $region90: #{multi_decoder_forward.1} parent=1 // pred_check
      _
    $region91: #{multi_decoder_forward.1} parent=1 // pred_check_branch
      %2238 = sbr.rel (0) target = $region93
    $region92: #{multi_decoder_forward.1} parent=1 // pred_region
      _
    $region93: #{multi_decoder_forward.1} parent=1 // pred_fallthru
      _
    %2239 = vsyncpa [#allocation3], 1
    %2240 = vsyncpa [#allocation5], 1
    %2241 = vsyncpa [#allocation8], 1
    %2242 = vsyncpa [#allocation11], 1

</llo_original>
